<compile_context>
chip_gen: v7x
topology: tpu7x:2x2x1
jax: 0.10.0
libtpu: 0.0.40
codegen_flags: <defaults>
</compile_context>

<pallas_src>
import functools

import jax
import jax.numpy as jnp
from jax.experimental import pallas as pl
from jax.experimental.pallas import tpu as pltpu

INPUT_SIZE = 2
H1, H2, H3 = 128, 64, 32
OUTPUT_SIZE = 1
BN_EPS = 1e-5

# Conservative f32 working-set estimate per padded batch row for the single-pass
# fast path (x + h1/a1 + h2/a2 + h3/a3 + masked temporaries + output + slack).
_FAST_BYTES_PER_ROW = 3584
# Per-row residency of the tiled path (input 8 B + output 4 B).
_TILED_RESIDENT_BYTES_PER_ROW = 12
# Per-tile-row f32 intermediates of the tiled path.
_TILED_BYTES_PER_TILE_ROW = 2048


def _round_up(n, m):
    return (n + m - 1) // m * m


def _vmem_budget_bytes():
    """Per-generation VMEM budget (capacity minus headroom for Mosaic temporaries).

    Falls back to the smallest current generation (v7x: 64 MiB per TensorCore) if
    the hardware query is unavailable, so thresholds stay safe everywhere.
    """
    try:
        cap = int(pltpu.get_tpu_info().vmem_capacity_bytes)
    except Exception:
        cap = 64 * 1024 * 1024
    return max(cap - 16 * 1024 * 1024, 32 * 1024 * 1024)


def _col(v):
    return v.reshape(-1, 1).astype(jnp.float32)


def _bn_args(xT, params):
    """Argument tuple shared by the fast and tiled BN-path kernels."""
    return (
        xT,
        _col(params["w1"][:, 0]), _col(params["w1"][:, 1]),
        params["w2"].astype(jnp.float32),
        params["w3"].astype(jnp.float32),
        params["w4"].T.astype(jnp.float32),
        params["b4"].reshape(1, 1).astype(jnp.float32),
        _col(params["g1"]), _col(params["be1"]),
        _col(params["g2"]), _col(params["be2"]),
        _col(params["g3"]), _col(params["be3"]),
    )


# ---------------------------------------------------------------------------
# Fast path: whole padded batch resident in VMEM, single kernel invocation.
# ---------------------------------------------------------------------------
def co2_bn_fast_kernel(
    xT_ref,                    # (2, b_pad)  f32   feature-major input
    w1a_ref, w1b_ref,          # (H1, 1)     f32   the two columns of fc1.weight
    w2_ref,                    # (H2, H1)    f32
    w3_ref,                    # (H3, H2)    f32
    w4c_ref,                   # (H3, 1)     f32   fc4.weight^T
    b4_ref,                    # (1, 1)      f32   fc4.bias (SMEM)
    g1_ref, be1_ref,           # (H1, 1)     f32   bn gamma / beta
    g2_ref, be2_ref,           # (H2, 1)
    g3_ref, be3_ref,           # (H3, 1)
    o_ref,                     # (1, b_pad)  f32   lane-dense output row
    *, batch,
):
    b_pad = xT_ref.shape[1]
    inv_n = 1.0 / batch

    if batch == b_pad:          # static: no padding -> no mask work at all
        mask = None
    else:
        col = jax.lax.broadcasted_iota(jnp.int32, (1, b_pad), 1)
        mask = (col < batch).astype(jnp.float32)

    def bn_relu(h, g_ref, be_ref):
        hm = h if mask is None else h * mask
        mean = jnp.sum(hm, axis=1, keepdims=True) * inv_n
        var = jnp.sum(hm * h, axis=1, keepdims=True) * inv_n - mean * mean
        var = jnp.maximum(var, 0.0)                      # guard E[x^2]-E[x]^2 cancel
        scale = g_ref[...] * jax.lax.rsqrt(var + BN_EPS)
        shift = be_ref[...] - mean * scale
        return jnp.maximum(h * scale + shift, 0.0)       # fused BN + ReLU

    xT = xT_ref[...]
    # fc1: K=2 contraction -> two VPU broadcast FMAs (b1 cancels in BN's h - mean).
    h1 = w1a_ref[...] * xT[0:1, :] + w1b_ref[...] * xT[1:2, :]          # (H1, b_pad)
    a1 = bn_relu(h1, g1_ref, be1_ref)
    h2 = jnp.dot(w2_ref[...], a1, preferred_element_type=jnp.float32)   # (H2, b_pad)
    a2 = bn_relu(h2, g2_ref, be2_ref)
    h3 = jnp.dot(w3_ref[...], a2, preferred_element_type=jnp.float32)   # (H3, b_pad)
    a3 = bn_relu(h3, g3_ref, be3_ref)
    # fc4 has N=1 -> VPU multiply + sublane reduction; lane-dense (1, b_pad) write.
    o_ref[...] = jnp.sum(a3 * w4c_ref[...], axis=0, keepdims=True) + b4_ref[0, 0]


def _forward_bn_fast(x, params, *, vmem_budget):
    batch = x.shape[0]
    b_pad = _round_up(batch, 128)
    # TODO(synk): wrapper-side transpose+pad (~16 B/row XLA op); cheap here because
    # the fast path only handles batches that fit in VMEM anyway.
    xT = jnp.pad(x.astype(jnp.float32).T, ((0, 0), (0, b_pad - batch)))
    args = _bn_args(xT, params)

    vmem = pl.BlockSpec(memory_space=pltpu.MemorySpace.VMEM)
    smem = pl.BlockSpec(memory_space=pltpu.MemorySpace.SMEM)
    in_specs = [vmem] * 6 + [smem] + [vmem] * 6

    vmem_limit = int(min(max(b_pad * _FAST_BYTES_PER_ROW + (4 << 20), 32 << 20),
                         vmem_budget))

    out_row = pl.pallas_call(
        functools.partial(co2_bn_fast_kernel, batch=batch),
        out_shape=jax.ShapeDtypeStruct((1, b_pad), jnp.float32),
        in_specs=in_specs,
        out_specs=vmem,
        compiler_params=pltpu.CompilerParams(vmem_limit_bytes=vmem_limit),
    )(*args)
    return out_row[:, :batch].T                           # (batch, 1)


# ---------------------------------------------------------------------------
# Tiled fallback: 4-phase grid with exact whole-batch statistics, resident I/O.
# ---------------------------------------------------------------------------
def co2_bn_tiled_kernel(
    xT_ref,                    # (2, b_pad)  f32   VMEM-resident input (const index)
    w1a_ref, w1b_ref,          # (H1, 1)
    w2_ref, w3_ref,            # (H2, H1), (H3, H2) f32
    w4c_ref,                   # (H3, 1)
    b4_ref,                    # (1, 1)      SMEM
    g1_ref, be1_ref, g2_ref, be2_ref, g3_ref, be3_ref,
    o_ref,                     # (1, b_pad)  VMEM-resident output, written in phase 3
    # scratch (persists across the whole grid)
    s1_ref, t1_ref,            # (H1, 1) sum/sumsq, re-used as fused BN scale/shift
    s2_ref, t2_ref,            # (H2, 1)
    s3_ref, t3_ref,            # (H3, 1)
    *, batch, tile_b,
):
    phase = pl.program_id(0)          # 0..3, phase-major sequential order
    tile = pl.program_id(1)
    n_tiles = pl.num_programs(1)
    inv_n = 1.0 / batch

    start = tile * tile_b
    start_al = pl.multiple_of(start, 128)
    is_last = tile == n_tiles - 1

    def accumulate(h, s_ref, t_ref):
        @pl.when(tile == 0)
        def _():
            s_ref[...] = jnp.zeros_like(s_ref)
            t_ref[...] = jnp.zeros_like(t_ref)

        # Full tiles accumulate unmasked; only the last tile masks the batch-padding
        # columns (saves the iota/compare + two (H, tile_b) VPU multiplies per step).
        @pl.when(tile < n_tiles - 1)
        def _():
            s_ref[...] += jnp.sum(h, axis=1, keepdims=True)
            t_ref[...] += jnp.sum(h * h, axis=1, keepdims=True)

        @pl.when(is_last)
        def _():
            col = start + jax.lax.broadcasted_iota(jnp.int32, (1, tile_b), 1)
            m = (col < batch).astype(jnp.float32)
            hm = h * m
            s_ref[...] += jnp.sum(hm, axis=1, keepdims=True)
            t_ref[...] += jnp.sum(hm * h, axis=1, keepdims=True)

    def finalize(s_ref, t_ref, g_ref, be_ref):
        # After the last tile of a stats phase: (sum, sumsq) -> fused (scale, shift).
        @pl.when(is_last)
        def _():
            mean = s_ref[...] * inv_n
            var = jnp.maximum(t_ref[...] * inv_n - mean * mean, 0.0)   # biased var
            scale = g_ref[...] * jax.lax.rsqrt(var + BN_EPS)
            s_ref[...] = scale
            t_ref[...] = be_ref[...] - mean * scale

    xT = xT_ref[:, pl.ds(start_al, tile_b)]
    # fc1: two VPU broadcast FMAs; b1 cancels in BatchNorm's (h - mean).
    h1 = w1a_ref[...] * xT[0:1, :] + w1b_ref[...] * xT[1:2, :]          # (H1, tile_b)

    # ---- phase 0: whole-batch stats of h1 -> fused BN1 scale/shift ----
    @pl.when(phase == 0)
    def _():
        accumulate(h1, s1_ref, t1_ref)
        finalize(s1_ref, t1_ref, g1_ref, be1_ref)

    # ---- phases 1..3: need BN1 + ReLU + fc2 ----
    @pl.when(phase >= 1)
    def _():
        a1 = jnp.maximum(h1 * s1_ref[...] + t1_ref[...], 0.0)
        h2 = jnp.dot(w2_ref[...], a1, preferred_element_type=jnp.float32)

        @pl.when(phase == 1)
        def _():
            accumulate(h2, s2_ref, t2_ref)
            finalize(s2_ref, t2_ref, g2_ref, be2_ref)

        # ---- phases 2..3: need BN2 + ReLU + fc3 ----
        @pl.when(phase >= 2)
        def _():
            a2 = jnp.maximum(h2 * s2_ref[...] + t2_ref[...], 0.0)
            h3 = jnp.dot(w3_ref[...], a2, preferred_element_type=jnp.float32)

            @pl.when(phase == 2)
            def _():
                accumulate(h3, s3_ref, t3_ref)
                finalize(s3_ref, t3_ref, g3_ref, be3_ref)

            # ---- phase 3: BN3 + ReLU + fc4, write into the resident output row ----
            @pl.when(phase == 3)
            def _():
                a3 = jnp.maximum(h3 * s3_ref[...] + t3_ref[...], 0.0)
                out = jnp.sum(a3 * w4c_ref[...], axis=0, keepdims=True)
                o_ref[:, pl.ds(start_al, tile_b)] = out + b4_ref[0, 0]


def _forward_bn_tiled(x, params, *, tile_b, vmem_budget):
    batch = x.shape[0]
    tile_b = _round_up(min(tile_b, _round_up(batch, 128)), 128)
    b_pad = _round_up(batch, tile_b)
    n_tiles = b_pad // tile_b

    # TODO(synk): wrapper-side transpose+pad; in-kernel relayout of a (B, 2) input
    # would save ~16 B/row of HBM traffic on this mem-bound path.
    xT = jnp.pad(x.astype(jnp.float32).T, ((0, 0), (0, b_pad - batch)))
    args = _bn_args(xT, params)

    def resident(a):                 # full-shape block, constant index -> stays in VMEM
        return pl.BlockSpec(a.shape, lambda p, i: (0, 0))

    in_specs = [resident(a) for a in args[:6]]
    in_specs += [pl.BlockSpec((1, 1), lambda p, i: (0, 0),
                              memory_space=pltpu.MemorySpace.SMEM)]      # scalar b4
    in_specs += [resident(a) for a in args[7:]]

    est = (_TILED_RESIDENT_BYTES_PER_ROW * b_pad
           + _TILED_BYTES_PER_TILE_ROW * tile_b + (1 << 20))
    vmem_limit = int(min(max(est + (8 << 20), 32 << 20), vmem_budget))
    # TODO(synk): batches whose resident rows exceed the budget (~>1M rows on v7x)
    # would need a streaming per-tile input/output variant.

    kernel = functools.partial(co2_bn_tiled_kernel, batch=batch, tile_b=tile_b)

    out_row = pl.pallas_call(
        kernel,
        out_shape=jax.ShapeDtypeStruct((1, b_pad), jnp.float32),
        grid=(4, n_tiles),                       # (phase, batch tile), phase-major
        in_specs=in_specs,
        out_specs=pl.BlockSpec((1, b_pad), lambda p, i: (0, 0)),   # resident output
        scratch_shapes=[
            pltpu.VMEM((H1, 1), jnp.float32), pltpu.VMEM((H1, 1), jnp.float32),
            pltpu.VMEM((H2, 1), jnp.float32), pltpu.VMEM((H2, 1), jnp.float32),
            pltpu.VMEM((H3, 1), jnp.float32), pltpu.VMEM((H3, 1), jnp.float32),
        ],
        compiler_params=pltpu.CompilerParams(
            # Both axes must be "arbitrary": BN statistics are carried in scratch
            # across tiles and phases (a "parallel" batch axis on v7x megacore would
            # silently turn whole-batch BN into per-core BN).
            # TODO(synk): v7x 2-TC split with partial-stat combine not implemented.
            dimension_semantics=("arbitrary", "arbitrary"),
            vmem_limit_bytes=vmem_limit,
        ),
    )(*args)

    return out_row[:, :batch].T                  # (batch, 1)


# ---------------------------------------------------------------------------
# batch == 1 path: the module skips BatchNorm -> keep the Linear biases, all f32.
# ---------------------------------------------------------------------------
def co2_nobn_kernel(xT_ref, w1a_ref, w1b_ref, b1_ref, w2_ref, b2_ref,
                    w3_ref, b3_ref, w4c_ref, b4_ref, o_ref):
    xT = xT_ref[...]
    h1 = jnp.maximum(
        w1a_ref[...] * xT[0:1, :] + w1b_ref[...] * xT[1:2, :] + b1_ref[...], 0.0)
    h2 = jnp.maximum(
        jnp.dot(w2_ref[...], h1, preferred_element_type=jnp.float32) + b2_ref[...], 0.0)
    h3 = jnp.maximum(
        jnp.dot(w3_ref[...], h2, preferred_element_type=jnp.float32) + b3_ref[...], 0.0)
    out = jnp.sum(h3 * w4c_ref[...], axis=0, keepdims=True)
    o_ref[...] = out + b4_ref[0, 0]


def _forward_nobn(x, params):
    batch = x.shape[0]                    # == 1
    tb = 128                              # pad the single row to a full lane tile
    xT = jnp.pad(x.astype(jnp.float32).T, ((0, 0), (0, tb - batch)))

    args = (
        xT,
        _col(params["w1"][:, 0]), _col(params["w1"][:, 1]), _col(params["b1"]),
        params["w2"].astype(jnp.float32), _col(params["b2"]),
        params["w3"].astype(jnp.float32), _col(params["b3"]),
        params["w4"].T.astype(jnp.float32),
        params["b4"].reshape(1, 1).astype(jnp.float32),
    )
    vmem = pl.BlockSpec(memory_space=pltpu.MemorySpace.VMEM)
    smem = pl.BlockSpec(memory_space=pltpu.MemorySpace.SMEM)
    out_row = pl.pallas_call(
        co2_nobn_kernel,
        out_shape=jax.ShapeDtypeStruct((1, tb), jnp.float32),
        in_specs=[vmem] * 9 + [smem],
        out_specs=vmem,
    )(*args)
    return out_row[:, :batch].T


# ---------------------------------------------------------------------------
# Dispatcher.
# ---------------------------------------------------------------------------
def co2_forward(x, params, *, tile_b=2048, force_tiled=False):
    """CO2Model forward. Mirrors the PyTorch module: BatchNorm (whole-batch
    statistics) only when batch > 1; Dropout is the identity (inference)."""
    batch = x.shape[0]
    if batch <= 1:
        return _forward_nobn(x, params)
    budget = _vmem_budget_bytes()
    b_pad = _round_up(batch, 128)
    fits_in_vmem = b_pad * _FAST_BYTES_PER_ROW + (4 << 20) <= budget
    if fits_in_vmem and not force_tiled:
        return _forward_bn_fast(x, params, vmem_budget=budget)
    return _forward_bn_tiled(x, params, tile_b=tile_b, vmem_budget=budget)


# ---------------------------------------------------------------------------
# Parameters (PyTorch layout / init) and pure-JAX f32 reference.
# ---------------------------------------------------------------------------
def init_params(key):
    def linear(key, fan_in, fan_out):
        kw, kb = jax.random.split(key)
        bound = 1.0 / jnp.sqrt(fan_in)
        w = jax.random.uniform(kw, (fan_out, fan_in), jnp.float32, -bound, bound)
        b = jax.random.uniform(kb, (fan_out,), jnp.float32, -bound, bound)
        return w, b

    k1, k2, k3, k4 = jax.random.split(key, 4)
    w1, b1 = linear(k1, INPUT_SIZE, H1)
    w2, b2 = linear(k2, H1, H2)
    w3, b3 = linear(k3, H2, H3)
    w4, b4 = linear(k4, H3, OUTPUT_SIZE)
    return {
        "w1": w1, "b1": b1, "w2": w2, "b2": b2,
        "w3": w3, "b3": b3, "w4": w4, "b4": b4,
        "g1": jnp.ones((H1,), jnp.float32), "be1": jnp.zeros((H1,), jnp.float32),
        "g2": jnp.ones((H2,), jnp.float32), "be2": jnp.zeros((H2,), jnp.float32),
        "g3": jnp.ones((H3,), jnp.float32), "be3": jnp.zeros((H3,), jnp.float32),
    }


def reference_forward(x, params):
    def bn(h, g, b):
        m = jnp.mean(h, axis=0, keepdims=True)
        v = jnp.mean((h - m) ** 2, axis=0, keepdims=True)   # biased variance
        return (h - m) * jax.lax.rsqrt(v + BN_EPS) * g + b

    apply_bn = x.shape[0] > 1
    h = x @ params["w1"].T + params["b1"]
    if apply_bn:
        h = bn(h, params["g1"], params["be1"])
    h = jnp.maximum(h, 0.0)
    h = h @ params["w2"].T + params["b2"]
    if apply_bn:
        h = bn(h, params["g2"], params["be2"])
    h = jnp.maximum(h, 0.0)
    h = h @ params["w3"].T + params["b3"]
    if apply_bn:
        h = bn(h, params["g3"], params["be3"])
    h = jnp.maximum(h, 0.0)
    return h @ params["w4"].T + params["b4"]


if __name__ == "__main__":
    key = jax.random.PRNGKey(0)
    k_x, k_p = jax.random.split(key)
    params = init_params(k_p)

    # (1) Fast path (whole batch resident in VMEM, single invocation): 1000 rows.
    x = jax.random.normal(k_x, (1000, INPUT_SIZE), jnp.float32)
    out = jax.block_until_ready(co2_forward(x, params))
    ref = reference_forward(x, params)
    assert out.shape == (1000, OUTPUT_SIZE)
    err = float(jnp.max(jnp.abs(out - ref)))
    assert jnp.allclose(out, ref, atol=2e-2, rtol=0.0), f"fast path mismatch: {err}"

    # (2) Tiled 4-phase path (forced): same 1000 rows as 4 tiles of 256 with a
    #     masked padded tail; exercises resident input/output + carried statistics.
    out_t = jax.block_until_ready(
        co2_forward(x, params, tile_b=256, force_tiled=True))
    err_t = float(jnp.max(jnp.abs(out_t - ref)))
    assert out_t.shape == (1000, OUTPUT_SIZE)
    assert jnp.allclose(out_t, ref, atol=2e-2, rtol=0.0), f"tiled path mismatch: {err_t}"

    # (3) Small batch (8 rows, heavily padded + masked) on the fast path.
    x8 = jax.random.normal(jax.random.PRNGKey(1), (8, INPUT_SIZE), jnp.float32)
    out8 = jax.block_until_ready(co2_forward(x8, params))
    ref8 = reference_forward(x8, params)
    assert out8.shape == (8, OUTPUT_SIZE)
    assert jnp.allclose(out8, ref8, atol=2e-2, rtol=0.0), "fast path (batch=8) mismatch"

    # (4) batch == 1: BatchNorm skipped, all-f32 kernel keeps the Linear biases.
    x1 = jax.random.normal(jax.random.PRNGKey(2), (1, INPUT_SIZE), jnp.float32)
    out1 = jax.block_until_ready(co2_forward(x1, params))
    ref1 = reference_forward(x1, params)
    assert out1.shape == (1, OUTPUT_SIZE)
    assert jnp.allclose(out1, ref1, atol=1e-5, rtol=1e-5), "no-BN path mismatch"

    print("KERNEL_OK")
</pallas_src>

<mosaic_0001>
module attributes {stable_mosaic.version = 11 : i64} {
  func.func @co2_bn_fast_kernel(%arg0: memref<2x1024xf32, #tpu.memory_space<vmem>>, %arg1: memref<128x1xf32, #tpu.memory_space<vmem>>, %arg2: memref<128x1xf32, #tpu.memory_space<vmem>>, %arg3: memref<64x128xf32, #tpu.memory_space<vmem>>, %arg4: memref<32x64xf32, #tpu.memory_space<vmem>>, %arg5: memref<32x1xf32, #tpu.memory_space<vmem>>, %arg6: memref<1x1xf32, #tpu.memory_space<smem>>, %arg7: memref<128x1xf32, #tpu.memory_space<vmem>>, %arg8: memref<128x1xf32, #tpu.memory_space<vmem>>, %arg9: memref<64x1xf32, #tpu.memory_space<vmem>>, %arg10: memref<64x1xf32, #tpu.memory_space<vmem>>, %arg11: memref<32x1xf32, #tpu.memory_space<vmem>>, %arg12: memref<32x1xf32, #tpu.memory_space<vmem>>, %arg13: memref<1x1024xf32, #tpu.memory_space<vmem>>) attributes {dimension_semantics = [], scalar_prefetch = 0 : i64, scratch_operands = 0 : i64, tpu.core_type = #tpu.core_type<tc>} {
    %0 = tpu.iota {dimensions = array<i32: 1>} : vector<1x1024xi32>
    %c1000_i32 = arith.constant 1000 : i32
    %1 = vector.broadcast %c1000_i32 : i32 to vector<1x1024xi32>
    %2 = arith.cmpi slt, %0, %1 : vector<1x1024xi32>
    %3 = arith.extui %2 : vector<1x1024xi1> to vector<1x1024xi32>
    %4 = arith.sitofp %3 : vector<1x1024xi32> to vector<1x1024xf32>
    %c0 = arith.constant 0 : index
    %c0_0 = arith.constant 0 : index
    %5 = vector.load %arg0[%c0, %c0_0] : memref<2x1024xf32, #tpu.memory_space<vmem>>, vector<2x1024xf32>
    %c0_1 = arith.constant 0 : index
    %c0_2 = arith.constant 0 : index
    %6 = vector.load %arg1[%c0_1, %c0_2] : memref<128x1xf32, #tpu.memory_space<vmem>>, vector<128x1xf32>
    %7 = vector.extract_strided_slice %5 {offsets = [0, 0], sizes = [1, 1024], strides = [1, 1]} : vector<2x1024xf32> to vector<1x1024xf32>
    %8 = vector.broadcast %6 : vector<128x1xf32> to vector<128x1024xf32>
    %9 = vector.broadcast %7 : vector<1x1024xf32> to vector<128x1024xf32>
    %10 = arith.mulf %8, %9 : vector<128x1024xf32>
    %c0_3 = arith.constant 0 : index
    %c0_4 = arith.constant 0 : index
    %11 = vector.load %arg2[%c0_3, %c0_4] : memref<128x1xf32, #tpu.memory_space<vmem>>, vector<128x1xf32>
    %12 = vector.extract_strided_slice %5 {offsets = [1, 0], sizes = [1, 1024], strides = [1, 1]} : vector<2x1024xf32> to vector<1x1024xf32>
    %13 = vector.broadcast %11 : vector<128x1xf32> to vector<128x1024xf32>
    %14 = vector.broadcast %12 : vector<1x1024xf32> to vector<128x1024xf32>
    %15 = arith.mulf %13, %14 : vector<128x1024xf32>
    %16 = arith.addf %10, %15 : vector<128x1024xf32>
    %17 = vector.broadcast %4 : vector<1x1024xf32> to vector<128x1024xf32>
    %18 = arith.mulf %16, %17 : vector<128x1024xf32>
    %cst = arith.constant dense<0.000000e+00> : vector<128xf32>
    %19 = vector.multi_reduction <add>, %18, %cst [1] : vector<128x1024xf32> to vector<128xf32>
    %20 = vector.shape_cast %19 : vector<128xf32> to vector<128x1xf32>
    %cst_5 = arith.constant 1.000000e-03 : f32
    %21 = vector.broadcast %cst_5 : f32 to vector<128x1xf32>
    %22 = arith.mulf %20, %21 : vector<128x1xf32>
    %23 = arith.mulf %18, %16 : vector<128x1024xf32>
    %cst_6 = arith.constant dense<0.000000e+00> : vector<128xf32>
    %24 = vector.multi_reduction <add>, %23, %cst_6 [1] : vector<128x1024xf32> to vector<128xf32>
    %25 = vector.shape_cast %24 : vector<128xf32> to vector<128x1xf32>
    %cst_7 = arith.constant 1.000000e-03 : f32
    %26 = vector.broadcast %cst_7 : f32 to vector<128x1xf32>
    %27 = arith.mulf %25, %26 : vector<128x1xf32>
    %28 = arith.mulf %22, %22 : vector<128x1xf32>
    %29 = arith.subf %27, %28 : vector<128x1xf32>
    %cst_8 = arith.constant 0.000000e+00 : f32
    %30 = vector.broadcast %cst_8 : f32 to vector<128x1xf32>
    %31 = arith.maximumf %29, %30 : vector<128x1xf32>
    %c0_9 = arith.constant 0 : index
    %c0_10 = arith.constant 0 : index
    %32 = vector.load %arg7[%c0_9, %c0_10] : memref<128x1xf32, #tpu.memory_space<vmem>>, vector<128x1xf32>
    %cst_11 = arith.constant 9.99999974E-6 : f32
    %33 = vector.broadcast %cst_11 : f32 to vector<128x1xf32>
    %34 = arith.addf %31, %33 : vector<128x1xf32>
    %35 = math.rsqrt %34 : vector<128x1xf32>
    %36 = arith.mulf %32, %35 : vector<128x1xf32>
    %c0_12 = arith.constant 0 : index
    %c0_13 = arith.constant 0 : index
    %37 = vector.load %arg8[%c0_12, %c0_13] : memref<128x1xf32, #tpu.memory_space<vmem>>, vector<128x1xf32>
    %38 = arith.mulf %22, %36 : vector<128x1xf32>
    %39 = arith.subf %37, %38 : vector<128x1xf32>
    %40 = vector.broadcast %36 : vector<128x1xf32> to vector<128x1024xf32>
    %41 = arith.mulf %16, %40 : vector<128x1024xf32>
    %42 = vector.broadcast %39 : vector<128x1xf32> to vector<128x1024xf32>
    %43 = arith.addf %41, %42 : vector<128x1024xf32>
    %cst_14 = arith.constant 0.000000e+00 : f32
    %44 = vector.broadcast %cst_14 : f32 to vector<128x1024xf32>
    %45 = arith.maximumf %43, %44 : vector<128x1024xf32>
    %c0_15 = arith.constant 0 : index
    %c0_16 = arith.constant 0 : index
    %46 = vector.load %arg3[%c0_15, %c0_16] : memref<64x128xf32, #tpu.memory_space<vmem>>, vector<64x128xf32>
    %cst_17 = arith.constant dense<0.000000e+00> : vector<64x1024xf32>
    %47 = tpu.matmul %46, %45, %cst_17 {dimension_numbers = #tpu.dot_dimension_numbers<[1], [0], [0], [1], [0, 0, 1, 1], [], []>} : vector<64x128xf32>, vector<128x1024xf32>, vector<64x1024xf32> -> vector<64x1024xf32>
    %48 = vector.broadcast %4 : vector<1x1024xf32> to vector<64x1024xf32>
    %49 = arith.mulf %47, %48 : vector<64x1024xf32>
    %cst_18 = arith.constant dense<0.000000e+00> : vector<64xf32>
    %50 = vector.multi_reduction <add>, %49, %cst_18 [1] : vector<64x1024xf32> to vector<64xf32>
    %51 = vector.shape_cast %50 : vector<64xf32> to vector<64x1xf32>
    %cst_19 = arith.constant 1.000000e-03 : f32
    %52 = vector.broadcast %cst_19 : f32 to vector<64x1xf32>
    %53 = arith.mulf %51, %52 : vector<64x1xf32>
    %54 = arith.mulf %49, %47 : vector<64x1024xf32>
    %cst_20 = arith.constant dense<0.000000e+00> : vector<64xf32>
    %55 = vector.multi_reduction <add>, %54, %cst_20 [1] : vector<64x1024xf32> to vector<64xf32>
    %56 = vector.shape_cast %55 : vector<64xf32> to vector<64x1xf32>
    %cst_21 = arith.constant 1.000000e-03 : f32
    %57 = vector.broadcast %cst_21 : f32 to vector<64x1xf32>
    %58 = arith.mulf %56, %57 : vector<64x1xf32>
    %59 = arith.mulf %53, %53 : vector<64x1xf32>
    %60 = arith.subf %58, %59 : vector<64x1xf32>
    %cst_22 = arith.constant 0.000000e+00 : f32
    %61 = vector.broadcast %cst_22 : f32 to vector<64x1xf32>
    %62 = arith.maximumf %60, %61 : vector<64x1xf32>
    %c0_23 = arith.constant 0 : index
    %c0_24 = arith.constant 0 : index
    %63 = vector.load %arg9[%c0_23, %c0_24] : memref<64x1xf32, #tpu.memory_space<vmem>>, vector<64x1xf32>
    %cst_25 = arith.constant 9.99999974E-6 : f32
    %64 = vector.broadcast %cst_25 : f32 to vector<64x1xf32>
    %65 = arith.addf %62, %64 : vector<64x1xf32>
    %66 = math.rsqrt %65 : vector<64x1xf32>
    %67 = arith.mulf %63, %66 : vector<64x1xf32>
    %c0_26 = arith.constant 0 : index
    %c0_27 = arith.constant 0 : index
    %68 = vector.load %arg10[%c0_26, %c0_27] : memref<64x1xf32, #tpu.memory_space<vmem>>, vector<64x1xf32>
    %69 = arith.mulf %53, %67 : vector<64x1xf32>
    %70 = arith.subf %68, %69 : vector<64x1xf32>
    %71 = vector.broadcast %67 : vector<64x1xf32> to vector<64x1024xf32>
    %72 = arith.mulf %47, %71 : vector<64x1024xf32>
    %73 = vector.broadcast %70 : vector<64x1xf32> to vector<64x1024xf32>
    %74 = arith.addf %72, %73 : vector<64x1024xf32>
    %cst_28 = arith.constant 0.000000e+00 : f32
    %75 = vector.broadcast %cst_28 : f32 to vector<64x1024xf32>
    %76 = arith.maximumf %74, %75 : vector<64x1024xf32>
    %c0_29 = arith.constant 0 : index
    %c0_30 = arith.constant 0 : index
    %77 = vector.load %arg4[%c0_29, %c0_30] : memref<32x64xf32, #tpu.memory_space<vmem>>, vector<32x64xf32>
    %cst_31 = arith.constant dense<0.000000e+00> : vector<32x1024xf32>
    %78 = tpu.matmul %77, %76, %cst_31 {dimension_numbers = #tpu.dot_dimension_numbers<[1], [0], [0], [1], [0, 0, 1, 1], [], []>} : vector<32x64xf32>, vector<64x1024xf32>, vector<32x1024xf32> -> vector<32x1024xf32>
    %79 = vector.broadcast %4 : vector<1x1024xf32> to vector<32x1024xf32>
    %80 = arith.mulf %78, %79 : vector<32x1024xf32>
    %cst_32 = arith.constant dense<0.000000e+00> : vector<32xf32>
    %81 = vector.multi_reduction <add>, %80, %cst_32 [1] : vector<32x1024xf32> to vector<32xf32>
    %82 = vector.shape_cast %81 : vector<32xf32> to vector<32x1xf32>
    %cst_33 = arith.constant 1.000000e-03 : f32
    %83 = vector.broadcast %cst_33 : f32 to vector<32x1xf32>
    %84 = arith.mulf %82, %83 : vector<32x1xf32>
    %85 = arith.mulf %80, %78 : vector<32x1024xf32>
    %cst_34 = arith.constant dense<0.000000e+00> : vector<32xf32>
    %86 = vector.multi_reduction <add>, %85, %cst_34 [1] : vector<32x1024xf32> to vector<32xf32>
    %87 = vector.shape_cast %86 : vector<32xf32> to vector<32x1xf32>
    %cst_35 = arith.constant 1.000000e-03 : f32
    %88 = vector.broadcast %cst_35 : f32 to vector<32x1xf32>
    %89 = arith.mulf %87, %88 : vector<32x1xf32>
    %90 = arith.mulf %84, %84 : vector<32x1xf32>
    %91 = arith.subf %89, %90 : vector<32x1xf32>
    %cst_36 = arith.constant 0.000000e+00 : f32
    %92 = vector.broadcast %cst_36 : f32 to vector<32x1xf32>
    %93 = arith.maximumf %91, %92 : vector<32x1xf32>
    %c0_37 = arith.constant 0 : index
    %c0_38 = arith.constant 0 : index
    %94 = vector.load %arg11[%c0_37, %c0_38] : memref<32x1xf32, #tpu.memory_space<vmem>>, vector<32x1xf32>
    %cst_39 = arith.constant 9.99999974E-6 : f32
    %95 = vector.broadcast %cst_39 : f32 to vector<32x1xf32>
    %96 = arith.addf %93, %95 : vector<32x1xf32>
    %97 = math.rsqrt %96 : vector<32x1xf32>
    %98 = arith.mulf %94, %97 : vector<32x1xf32>
    %c0_40 = arith.constant 0 : index
    %c0_41 = arith.constant 0 : index
    %99 = vector.load %arg12[%c0_40, %c0_41] : memref<32x1xf32, #tpu.memory_space<vmem>>, vector<32x1xf32>
    %100 = arith.mulf %84, %98 : vector<32x1xf32>
    %101 = arith.subf %99, %100 : vector<32x1xf32>
    %102 = vector.broadcast %98 : vector<32x1xf32> to vector<32x1024xf32>
    %103 = arith.mulf %78, %102 : vector<32x1024xf32>
    %104 = vector.broadcast %101 : vector<32x1xf32> to vector<32x1024xf32>
    %105 = arith.addf %103, %104 : vector<32x1024xf32>
    %cst_42 = arith.constant 0.000000e+00 : f32
    %106 = vector.broadcast %cst_42 : f32 to vector<32x1024xf32>
    %107 = arith.maximumf %105, %106 : vector<32x1024xf32>
    %c0_43 = arith.constant 0 : index
    %c0_44 = arith.constant 0 : index
    %108 = vector.load %arg5[%c0_43, %c0_44] : memref<32x1xf32, #tpu.memory_space<vmem>>, vector<32x1xf32>
    %109 = vector.broadcast %108 : vector<32x1xf32> to vector<32x1024xf32>
    %110 = arith.mulf %107, %109 : vector<32x1024xf32>
    %cst_45 = arith.constant dense<0.000000e+00> : vector<1024xf32>
    %111 = vector.multi_reduction <add>, %110, %cst_45 [0] : vector<32x1024xf32> to vector<1024xf32>
    %112 = vector.shape_cast %111 : vector<1024xf32> to vector<1x1024xf32>
    %c0_46 = arith.constant 0 : index
    %c0_47 = arith.constant 0 : index
    %113 = memref.load %arg6[%c0_46, %c0_47] : memref<1x1xf32, #tpu.memory_space<smem>>
    %114 = vector.broadcast %113 : f32 to vector<1x1024xf32>
    %115 = arith.addf %112, %114 : vector<1x1024xf32>
    %c0_48 = arith.constant 0 : index
    %c0_49 = arith.constant 0 : index
    %116 = vector.load %arg13[%c0_48, %c0_49] : memref<1x1024xf32, #tpu.memory_space<vmem>>, vector<1x1024xf32>
    tpu.vector_store %arg13[%c0_48, %c0_49], %115 {strides = array<i32>} : memref<1x1024xf32, #tpu.memory_space<vmem>>, vector<1x1024xf32>,
    return
  }
}

</mosaic_0001>

<llo_original>
// kernel: tpu_custom_call.1
$region0: #{tpu_custom_call.1}
  #allocation0 [shape = 'u32[]', space=smem, size = 0x4, offset = 0x4, fixed_abs, tag = 'smem constant byte address 0x4 - core index']
  #allocation1 [shape = 'u32[144,128]{1,0:T(1,128)}', space=vmem, size = 0x12000, scoped, tag = 'internal scratch']
  #allocation2 [shape = 'f32[1,1]{1,0:T(1,128)S(6)}', space=smem, size = 0x200, scoped, tag = 'scoped memory for tpu_custom_call.1']
  %s0 = inlined_call_operand.vmem [shape: f32[2,1024], index: 0, kind: input, shape index: {}]
  %s1 = inlined_call_operand.vmem [shape: f32[128,1], index: 1, kind: input, shape index: {}]
  %s2 = inlined_call_operand.vmem [shape: f32[128,1], index: 2, kind: input, shape index: {}]
  %s3 = inlined_call_operand.vmem [shape: f32[64,128], index: 3, kind: input, shape index: {}]
  %s4 = inlined_call_operand.vmem [shape: f32[32,64], index: 4, kind: input, shape index: {}]
  %s5 = inlined_call_operand.vmem [shape: f32[32,1], index: 5, kind: input, shape index: {}]
  %s6 = inlined_call_operand.<no memory space> [shape: f32[1,1], index: 6, kind: input, shape index: {}]
  %s7 = inlined_call_operand.vmem [shape: f32[128,1], index: 7, kind: input, shape index: {}]
  %s8 = inlined_call_operand.vmem [shape: f32[128,1], index: 8, kind: input, shape index: {}]
  %s9 = inlined_call_operand.vmem [shape: f32[64,1], index: 9, kind: input, shape index: {}]
  %s10 = inlined_call_operand.vmem [shape: f32[64,1], index: 10, kind: input, shape index: {}]
  %s11 = inlined_call_operand.vmem [shape: f32[32,1], index: 11, kind: input, shape index: {}]
  %s12 = inlined_call_operand.vmem [shape: f32[32,1], index: 12, kind: input, shape index: {}]
  %s13 = inlined_call_operand.hbm [shape: f32[1,1024], index: 13, kind: output, shape index: {}]
  %s14 = sld [smem:[#allocation0]]
  $region62: #{tpu_custom_call.1} parent=0
    _
  %s16 = ssub.s32 1, %s14
  %s17 = scalar_select 0, %s16, %s14
  %18 = sst [smem:[#allocation2]] %s6
  $region1: #{tpu_custom_call.1} parent=0
    #allocation3 [shape = 'u8[4096]{0}', space=vmem, size = 0x1000, scoped, tag = 'output window, operand 0, single buffered']
    #allocation4 [shape = 's32[1]{0}', space=sflag, size = 0x4, scoped, tag = 'scoped memory for tpu_custom_call.1']
    %19 = vsyncpa [#allocation4], 0
    // Predicated region
    $region2: #{tpu_custom_call.1} parent=1 // pred_check
      _
    $region3: #{tpu_custom_call.1} parent=1 // pred_check_branch
      %21 = sbr.rel (0) target = $region5
    $region4: #{tpu_custom_call.1} parent=1 // pred_region
      _
    $region5: #{tpu_custom_call.1} parent=1 // pred_fallthru
      _
    // Predicated region
    $region6: #{tpu_custom_call.1} parent=1 // pred_check
      _
    $region7: #{tpu_custom_call.1} parent=1 // pred_check_branch
      %23 = sbr.rel (0) target = $region9
    $region8: #{tpu_custom_call.1} parent=1 // pred_region
      _
    $region9: #{tpu_custom_call.1} parent=1 // pred_fallthru
      _
    // Predicated region
    $region10: #{tpu_custom_call.1} parent=1 // pred_check
      _
    $region11: #{tpu_custom_call.1} parent=1 // pred_check_branch
      %25 = sbr.rel (0) target = $region13
    $region12: #{tpu_custom_call.1} parent=1 // pred_region
      _
    $region13: #{tpu_custom_call.1} parent=1 // pred_fallthru
      _
    // Predicated region
    $region14: #{tpu_custom_call.1} parent=1 // pred_check
      _
    $region15: #{tpu_custom_call.1} parent=1 // pred_check_branch
      %27 = sbr.rel (0) target = $region17
    $region16: #{tpu_custom_call.1} parent=1 // pred_region
      _
    $region17: #{tpu_custom_call.1} parent=1 // pred_fallthru
      _
    // Predicated region
    $region18: #{tpu_custom_call.1} parent=1 // pred_check
      _
    $region19: #{tpu_custom_call.1} parent=1 // pred_check_branch
      %29 = sbr.rel (0) target = $region21
    $region20: #{tpu_custom_call.1} parent=1 // pred_region
      _
    $region21: #{tpu_custom_call.1} parent=1 // pred_fallthru
      _
    // Predicated region
    $region22: #{tpu_custom_call.1} parent=1 // pred_check
      _
    $region23: #{tpu_custom_call.1} parent=1 // pred_check_branch
      %31 = sbr.rel (0) target = $region25
    $region24: #{tpu_custom_call.1} parent=1 // pred_region
      _
    $region25: #{tpu_custom_call.1} parent=1 // pred_fallthru
      _
    // Predicated region
    $region26: #{tpu_custom_call.1} parent=1 // pred_check
      _
    $region27: #{tpu_custom_call.1} parent=1 // pred_check_branch
      %33 = sbr.rel (0) target = $region29
    $region28: #{tpu_custom_call.1} parent=1 // pred_region
      _
    $region29: #{tpu_custom_call.1} parent=1 // pred_fallthru
      _
    // Predicated region
    $region30: #{tpu_custom_call.1} parent=1 // pred_check
      _
    $region31: #{tpu_custom_call.1} parent=1 // pred_check_branch
      %35 = sbr.rel (0) target = $region33
    $region32: #{tpu_custom_call.1} parent=1 // pred_region
      _
    $region33: #{tpu_custom_call.1} parent=1 // pred_fallthru
      _
    // Predicated region
    $region34: #{tpu_custom_call.1} parent=1 // pred_check
      _
    $region35: #{tpu_custom_call.1} parent=1 // pred_check_branch
      %37 = sbr.rel (0) target = $region37
    $region36: #{tpu_custom_call.1} parent=1 // pred_region
      _
    $region37: #{tpu_custom_call.1} parent=1 // pred_fallthru
      _
    // Predicated region
    $region38: #{tpu_custom_call.1} parent=1 // pred_check
      _
    $region39: #{tpu_custom_call.1} parent=1 // pred_check_branch
      %39 = sbr.rel (0) target = $region41
    $region40: #{tpu_custom_call.1} parent=1 // pred_region
      _
    $region41: #{tpu_custom_call.1} parent=1 // pred_fallthru
      _
    // Predicated region
    $region42: #{tpu_custom_call.1} parent=1 // pred_check
      _
    $region43: #{tpu_custom_call.1} parent=1 // pred_check_branch
      %41 = sbr.rel (0) target = $region45
    $region44: #{tpu_custom_call.1} parent=1 // pred_region
      _
    $region45: #{tpu_custom_call.1} parent=1 // pred_fallthru
      _
    // Predicated region
    $region46: #{tpu_custom_call.1} parent=1 // pred_check
      _
    $region47: #{tpu_custom_call.1} parent=1 // pred_check_branch
      %43 = sbr.rel (0) target = $region49
    $region48: #{tpu_custom_call.1} parent=1 // pred_region
      _
    $region49: #{tpu_custom_call.1} parent=1 // pred_fallthru
      _
    // Predicated region
    $region50: #{tpu_custom_call.1} parent=1 // pred_check
      _
    $region51: #{tpu_custom_call.1} parent=1 // pred_check_branch
      %45 = sbr.rel (0) target = $region53
    $region52: #{tpu_custom_call.1} parent=1 // pred_region
      _
    $region53: #{tpu_custom_call.1} parent=1 // pred_fallthru
      _
    %v46 = vlaneseq
    %v47 = vand.u32 %v46, 127
    %v48 = vadd.s32 %v47, 128
    %v49 = vadd.s32 %v47, 256
    %v50 = vadd.s32 %v47, 384
    %v51 = vadd.s32 %v47, 512
    %v52 = vadd.s32 %v47, 640
    %v53 = vadd.s32 %v47, 768
    %v54 = vadd.s32 %v47, 896
    %vm55 = vcmp.lt.s32.totalorder %v47, 1000
    %vm56 = vcmp.lt.s32.totalorder %v48, 1000
    %vm57 = vcmp.lt.s32.totalorder %v49, 1000
    %vm58 = vcmp.lt.s32.totalorder %v50, 1000
    %vm59 = vcmp.lt.s32.totalorder %v51, 1000
    %vm60 = vcmp.lt.s32.totalorder %v52, 1000
    %vm61 = vcmp.lt.s32.totalorder %v53, 1000
    %vm62 = vcmp.lt.s32.totalorder %v54, 1000
    %v63 = vsel %vm55, 1, 0
    %v64 = vsel %vm56, 1, 0
    %v65 = vsel %vm57, 1, 0
    %v66 = vsel %vm58, 1, 0
    %v67 = vsel %vm59, 1, 0
    %v68 = vsel %vm60, 1, 0
    %v69 = vsel %vm61, 1, 0
    %v70 = vsel %vm62, 1, 0
    %v71 = vcvt.s32.f32 %v63
    %v72 = vcvt.s32.f32 %v64
    %v73 = vcvt.s32.f32 %v65
    %v74 = vcvt.s32.f32 %v66
    %v75 = vcvt.s32.f32 %v67
    %v76 = vcvt.s32.f32 %v68
    %v77 = vcvt.s32.f32 %v69
    %v78 = vcvt.s32.f32 %v70
    %v79 = vld [vmem:[%s0] sm:$0xff]
    %v80 = vld [vmem:[%s0 + $0x8] sm:$0xff]
    %v81 = vld [vmem:[%s1] sm:$0xff]
    %v82 = vld [vmem:[%s1 + $0x8] sm:$0xff]
    %v83 = vld [vmem:[%s1 + $0x10] sm:$0xff]
    %v84 = vld [vmem:[%s1 + $0x18] sm:$0xff]
    %v85 = vld [vmem:[%s1 + $0x20] sm:$0xff]
    %v86 = vld [vmem:[%s1 + $0x28] sm:$0xff]
    %v87 = vld [vmem:[%s1 + $0x30] sm:$0xff]
    %v88 = vld [vmem:[%s1 + $0x38] sm:$0xff]
    %v89 = vld [vmem:[%s1 + $0x40] sm:$0xff]
    %v90 = vld [vmem:[%s1 + $0x48] sm:$0xff]
    %v91 = vld [vmem:[%s1 + $0x50] sm:$0xff]
    %v92 = vld [vmem:[%s1 + $0x58] sm:$0xff]
    %v93 = vld [vmem:[%s1 + $0x60] sm:$0xff]
    %v94 = vld [vmem:[%s1 + $0x68] sm:$0xff]
    %v95 = vld [vmem:[%s1 + $0x70] sm:$0xff]
    %v96 = vld [vmem:[%s1 + $0x78] sm:$0xff]
    %98 = vset.pattern.permute.xlu0 0
    %99 = vperm.xlu0 %98, %v81
    %v100 = vpop.permute.xlu0 %99
    %103 = vset.pattern.permute.xlu0 0
    %104 = vperm.xlu0 %103, %v82
    %v105 = vpop.permute.xlu0 %104
    %108 = vset.pattern.permute.xlu0 0
    %109 = vperm.xlu0 %108, %v83
    %v110 = vpop.permute.xlu0 %109
    %113 = vset.pattern.permute.xlu0 0
    %114 = vperm.xlu0 %113, %v84
    %v115 = vpop.permute.xlu0 %114
    %118 = vset.pattern.permute.xlu0 0
    %119 = vperm.xlu0 %118, %v85
    %v120 = vpop.permute.xlu0 %119
    %123 = vset.pattern.permute.xlu0 0
    %124 = vperm.xlu0 %123, %v86
    %v125 = vpop.permute.xlu0 %124
    %128 = vset.pattern.permute.xlu0 0
    %129 = vperm.xlu0 %128, %v87
    %v130 = vpop.permute.xlu0 %129
    %133 = vset.pattern.permute.xlu0 0
    %134 = vperm.xlu0 %133, %v88
    %v135 = vpop.permute.xlu0 %134
    %138 = vset.pattern.permute.xlu0 0
    %139 = vperm.xlu0 %138, %v89
    %v140 = vpop.permute.xlu0 %139
    %143 = vset.pattern.permute.xlu0 0
    %144 = vperm.xlu0 %143, %v90
    %v145 = vpop.permute.xlu0 %144
    %148 = vset.pattern.permute.xlu0 0
    %149 = vperm.xlu0 %148, %v91
    %v150 = vpop.permute.xlu0 %149
    %153 = vset.pattern.permute.xlu0 0
    %154 = vperm.xlu0 %153, %v92
    %v155 = vpop.permute.xlu0 %154
    %158 = vset.pattern.permute.xlu0 0
    %159 = vperm.xlu0 %158, %v93
    %v160 = vpop.permute.xlu0 %159
    %163 = vset.pattern.permute.xlu0 0
    %164 = vperm.xlu0 %163, %v94
    %v165 = vpop.permute.xlu0 %164
    %168 = vset.pattern.permute.xlu0 0
    %169 = vperm.xlu0 %168, %v95
    %v170 = vpop.permute.xlu0 %169
    %173 = vset.pattern.permute.xlu0 0
    %174 = vperm.xlu0 %173, %v96
    %v175 = vpop.permute.xlu0 %174
    %v179 = vlaneseq
    %v180 = vshrl.u32 %v179, 7
    %v181 = vsub.s32 0, %v180
    %v182 = vrot.slane %v79, %v181
    %v183 = vlaneseq
    %v184 = vshrl.u32 %v183, 7
    %v185 = vsub.s32 2, %v184
    %v186 = vrot.slane %v79, %v185
    %v187 = vlaneseq
    %v188 = vshrl.u32 %v187, 7
    %v189 = vsub.s32 4, %v188
    %v190 = vrot.slane %v79, %v189
    %v191 = vlaneseq
    %v192 = vshrl.u32 %v191, 7
    %v193 = vsub.s32 6, %v192
    %v194 = vrot.slane %v79, %v193
    %v195 = vlaneseq
    %v196 = vshrl.u32 %v195, 7
    %v197 = vsub.s32 0, %v196
    %v198 = vrot.slane %v80, %v197
    %v199 = vlaneseq
    %v200 = vshrl.u32 %v199, 7
    %v201 = vsub.s32 2, %v200
    %v202 = vrot.slane %v80, %v201
    %v203 = vlaneseq
    %v204 = vshrl.u32 %v203, 7
    %v205 = vsub.s32 4, %v204
    %v206 = vrot.slane %v80, %v205
    %v207 = vlaneseq
    %v208 = vshrl.u32 %v207, 7
    %v209 = vsub.s32 6, %v208
    %v210 = vrot.slane %v80, %v209
    %v219 = vlaneseq
    %v220 = vshrl.u32 %v219, 7
    %v221 = vsub.s32 0, %v220
    %v222 = vrot.slane %v182, %v221
    %v223 = vlaneseq
    %v224 = vshrl.u32 %v223, 7
    %v225 = vsub.s32 0, %v224
    %v226 = vrot.slane %v186, %v225
    %v227 = vlaneseq
    %v228 = vshrl.u32 %v227, 7
    %v229 = vsub.s32 0, %v228
    %v230 = vrot.slane %v190, %v229
    %v231 = vlaneseq
    %v232 = vshrl.u32 %v231, 7
    %v233 = vsub.s32 0, %v232
    %v234 = vrot.slane %v194, %v233
    %v235 = vlaneseq
    %v236 = vshrl.u32 %v235, 7
    %v237 = vsub.s32 0, %v236
    %v238 = vrot.slane %v198, %v237
    %v239 = vlaneseq
    %v240 = vshrl.u32 %v239, 7
    %v241 = vsub.s32 0, %v240
    %v242 = vrot.slane %v202, %v241
    %v243 = vlaneseq
    %v244 = vshrl.u32 %v243, 7
    %v245 = vsub.s32 0, %v244
    %v246 = vrot.slane %v206, %v245
    %v247 = vlaneseq
    %v248 = vshrl.u32 %v247, 7
    %v249 = vsub.s32 0, %v248
    %v250 = vrot.slane %v210, %v249
    %v251 = vmul.f32 %v100, %v222
    %v252 = vmul.f32 %v100, %v226
    %v253 = vmul.f32 %v100, %v230
    %v254 = vmul.f32 %v100, %v234
    %v255 = vmul.f32 %v100, %v238
    %v256 = vmul.f32 %v100, %v242
    %v257 = vmul.f32 %v100, %v246
    %v258 = vmul.f32 %v100, %v250
    %v259 = vmul.f32 %v105, %v222
    %v260 = vmul.f32 %v105, %v226
    %v261 = vmul.f32 %v105, %v230
    %v262 = vmul.f32 %v105, %v234
    %v263 = vmul.f32 %v105, %v238
    %v264 = vmul.f32 %v105, %v242
    %v265 = vmul.f32 %v105, %v246
    %v266 = vmul.f32 %v105, %v250
    %v267 = vmul.f32 %v110, %v222
    %v268 = vmul.f32 %v110, %v226
    %v269 = vmul.f32 %v110, %v230
    %v270 = vmul.f32 %v110, %v234
    %v271 = vmul.f32 %v110, %v238
    %v272 = vmul.f32 %v110, %v242
    %v273 = vmul.f32 %v110, %v246
    %v274 = vmul.f32 %v110, %v250
    %v275 = vmul.f32 %v115, %v222
    %v276 = vmul.f32 %v115, %v226
    %v277 = vmul.f32 %v115, %v230
    %v278 = vmul.f32 %v115, %v234
    %v279 = vmul.f32 %v115, %v238
    %v280 = vmul.f32 %v115, %v242
    %v281 = vmul.f32 %v115, %v246
    %v282 = vmul.f32 %v115, %v250
    %v283 = vmul.f32 %v120, %v222
    %v284 = vmul.f32 %v120, %v226
    %v285 = vmul.f32 %v120, %v230
    %v286 = vmul.f32 %v120, %v234
    %v287 = vmul.f32 %v120, %v238
    %v288 = vmul.f32 %v120, %v242
    %v289 = vmul.f32 %v120, %v246
    %v290 = vmul.f32 %v120, %v250
    %v291 = vmul.f32 %v125, %v222
    %v292 = vmul.f32 %v125, %v226
    %v293 = vmul.f32 %v125, %v230
    %v294 = vmul.f32 %v125, %v234
    %v295 = vmul.f32 %v125, %v238
    %v296 = vmul.f32 %v125, %v242
    %v297 = vmul.f32 %v125, %v246
    %v298 = vmul.f32 %v125, %v250
    %v299 = vmul.f32 %v130, %v222
    %v300 = vmul.f32 %v130, %v226
    %v301 = vmul.f32 %v130, %v230
    %v302 = vmul.f32 %v130, %v234
    %v303 = vmul.f32 %v130, %v238
    %v304 = vmul.f32 %v130, %v242
    %v305 = vmul.f32 %v130, %v246
    %v306 = vmul.f32 %v130, %v250
    %v307 = vmul.f32 %v135, %v222
    %v308 = vmul.f32 %v135, %v226
    %v309 = vmul.f32 %v135, %v230
    %v310 = vmul.f32 %v135, %v234
    %v311 = vmul.f32 %v135, %v238
    %v312 = vmul.f32 %v135, %v242
    %v313 = vmul.f32 %v135, %v246
    %v314 = vmul.f32 %v135, %v250
    %v315 = vmul.f32 %v140, %v222
    %v316 = vmul.f32 %v140, %v226
    %v317 = vmul.f32 %v140, %v230
    %v318 = vmul.f32 %v140, %v234
    %v319 = vmul.f32 %v140, %v238
    %v320 = vmul.f32 %v140, %v242
    %v321 = vmul.f32 %v140, %v246
    %v322 = vmul.f32 %v140, %v250
    %v323 = vmul.f32 %v145, %v222
    %v324 = vmul.f32 %v145, %v226
    %v325 = vmul.f32 %v145, %v230
    %v326 = vmul.f32 %v145, %v234
    %v327 = vmul.f32 %v145, %v238
    %v328 = vmul.f32 %v145, %v242
    %v329 = vmul.f32 %v145, %v246
    %v330 = vmul.f32 %v145, %v250
    %v331 = vmul.f32 %v150, %v222
    %v332 = vmul.f32 %v150, %v226
    %v333 = vmul.f32 %v150, %v230
    %v334 = vmul.f32 %v150, %v234
    %v335 = vmul.f32 %v150, %v238
    %v336 = vmul.f32 %v150, %v242
    %v337 = vmul.f32 %v150, %v246
    %v338 = vmul.f32 %v150, %v250
    %v339 = vmul.f32 %v155, %v222
    %v340 = vmul.f32 %v155, %v226
    %v341 = vmul.f32 %v155, %v230
    %v342 = vmul.f32 %v155, %v234
    %v343 = vmul.f32 %v155, %v238
    %v344 = vmul.f32 %v155, %v242
    %v345 = vmul.f32 %v155, %v246
    %v346 = vmul.f32 %v155, %v250
    %v347 = vmul.f32 %v160, %v222
    %v348 = vmul.f32 %v160, %v226
    %v349 = vmul.f32 %v160, %v230
    %v350 = vmul.f32 %v160, %v234
    %v351 = vmul.f32 %v160, %v238
    %v352 = vmul.f32 %v160, %v242
    %v353 = vmul.f32 %v160, %v246
    %v354 = vmul.f32 %v160, %v250
    %v355 = vmul.f32 %v165, %v222
    %v356 = vmul.f32 %v165, %v226
    %v357 = vmul.f32 %v165, %v230
    %v358 = vmul.f32 %v165, %v234
    %v359 = vmul.f32 %v165, %v238
    %v360 = vmul.f32 %v165, %v242
    %v361 = vmul.f32 %v165, %v246
    %v362 = vmul.f32 %v165, %v250
    %v363 = vmul.f32 %v170, %v222
    %v364 = vmul.f32 %v170, %v226
    %v365 = vmul.f32 %v170, %v230
    %v366 = vmul.f32 %v170, %v234
    %v367 = vmul.f32 %v170, %v238
    %v368 = vmul.f32 %v170, %v242
    %v369 = vmul.f32 %v170, %v246
    %v370 = vmul.f32 %v170, %v250
    %v371 = vmul.f32 %v175, %v222
    %v372 = vmul.f32 %v175, %v226
    %v373 = vmul.f32 %v175, %v230
    %v374 = vmul.f32 %v175, %v234
    %v375 = vmul.f32 %v175, %v238
    %v376 = vmul.f32 %v175, %v242
    %v377 = vmul.f32 %v175, %v246
    %v378 = vmul.f32 %v175, %v250
    %v379 = vld [vmem:[%s2] sm:$0xff]
    %v380 = vld [vmem:[%s2 + $0x8] sm:$0xff]
    %v381 = vld [vmem:[%s2 + $0x10] sm:$0xff]
    %v382 = vld [vmem:[%s2 + $0x18] sm:$0xff]
    %v383 = vld [vmem:[%s2 + $0x20] sm:$0xff]
    %v384 = vld [vmem:[%s2 + $0x28] sm:$0xff]
    %v385 = vld [vmem:[%s2 + $0x30] sm:$0xff]
    %v386 = vld [vmem:[%s2 + $0x38] sm:$0xff]
    %v387 = vld [vmem:[%s2 + $0x40] sm:$0xff]
    %v388 = vld [vmem:[%s2 + $0x48] sm:$0xff]
    %v389 = vld [vmem:[%s2 + $0x50] sm:$0xff]
    %v390 = vld [vmem:[%s2 + $0x58] sm:$0xff]
    %v391 = vld [vmem:[%s2 + $0x60] sm:$0xff]
    %v392 = vld [vmem:[%s2 + $0x68] sm:$0xff]
    %v393 = vld [vmem:[%s2 + $0x70] sm:$0xff]
    %v394 = vld [vmem:[%s2 + $0x78] sm:$0xff]
    %396 = vset.pattern.permute.xlu0 0
    %397 = vperm.xlu0 %396, %v379
    %v398 = vpop.permute.xlu0 %397
    %401 = vset.pattern.permute.xlu0 0
    %402 = vperm.xlu0 %401, %v380
    %v403 = vpop.permute.xlu0 %402
    %406 = vset.pattern.permute.xlu0 0
    %407 = vperm.xlu0 %406, %v381
    %v408 = vpop.permute.xlu0 %407
    %411 = vset.pattern.permute.xlu0 0
    %412 = vperm.xlu0 %411, %v382
    %v413 = vpop.permute.xlu0 %412
    %416 = vset.pattern.permute.xlu0 0
    %417 = vperm.xlu0 %416, %v383
    %v418 = vpop.permute.xlu0 %417
    %421 = vset.pattern.permute.xlu0 0
    %422 = vperm.xlu0 %421, %v384
    %v423 = vpop.permute.xlu0 %422
    %426 = vset.pattern.permute.xlu0 0
    %427 = vperm.xlu0 %426, %v385
    %v428 = vpop.permute.xlu0 %427
    %431 = vset.pattern.permute.xlu0 0
    %432 = vperm.xlu0 %431, %v386
    %v433 = vpop.permute.xlu0 %432
    %436 = vset.pattern.permute.xlu0 0
    %437 = vperm.xlu0 %436, %v387
    %v438 = vpop.permute.xlu0 %437
    %441 = vset.pattern.permute.xlu0 0
    %442 = vperm.xlu0 %441, %v388
    %v443 = vpop.permute.xlu0 %442
    %446 = vset.pattern.permute.xlu0 0
    %447 = vperm.xlu0 %446, %v389
    %v448 = vpop.permute.xlu0 %447
    %451 = vset.pattern.permute.xlu0 0
    %452 = vperm.xlu0 %451, %v390
    %v453 = vpop.permute.xlu0 %452
    %456 = vset.pattern.permute.xlu0 0
    %457 = vperm.xlu0 %456, %v391
    %v458 = vpop.permute.xlu0 %457
    %461 = vset.pattern.permute.xlu0 0
    %462 = vperm.xlu0 %461, %v392
    %v463 = vpop.permute.xlu0 %462
    %466 = vset.pattern.permute.xlu0 0
    %467 = vperm.xlu0 %466, %v393
    %v468 = vpop.permute.xlu0 %467
    %471 = vset.pattern.permute.xlu0 0
    %472 = vperm.xlu0 %471, %v394
    %v473 = vpop.permute.xlu0 %472
    %v475 = vlaneseq
    %v476 = vshrl.u32 %v475, 7
    %v477 = vsub.s32 1, %v476
    %v478 = vrot.slane %v79, %v477
    %v479 = vlaneseq
    %v480 = vshrl.u32 %v479, 7
    %v481 = vsub.s32 3, %v480
    %v482 = vrot.slane %v79, %v481
    %v483 = vlaneseq
    %v484 = vshrl.u32 %v483, 7
    %v485 = vsub.s32 5, %v484
    %v486 = vrot.slane %v79, %v485
    %v487 = vlaneseq
    %v488 = vshrl.u32 %v487, 7
    %v489 = vsub.s32 7, %v488
    %v490 = vrot.slane %v79, %v489
    %v491 = vlaneseq
    %v492 = vshrl.u32 %v491, 7
    %v493 = vsub.s32 1, %v492
    %v494 = vrot.slane %v80, %v493
    %v495 = vlaneseq
    %v496 = vshrl.u32 %v495, 7
    %v497 = vsub.s32 3, %v496
    %v498 = vrot.slane %v80, %v497
    %v499 = vlaneseq
    %v500 = vshrl.u32 %v499, 7
    %v501 = vsub.s32 5, %v500
    %v502 = vrot.slane %v80, %v501
    %v503 = vlaneseq
    %v504 = vshrl.u32 %v503, 7
    %v505 = vsub.s32 7, %v504
    %v506 = vrot.slane %v80, %v505
    %v515 = vlaneseq
    %v516 = vshrl.u32 %v515, 7
    %v517 = vsub.s32 1, %v516
    %v518 = vrot.slane %v478, %v517
    %v519 = vlaneseq
    %v520 = vshrl.u32 %v519, 7
    %v521 = vsub.s32 1, %v520
    %v522 = vrot.slane %v482, %v521
    %v523 = vlaneseq
    %v524 = vshrl.u32 %v523, 7
    %v525 = vsub.s32 1, %v524
    %v526 = vrot.slane %v486, %v525
    %v527 = vlaneseq
    %v528 = vshrl.u32 %v527, 7
    %v529 = vsub.s32 1, %v528
    %v530 = vrot.slane %v490, %v529
    %v531 = vlaneseq
    %v532 = vshrl.u32 %v531, 7
    %v533 = vsub.s32 1, %v532
    %v534 = vrot.slane %v494, %v533
    %v535 = vlaneseq
    %v536 = vshrl.u32 %v535, 7
    %v537 = vsub.s32 1, %v536
    %v538 = vrot.slane %v498, %v537
    %v539 = vlaneseq
    %v540 = vshrl.u32 %v539, 7
    %v541 = vsub.s32 1, %v540
    %v542 = vrot.slane %v502, %v541
    %v543 = vlaneseq
    %v544 = vshrl.u32 %v543, 7
    %v545 = vsub.s32 1, %v544
    %v546 = vrot.slane %v506, %v545
    %v547 = vmul.f32 %v398, %v518
    %v548 = vmul.f32 %v398, %v522
    %v549 = vmul.f32 %v398, %v526
    %v550 = vmul.f32 %v398, %v530
    %v551 = vmul.f32 %v398, %v534
    %v552 = vmul.f32 %v398, %v538
    %v553 = vmul.f32 %v398, %v542
    %v554 = vmul.f32 %v398, %v546
    %v555 = vmul.f32 %v403, %v518
    %v556 = vmul.f32 %v403, %v522
    %v557 = vmul.f32 %v403, %v526
    %v558 = vmul.f32 %v403, %v530
    %v559 = vmul.f32 %v403, %v534
    %v560 = vmul.f32 %v403, %v538
    %v561 = vmul.f32 %v403, %v542
    %v562 = vmul.f32 %v403, %v546
    %v563 = vmul.f32 %v408, %v518
    %v564 = vmul.f32 %v408, %v522
    %v565 = vmul.f32 %v408, %v526
    %v566 = vmul.f32 %v408, %v530
    %v567 = vmul.f32 %v408, %v534
    %v568 = vmul.f32 %v408, %v538
    %v569 = vmul.f32 %v408, %v542
    %v570 = vmul.f32 %v408, %v546
    %v571 = vmul.f32 %v413, %v518
    %v572 = vmul.f32 %v413, %v522
    %v573 = vmul.f32 %v413, %v526
    %v574 = vmul.f32 %v413, %v530
    %v575 = vmul.f32 %v413, %v534
    %v576 = vmul.f32 %v413, %v538
    %v577 = vmul.f32 %v413, %v542
    %v578 = vmul.f32 %v413, %v546
    %v579 = vmul.f32 %v418, %v518
    %v580 = vmul.f32 %v418, %v522
    %v581 = vmul.f32 %v418, %v526
    %v582 = vmul.f32 %v418, %v530
    %v583 = vmul.f32 %v418, %v534
    %v584 = vmul.f32 %v418, %v538
    %v585 = vmul.f32 %v418, %v542
    %v586 = vmul.f32 %v418, %v546
    %v587 = vmul.f32 %v423, %v518
    %v588 = vmul.f32 %v423, %v522
    %v589 = vmul.f32 %v423, %v526
    %v590 = vmul.f32 %v423, %v530
    %v591 = vmul.f32 %v423, %v534
    %v592 = vmul.f32 %v423, %v538
    %v593 = vmul.f32 %v423, %v542
    %v594 = vmul.f32 %v423, %v546
    %v595 = vmul.f32 %v428, %v518
    %v596 = vmul.f32 %v428, %v522
    %v597 = vmul.f32 %v428, %v526
    %v598 = vmul.f32 %v428, %v530
    %v599 = vmul.f32 %v428, %v534
    %v600 = vmul.f32 %v428, %v538
    %v601 = vmul.f32 %v428, %v542
    %v602 = vmul.f32 %v428, %v546
    %v603 = vmul.f32 %v433, %v518
    %v604 = vmul.f32 %v433, %v522
    %v605 = vmul.f32 %v433, %v526
    %v606 = vmul.f32 %v433, %v530
    %v607 = vmul.f32 %v433, %v534
    %v608 = vmul.f32 %v433, %v538
    %v609 = vmul.f32 %v433, %v542
    %v610 = vmul.f32 %v433, %v546
    %v611 = vmul.f32 %v438, %v518
    %v612 = vmul.f32 %v438, %v522
    %v613 = vmul.f32 %v438, %v526
    %v614 = vmul.f32 %v438, %v530
    %v615 = vmul.f32 %v438, %v534
    %v616 = vmul.f32 %v438, %v538
    %v617 = vmul.f32 %v438, %v542
    %v618 = vmul.f32 %v438, %v546
    %v619 = vmul.f32 %v443, %v518
    %v620 = vmul.f32 %v443, %v522
    %v621 = vmul.f32 %v443, %v526
    %v622 = vmul.f32 %v443, %v530
    %v623 = vmul.f32 %v443, %v534
    %v624 = vmul.f32 %v443, %v538
    %v625 = vmul.f32 %v443, %v542
    %v626 = vmul.f32 %v443, %v546
    %v627 = vmul.f32 %v448, %v518
    %v628 = vmul.f32 %v448, %v522
    %v629 = vmul.f32 %v448, %v526
    %v630 = vmul.f32 %v448, %v530
    %v631 = vmul.f32 %v448, %v534
    %v632 = vmul.f32 %v448, %v538
    %v633 = vmul.f32 %v448, %v542
    %v634 = vmul.f32 %v448, %v546
    %v635 = vmul.f32 %v453, %v518
    %v636 = vmul.f32 %v453, %v522
    %v637 = vmul.f32 %v453, %v526
    %v638 = vmul.f32 %v453, %v530
    %v639 = vmul.f32 %v453, %v534
    %v640 = vmul.f32 %v453, %v538
    %v641 = vmul.f32 %v453, %v542
    %v642 = vmul.f32 %v453, %v546
    %v643 = vmul.f32 %v458, %v518
    %v644 = vmul.f32 %v458, %v522
    %v645 = vmul.f32 %v458, %v526
    %v646 = vmul.f32 %v458, %v530
    %v647 = vmul.f32 %v458, %v534
    %v648 = vmul.f32 %v458, %v538
    %v649 = vmul.f32 %v458, %v542
    %v650 = vmul.f32 %v458, %v546
    %v651 = vmul.f32 %v463, %v518
    %v652 = vmul.f32 %v463, %v522
    %v653 = vmul.f32 %v463, %v526
    %v654 = vmul.f32 %v463, %v530
    %v655 = vmul.f32 %v463, %v534
    %v656 = vmul.f32 %v463, %v538
    %v657 = vmul.f32 %v463, %v542
    %v658 = vmul.f32 %v463, %v546
    %v659 = vmul.f32 %v468, %v518
    %v660 = vmul.f32 %v468, %v522
    %v661 = vmul.f32 %v468, %v526
    %v662 = vmul.f32 %v468, %v530
    %v663 = vmul.f32 %v468, %v534
    %v664 = vmul.f32 %v468, %v538
    %v665 = vmul.f32 %v468, %v542
    %v666 = vmul.f32 %v468, %v546
    %v667 = vmul.f32 %v473, %v518
    %v668 = vmul.f32 %v473, %v522
    %v669 = vmul.f32 %v473, %v526
    %v670 = vmul.f32 %v473, %v530
    %v671 = vmul.f32 %v473, %v534
    %v672 = vmul.f32 %v473, %v538
    %v673 = vmul.f32 %v473, %v542
    %v674 = vmul.f32 %v473, %v546
    %v675 = vadd.f32 %v251, %v547
    %v676 = vadd.f32 %v252, %v548
    %v677 = vadd.f32 %v253, %v549
    %v678 = vadd.f32 %v254, %v550
    %v679 = vadd.f32 %v255, %v551
    %v680 = vadd.f32 %v256, %v552
    %v681 = vadd.f32 %v257, %v553
    %v682 = vadd.f32 %v258, %v554
    %v683 = vadd.f32 %v259, %v555
    %v684 = vadd.f32 %v260, %v556
    %v685 = vadd.f32 %v261, %v557
    %v686 = vadd.f32 %v262, %v558
    %v687 = vadd.f32 %v263, %v559
    %v688 = vadd.f32 %v264, %v560
    %v689 = vadd.f32 %v265, %v561
    %v690 = vadd.f32 %v266, %v562
    %v691 = vadd.f32 %v267, %v563
    %v692 = vadd.f32 %v268, %v564
    %v693 = vadd.f32 %v269, %v565
    %v694 = vadd.f32 %v270, %v566
    %v695 = vadd.f32 %v271, %v567
    %v696 = vadd.f32 %v272, %v568
    %v697 = vadd.f32 %v273, %v569
    %v698 = vadd.f32 %v274, %v570
    %v699 = vadd.f32 %v275, %v571
    %v700 = vadd.f32 %v276, %v572
    %v701 = vadd.f32 %v277, %v573
    %v702 = vadd.f32 %v278, %v574
    %v703 = vadd.f32 %v279, %v575
    %v704 = vadd.f32 %v280, %v576
    %v705 = vadd.f32 %v281, %v577
    %v706 = vadd.f32 %v282, %v578
    %v707 = vadd.f32 %v283, %v579
    %v708 = vadd.f32 %v284, %v580
    %v709 = vadd.f32 %v285, %v581
    %v710 = vadd.f32 %v286, %v582
    %v711 = vadd.f32 %v287, %v583
    %v712 = vadd.f32 %v288, %v584
    %v713 = vadd.f32 %v289, %v585
    %v714 = vadd.f32 %v290, %v586
    %v715 = vadd.f32 %v291, %v587
    %v716 = vadd.f32 %v292, %v588
    %v717 = vadd.f32 %v293, %v589
    %v718 = vadd.f32 %v294, %v590
    %v719 = vadd.f32 %v295, %v591
    %v720 = vadd.f32 %v296, %v592
    %v721 = vadd.f32 %v297, %v593
    %v722 = vadd.f32 %v298, %v594
    %v723 = vadd.f32 %v299, %v595
    %v724 = vadd.f32 %v300, %v596
    %v725 = vadd.f32 %v301, %v597
    %v726 = vadd.f32 %v302, %v598
    %v727 = vadd.f32 %v303, %v599
    %v728 = vadd.f32 %v304, %v600
    %v729 = vadd.f32 %v305, %v601
    %v730 = vadd.f32 %v306, %v602
    %v731 = vadd.f32 %v307, %v603
    %v732 = vadd.f32 %v308, %v604
    %v733 = vadd.f32 %v309, %v605
    %v734 = vadd.f32 %v310, %v606
    %v735 = vadd.f32 %v311, %v607
    %v736 = vadd.f32 %v312, %v608
    %v737 = vadd.f32 %v313, %v609
    %v738 = vadd.f32 %v314, %v610
    %v739 = vadd.f32 %v315, %v611
    %v740 = vadd.f32 %v316, %v612
    %v741 = vadd.f32 %v317, %v613
    %v742 = vadd.f32 %v318, %v614
    %v743 = vadd.f32 %v319, %v615
    %v744 = vadd.f32 %v320, %v616
    %v745 = vadd.f32 %v321, %v617
    %v746 = vadd.f32 %v322, %v618
    %v747 = vadd.f32 %v323, %v619
    %v748 = vadd.f32 %v324, %v620
    %v749 = vadd.f32 %v325, %v621
    %v750 = vadd.f32 %v326, %v622
    %v751 = vadd.f32 %v327, %v623
    %v752 = vadd.f32 %v328, %v624
    %v753 = vadd.f32 %v329, %v625
    %v754 = vadd.f32 %v330, %v626
    %v755 = vadd.f32 %v331, %v627
    %v756 = vadd.f32 %v332, %v628
    %v757 = vadd.f32 %v333, %v629
    %v758 = vadd.f32 %v334, %v630
    %v759 = vadd.f32 %v335, %v631
    %v760 = vadd.f32 %v336, %v632
    %v761 = vadd.f32 %v337, %v633
    %v762 = vadd.f32 %v338, %v634
    %v763 = vadd.f32 %v339, %v635
    %v764 = vadd.f32 %v340, %v636
    %v765 = vadd.f32 %v341, %v637
    %v766 = vadd.f32 %v342, %v638
    %v767 = vadd.f32 %v343, %v639
    %v768 = vadd.f32 %v344, %v640
    %v769 = vadd.f32 %v345, %v641
    %v770 = vadd.f32 %v346, %v642
    %v771 = vadd.f32 %v347, %v643
    %v772 = vadd.f32 %v348, %v644
    %v773 = vadd.f32 %v349, %v645
    %v774 = vadd.f32 %v350, %v646
    %v775 = vadd.f32 %v351, %v647
    %v776 = vadd.f32 %v352, %v648
    %v777 = vadd.f32 %v353, %v649
    %v778 = vadd.f32 %v354, %v650
    %v779 = vadd.f32 %v355, %v651
    %v780 = vadd.f32 %v356, %v652
    %v781 = vadd.f32 %v357, %v653
    %v782 = vadd.f32 %v358, %v654
    %v783 = vadd.f32 %v359, %v655
    %v784 = vadd.f32 %v360, %v656
    %v785 = vadd.f32 %v361, %v657
    %v786 = vadd.f32 %v362, %v658
    %v787 = vadd.f32 %v363, %v659
    %v788 = vadd.f32 %v364, %v660
    %v789 = vadd.f32 %v365, %v661
    %v790 = vadd.f32 %v366, %v662
    %v791 = vadd.f32 %v367, %v663
    %v792 = vadd.f32 %v368, %v664
    %v793 = vadd.f32 %v369, %v665
    %v794 = vadd.f32 %v370, %v666
    %v795 = vadd.f32 %v371, %v667
    %v796 = vadd.f32 %v372, %v668
    %v797 = vadd.f32 %v373, %v669
    %v798 = vadd.f32 %v374, %v670
    %v799 = vadd.f32 %v375, %v671
    %v800 = vadd.f32 %v376, %v672
    %v801 = vadd.f32 %v377, %v673
    %v802 = vadd.f32 %v378, %v674
    %v803 = vmul.f32 %v675, %v71
    %v804 = vmul.f32 %v676, %v72
    %v805 = vmul.f32 %v677, %v73
    %v806 = vmul.f32 %v678, %v74
    %v807 = vmul.f32 %v679, %v75
    %v808 = vmul.f32 %v680, %v76
    %v809 = vmul.f32 %v681, %v77
    %v810 = vmul.f32 %v682, %v78
    %v811 = vmul.f32 %v683, %v71
    %v812 = vmul.f32 %v684, %v72
    %v813 = vmul.f32 %v685, %v73
    %v814 = vmul.f32 %v686, %v74
    %v815 = vmul.f32 %v687, %v75
    %v816 = vmul.f32 %v688, %v76
    %v817 = vmul.f32 %v689, %v77
    %v818 = vmul.f32 %v690, %v78
    %v819 = vmul.f32 %v691, %v71
    %v820 = vmul.f32 %v692, %v72
    %v821 = vmul.f32 %v693, %v73
    %v822 = vmul.f32 %v694, %v74
    %v823 = vmul.f32 %v695, %v75
    %v824 = vmul.f32 %v696, %v76
    %v825 = vmul.f32 %v697, %v77
    %v826 = vmul.f32 %v698, %v78
    %v827 = vmul.f32 %v699, %v71
    %v828 = vmul.f32 %v700, %v72
    %v829 = vmul.f32 %v701, %v73
    %v830 = vmul.f32 %v702, %v74
    %v831 = vmul.f32 %v703, %v75
    %v832 = vmul.f32 %v704, %v76
    %v833 = vmul.f32 %v705, %v77
    %v834 = vmul.f32 %v706, %v78
    %v835 = vmul.f32 %v707, %v71
    %v836 = vmul.f32 %v708, %v72
    %v837 = vmul.f32 %v709, %v73
    %v838 = vmul.f32 %v710, %v74
    %v839 = vmul.f32 %v711, %v75
    %v840 = vmul.f32 %v712, %v76
    %v841 = vmul.f32 %v713, %v77
    %v842 = vmul.f32 %v714, %v78
    %v843 = vmul.f32 %v715, %v71
    %v844 = vmul.f32 %v716, %v72
    %v845 = vmul.f32 %v717, %v73
    %v846 = vmul.f32 %v718, %v74
    %v847 = vmul.f32 %v719, %v75
    %v848 = vmul.f32 %v720, %v76
    %v849 = vmul.f32 %v721, %v77
    %v850 = vmul.f32 %v722, %v78
    %v851 = vmul.f32 %v723, %v71
    %v852 = vmul.f32 %v724, %v72
    %v853 = vmul.f32 %v725, %v73
    %v854 = vmul.f32 %v726, %v74
    %v855 = vmul.f32 %v727, %v75
    %v856 = vmul.f32 %v728, %v76
    %v857 = vmul.f32 %v729, %v77
    %v858 = vmul.f32 %v730, %v78
    %v859 = vmul.f32 %v731, %v71
    %v860 = vmul.f32 %v732, %v72
    %v861 = vmul.f32 %v733, %v73
    %v862 = vmul.f32 %v734, %v74
    %v863 = vmul.f32 %v735, %v75
    %v864 = vmul.f32 %v736, %v76
    %v865 = vmul.f32 %v737, %v77
    %v866 = vmul.f32 %v738, %v78
    %v867 = vmul.f32 %v739, %v71
    %v868 = vmul.f32 %v740, %v72
    %v869 = vmul.f32 %v741, %v73
    %v870 = vmul.f32 %v742, %v74
    %v871 = vmul.f32 %v743, %v75
    %v872 = vmul.f32 %v744, %v76
    %v873 = vmul.f32 %v745, %v77
    %v874 = vmul.f32 %v746, %v78
    %v875 = vmul.f32 %v747, %v71
    %v876 = vmul.f32 %v748, %v72
    %v877 = vmul.f32 %v749, %v73
    %v878 = vmul.f32 %v750, %v74
    %v879 = vmul.f32 %v751, %v75
    %v880 = vmul.f32 %v752, %v76
    %v881 = vmul.f32 %v753, %v77
    %v882 = vmul.f32 %v754, %v78
    %v883 = vmul.f32 %v755, %v71
    %v884 = vmul.f32 %v756, %v72
    %v885 = vmul.f32 %v757, %v73
    %v886 = vmul.f32 %v758, %v74
    %v887 = vmul.f32 %v759, %v75
    %v888 = vmul.f32 %v760, %v76
    %v889 = vmul.f32 %v761, %v77
    %v890 = vmul.f32 %v762, %v78
    %v891 = vmul.f32 %v763, %v71
    %v892 = vmul.f32 %v764, %v72
    %v893 = vmul.f32 %v765, %v73
    %v894 = vmul.f32 %v766, %v74
    %v895 = vmul.f32 %v767, %v75
    %v896 = vmul.f32 %v768, %v76
    %v897 = vmul.f32 %v769, %v77
    %v898 = vmul.f32 %v770, %v78
    %v899 = vmul.f32 %v771, %v71
    %v900 = vmul.f32 %v772, %v72
    %v901 = vmul.f32 %v773, %v73
    %v902 = vmul.f32 %v774, %v74
    %v903 = vmul.f32 %v775, %v75
    %v904 = vmul.f32 %v776, %v76
    %v905 = vmul.f32 %v777, %v77
    %v906 = vmul.f32 %v778, %v78
    %v907 = vmul.f32 %v779, %v71
    %v908 = vmul.f32 %v780, %v72
    %v909 = vmul.f32 %v781, %v73
    %v910 = vmul.f32 %v782, %v74
    %v911 = vmul.f32 %v783, %v75
    %v912 = vmul.f32 %v784, %v76
    %v913 = vmul.f32 %v785, %v77
    %v914 = vmul.f32 %v786, %v78
    %v915 = vmul.f32 %v787, %v71
    %v916 = vmul.f32 %v788, %v72
    %v917 = vmul.f32 %v789, %v73
    %v918 = vmul.f32 %v790, %v74
    %v919 = vmul.f32 %v791, %v75
    %v920 = vmul.f32 %v792, %v76
    %v921 = vmul.f32 %v793, %v77
    %v922 = vmul.f32 %v794, %v78
    %v923 = vmul.f32 %v795, %v71
    %v924 = vmul.f32 %v796, %v72
    %v925 = vmul.f32 %v797, %v73
    %v926 = vmul.f32 %v798, %v74
    %v927 = vmul.f32 %v799, %v75
    %v928 = vmul.f32 %v800, %v76
    %v929 = vmul.f32 %v801, %v77
    %v930 = vmul.f32 %v802, %v78
    %v931 = vadd.f32 %v803, %v804
    %v932 = vadd.f32 %v931, %v805
    %v933 = vadd.f32 %v932, %v806
    %v934 = vadd.f32 %v933, %v807
    %v935 = vadd.f32 %v934, %v808
    %v936 = vadd.f32 %v935, %v809
    %v937 = vadd.f32 %v936, %v810
    %938 = vadd.xlane.f32.xlu0 %v937
    %v939 = vpop.xlane.xlu0 %938
    %v940 = vadd.f32 %v811, %v812
    %v941 = vadd.f32 %v940, %v813
    %v942 = vadd.f32 %v941, %v814
    %v943 = vadd.f32 %v942, %v815
    %v944 = vadd.f32 %v943, %v816
    %v945 = vadd.f32 %v944, %v817
    %v946 = vadd.f32 %v945, %v818
    %947 = vadd.xlane.f32.xlu0 %v946
    %v948 = vpop.xlane.xlu0 %947
    %v949 = vadd.f32 %v819, %v820
    %v950 = vadd.f32 %v949, %v821
    %v951 = vadd.f32 %v950, %v822
    %v952 = vadd.f32 %v951, %v823
    %v953 = vadd.f32 %v952, %v824
    %v954 = vadd.f32 %v953, %v825
    %v955 = vadd.f32 %v954, %v826
    %956 = vadd.xlane.f32.xlu0 %v955
    %v957 = vpop.xlane.xlu0 %956
    %v958 = vadd.f32 %v827, %v828
    %v959 = vadd.f32 %v958, %v829
    %v960 = vadd.f32 %v959, %v830
    %v961 = vadd.f32 %v960, %v831
    %v962 = vadd.f32 %v961, %v832
    %v963 = vadd.f32 %v962, %v833
    %v964 = vadd.f32 %v963, %v834
    %965 = vadd.xlane.f32.xlu0 %v964
    %v966 = vpop.xlane.xlu0 %965
    %v967 = vadd.f32 %v835, %v836
    %v968 = vadd.f32 %v967, %v837
    %v969 = vadd.f32 %v968, %v838
    %v970 = vadd.f32 %v969, %v839
    %v971 = vadd.f32 %v970, %v840
    %v972 = vadd.f32 %v971, %v841
    %v973 = vadd.f32 %v972, %v842
    %974 = vadd.xlane.f32.xlu0 %v973
    %v975 = vpop.xlane.xlu0 %974
    %v976 = vadd.f32 %v843, %v844
    %v977 = vadd.f32 %v976, %v845
    %v978 = vadd.f32 %v977, %v846
    %v979 = vadd.f32 %v978, %v847
    %v980 = vadd.f32 %v979, %v848
    %v981 = vadd.f32 %v980, %v849
    %v982 = vadd.f32 %v981, %v850
    %983 = vadd.xlane.f32.xlu0 %v982
    %v984 = vpop.xlane.xlu0 %983
    %v985 = vadd.f32 %v851, %v852
    %v986 = vadd.f32 %v985, %v853
    %v987 = vadd.f32 %v986, %v854
    %v988 = vadd.f32 %v987, %v855
    %v989 = vadd.f32 %v988, %v856
    %v990 = vadd.f32 %v989, %v857
    %v991 = vadd.f32 %v990, %v858
    %992 = vadd.xlane.f32.xlu0 %v991
    %v993 = vpop.xlane.xlu0 %992
    %v994 = vadd.f32 %v859, %v860
    %v995 = vadd.f32 %v994, %v861
    %v996 = vadd.f32 %v995, %v862
    %v997 = vadd.f32 %v996, %v863
    %v998 = vadd.f32 %v997, %v864
    %v999 = vadd.f32 %v998, %v865
    %v1000 = vadd.f32 %v999, %v866
    %1001 = vadd.xlane.f32.xlu0 %v1000
    %v1002 = vpop.xlane.xlu0 %1001
    %v1003 = vadd.f32 %v867, %v868
    %v1004 = vadd.f32 %v1003, %v869
    %v1005 = vadd.f32 %v1004, %v870
    %v1006 = vadd.f32 %v1005, %v871
    %v1007 = vadd.f32 %v1006, %v872
    %v1008 = vadd.f32 %v1007, %v873
    %v1009 = vadd.f32 %v1008, %v874
    %1010 = vadd.xlane.f32.xlu0 %v1009
    %v1011 = vpop.xlane.xlu0 %1010
    %v1012 = vadd.f32 %v875, %v876
    %v1013 = vadd.f32 %v1012, %v877
    %v1014 = vadd.f32 %v1013, %v878
    %v1015 = vadd.f32 %v1014, %v879
    %v1016 = vadd.f32 %v1015, %v880
    %v1017 = vadd.f32 %v1016, %v881
    %v1018 = vadd.f32 %v1017, %v882
    %1019 = vadd.xlane.f32.xlu0 %v1018
    %v1020 = vpop.xlane.xlu0 %1019
    %v1021 = vadd.f32 %v883, %v884
    %v1022 = vadd.f32 %v1021, %v885
    %v1023 = vadd.f32 %v1022, %v886
    %v1024 = vadd.f32 %v1023, %v887
    %v1025 = vadd.f32 %v1024, %v888
    %v1026 = vadd.f32 %v1025, %v889
    %v1027 = vadd.f32 %v1026, %v890
    %1028 = vadd.xlane.f32.xlu0 %v1027
    %v1029 = vpop.xlane.xlu0 %1028
    %v1030 = vadd.f32 %v891, %v892
    %v1031 = vadd.f32 %v1030, %v893
    %v1032 = vadd.f32 %v1031, %v894
    %v1033 = vadd.f32 %v1032, %v895
    %v1034 = vadd.f32 %v1033, %v896
    %v1035 = vadd.f32 %v1034, %v897
    %v1036 = vadd.f32 %v1035, %v898
    %1037 = vadd.xlane.f32.xlu0 %v1036
    %v1038 = vpop.xlane.xlu0 %1037
    %v1039 = vadd.f32 %v899, %v900
    %v1040 = vadd.f32 %v1039, %v901
    %v1041 = vadd.f32 %v1040, %v902
    %v1042 = vadd.f32 %v1041, %v903
    %v1043 = vadd.f32 %v1042, %v904
    %v1044 = vadd.f32 %v1043, %v905
    %v1045 = vadd.f32 %v1044, %v906
    %1046 = vadd.xlane.f32.xlu0 %v1045
    %v1047 = vpop.xlane.xlu0 %1046
    %v1048 = vadd.f32 %v907, %v908
    %v1049 = vadd.f32 %v1048, %v909
    %v1050 = vadd.f32 %v1049, %v910
    %v1051 = vadd.f32 %v1050, %v911
    %v1052 = vadd.f32 %v1051, %v912
    %v1053 = vadd.f32 %v1052, %v913
    %v1054 = vadd.f32 %v1053, %v914
    %1055 = vadd.xlane.f32.xlu0 %v1054
    %v1056 = vpop.xlane.xlu0 %1055
    %v1057 = vadd.f32 %v915, %v916
    %v1058 = vadd.f32 %v1057, %v917
    %v1059 = vadd.f32 %v1058, %v918
    %v1060 = vadd.f32 %v1059, %v919
    %v1061 = vadd.f32 %v1060, %v920
    %v1062 = vadd.f32 %v1061, %v921
    %v1063 = vadd.f32 %v1062, %v922
    %1064 = vadd.xlane.f32.xlu0 %v1063
    %v1065 = vpop.xlane.xlu0 %1064
    %v1066 = vadd.f32 %v923, %v924
    %v1067 = vadd.f32 %v1066, %v925
    %v1068 = vadd.f32 %v1067, %v926
    %v1069 = vadd.f32 %v1068, %v927
    %v1070 = vadd.f32 %v1069, %v928
    %v1071 = vadd.f32 %v1070, %v929
    %v1072 = vadd.f32 %v1071, %v930
    %1073 = vadd.xlane.f32.xlu0 %v1072
    %v1074 = vpop.xlane.xlu0 %1073
    %v1075 = vmul.f32 %v939, 0.001
    %v1076 = vmul.f32 %v948, 0.001
    %v1077 = vmul.f32 %v957, 0.001
    %v1078 = vmul.f32 %v966, 0.001
    %v1079 = vmul.f32 %v975, 0.001
    %v1080 = vmul.f32 %v984, 0.001
    %v1081 = vmul.f32 %v993, 0.001
    %v1082 = vmul.f32 %v1002, 0.001
    %v1083 = vmul.f32 %v1011, 0.001
    %v1084 = vmul.f32 %v1020, 0.001
    %v1085 = vmul.f32 %v1029, 0.001
    %v1086 = vmul.f32 %v1038, 0.001
    %v1087 = vmul.f32 %v1047, 0.001
    %v1088 = vmul.f32 %v1056, 0.001
    %v1089 = vmul.f32 %v1065, 0.001
    %v1090 = vmul.f32 %v1074, 0.001
    %v1091 = vmul.f32 %v803, %v675
    %v1092 = vmul.f32 %v804, %v676
    %v1093 = vmul.f32 %v805, %v677
    %v1094 = vmul.f32 %v806, %v678
    %v1095 = vmul.f32 %v807, %v679
    %v1096 = vmul.f32 %v808, %v680
    %v1097 = vmul.f32 %v809, %v681
    %v1098 = vmul.f32 %v810, %v682
    %v1099 = vmul.f32 %v811, %v683
    %v1100 = vmul.f32 %v812, %v684
    %v1101 = vmul.f32 %v813, %v685
    %v1102 = vmul.f32 %v814, %v686
    %v1103 = vmul.f32 %v815, %v687
    %v1104 = vmul.f32 %v816, %v688
    %v1105 = vmul.f32 %v817, %v689
    %v1106 = vmul.f32 %v818, %v690
    %v1107 = vmul.f32 %v819, %v691
    %v1108 = vmul.f32 %v820, %v692
    %v1109 = vmul.f32 %v821, %v693
    %v1110 = vmul.f32 %v822, %v694
    %v1111 = vmul.f32 %v823, %v695
    %v1112 = vmul.f32 %v824, %v696
    %v1113 = vmul.f32 %v825, %v697
    %v1114 = vmul.f32 %v826, %v698
    %v1115 = vmul.f32 %v827, %v699
    %v1116 = vmul.f32 %v828, %v700
    %v1117 = vmul.f32 %v829, %v701
    %v1118 = vmul.f32 %v830, %v702
    %v1119 = vmul.f32 %v831, %v703
    %v1120 = vmul.f32 %v832, %v704
    %v1121 = vmul.f32 %v833, %v705
    %v1122 = vmul.f32 %v834, %v706
    %v1123 = vmul.f32 %v835, %v707
    %v1124 = vmul.f32 %v836, %v708
    %v1125 = vmul.f32 %v837, %v709
    %v1126 = vmul.f32 %v838, %v710
    %v1127 = vmul.f32 %v839, %v711
    %v1128 = vmul.f32 %v840, %v712
    %v1129 = vmul.f32 %v841, %v713
    %v1130 = vmul.f32 %v842, %v714
    %v1131 = vmul.f32 %v843, %v715
    %v1132 = vmul.f32 %v844, %v716
    %v1133 = vmul.f32 %v845, %v717
    %v1134 = vmul.f32 %v846, %v718
    %v1135 = vmul.f32 %v847, %v719
    %v1136 = vmul.f32 %v848, %v720
    %v1137 = vmul.f32 %v849, %v721
    %v1138 = vmul.f32 %v850, %v722
    %v1139 = vmul.f32 %v851, %v723
    %v1140 = vmul.f32 %v852, %v724
    %v1141 = vmul.f32 %v853, %v725
    %v1142 = vmul.f32 %v854, %v726
    %v1143 = vmul.f32 %v855, %v727
    %v1144 = vmul.f32 %v856, %v728
    %v1145 = vmul.f32 %v857, %v729
    %v1146 = vmul.f32 %v858, %v730
    %v1147 = vmul.f32 %v859, %v731
    %v1148 = vmul.f32 %v860, %v732
    %v1149 = vmul.f32 %v861, %v733
    %v1150 = vmul.f32 %v862, %v734
    %v1151 = vmul.f32 %v863, %v735
    %v1152 = vmul.f32 %v864, %v736
    %v1153 = vmul.f32 %v865, %v737
    %v1154 = vmul.f32 %v866, %v738
    %v1155 = vmul.f32 %v867, %v739
    %v1156 = vmul.f32 %v868, %v740
    %v1157 = vmul.f32 %v869, %v741
    %v1158 = vmul.f32 %v870, %v742
    %v1159 = vmul.f32 %v871, %v743
    %v1160 = vmul.f32 %v872, %v744
    %v1161 = vmul.f32 %v873, %v745
    %v1162 = vmul.f32 %v874, %v746
    %v1163 = vmul.f32 %v875, %v747
    %v1164 = vmul.f32 %v876, %v748
    %v1165 = vmul.f32 %v877, %v749
    %v1166 = vmul.f32 %v878, %v750
    %v1167 = vmul.f32 %v879, %v751
    %v1168 = vmul.f32 %v880, %v752
    %v1169 = vmul.f32 %v881, %v753
    %v1170 = vmul.f32 %v882, %v754
    %v1171 = vmul.f32 %v883, %v755
    %v1172 = vmul.f32 %v884, %v756
    %v1173 = vmul.f32 %v885, %v757
    %v1174 = vmul.f32 %v886, %v758
    %v1175 = vmul.f32 %v887, %v759
    %v1176 = vmul.f32 %v888, %v760
    %v1177 = vmul.f32 %v889, %v761
    %v1178 = vmul.f32 %v890, %v762
    %v1179 = vmul.f32 %v891, %v763
    %v1180 = vmul.f32 %v892, %v764
    %v1181 = vmul.f32 %v893, %v765
    %v1182 = vmul.f32 %v894, %v766
    %v1183 = vmul.f32 %v895, %v767
    %v1184 = vmul.f32 %v896, %v768
    %v1185 = vmul.f32 %v897, %v769
    %v1186 = vmul.f32 %v898, %v770
    %v1187 = vmul.f32 %v899, %v771
    %v1188 = vmul.f32 %v900, %v772
    %v1189 = vmul.f32 %v901, %v773
    %v1190 = vmul.f32 %v902, %v774
    %v1191 = vmul.f32 %v903, %v775
    %v1192 = vmul.f32 %v904, %v776
    %v1193 = vmul.f32 %v905, %v777
    %v1194 = vmul.f32 %v906, %v778
    %v1195 = vmul.f32 %v907, %v779
    %v1196 = vmul.f32 %v908, %v780
    %v1197 = vmul.f32 %v909, %v781
    %v1198 = vmul.f32 %v910, %v782
    %v1199 = vmul.f32 %v911, %v783
    %v1200 = vmul.f32 %v912, %v784
    %v1201 = vmul.f32 %v913, %v785
    %v1202 = vmul.f32 %v914, %v786
    %v1203 = vmul.f32 %v915, %v787
    %v1204 = vmul.f32 %v916, %v788
    %v1205 = vmul.f32 %v917, %v789
    %v1206 = vmul.f32 %v918, %v790
    %v1207 = vmul.f32 %v919, %v791
    %v1208 = vmul.f32 %v920, %v792
    %v1209 = vmul.f32 %v921, %v793
    %v1210 = vmul.f32 %v922, %v794
    %v1211 = vmul.f32 %v923, %v795
    %v1212 = vmul.f32 %v924, %v796
    %v1213 = vmul.f32 %v925, %v797
    %v1214 = vmul.f32 %v926, %v798
    %v1215 = vmul.f32 %v927, %v799
    %v1216 = vmul.f32 %v928, %v800
    %v1217 = vmul.f32 %v929, %v801
    %v1218 = vmul.f32 %v930, %v802
    %v1219 = vadd.f32 %v1091, %v1092
    %v1220 = vadd.f32 %v1219, %v1093
    %v1221 = vadd.f32 %v1220, %v1094
    %v1222 = vadd.f32 %v1221, %v1095
    %v1223 = vadd.f32 %v1222, %v1096
    %v1224 = vadd.f32 %v1223, %v1097
    %v1225 = vadd.f32 %v1224, %v1098
    %1226 = vadd.xlane.f32.xlu0 %v1225
    %v1227 = vpop.xlane.xlu0 %1226
    %v1228 = vadd.f32 %v1099, %v1100
    %v1229 = vadd.f32 %v1228, %v1101
    %v1230 = vadd.f32 %v1229, %v1102
    %v1231 = vadd.f32 %v1230, %v1103
    %v1232 = vadd.f32 %v1231, %v1104
    %v1233 = vadd.f32 %v1232, %v1105
    %v1234 = vadd.f32 %v1233, %v1106
    %1235 = vadd.xlane.f32.xlu0 %v1234
    %v1236 = vpop.xlane.xlu0 %1235
    %v1237 = vadd.f32 %v1107, %v1108
    %v1238 = vadd.f32 %v1237, %v1109
    %v1239 = vadd.f32 %v1238, %v1110
    %v1240 = vadd.f32 %v1239, %v1111
    %v1241 = vadd.f32 %v1240, %v1112
    %v1242 = vadd.f32 %v1241, %v1113
    %v1243 = vadd.f32 %v1242, %v1114
    %1244 = vadd.xlane.f32.xlu0 %v1243
    %v1245 = vpop.xlane.xlu0 %1244
    %v1246 = vadd.f32 %v1115, %v1116
    %v1247 = vadd.f32 %v1246, %v1117
    %v1248 = vadd.f32 %v1247, %v1118
    %v1249 = vadd.f32 %v1248, %v1119
    %v1250 = vadd.f32 %v1249, %v1120
    %v1251 = vadd.f32 %v1250, %v1121
    %v1252 = vadd.f32 %v1251, %v1122
    %1253 = vadd.xlane.f32.xlu0 %v1252
    %v1254 = vpop.xlane.xlu0 %1253
    %v1255 = vadd.f32 %v1123, %v1124
    %v1256 = vadd.f32 %v1255, %v1125
    %v1257 = vadd.f32 %v1256, %v1126
    %v1258 = vadd.f32 %v1257, %v1127
    %v1259 = vadd.f32 %v1258, %v1128
    %v1260 = vadd.f32 %v1259, %v1129
    %v1261 = vadd.f32 %v1260, %v1130
    %1262 = vadd.xlane.f32.xlu0 %v1261
    %v1263 = vpop.xlane.xlu0 %1262
    %v1264 = vadd.f32 %v1131, %v1132
    %v1265 = vadd.f32 %v1264, %v1133
    %v1266 = vadd.f32 %v1265, %v1134
    %v1267 = vadd.f32 %v1266, %v1135
    %v1268 = vadd.f32 %v1267, %v1136
    %v1269 = vadd.f32 %v1268, %v1137
    %v1270 = vadd.f32 %v1269, %v1138
    %1271 = vadd.xlane.f32.xlu0 %v1270
    %v1272 = vpop.xlane.xlu0 %1271
    %v1273 = vadd.f32 %v1139, %v1140
    %v1274 = vadd.f32 %v1273, %v1141
    %v1275 = vadd.f32 %v1274, %v1142
    %v1276 = vadd.f32 %v1275, %v1143
    %v1277 = vadd.f32 %v1276, %v1144
    %v1278 = vadd.f32 %v1277, %v1145
    %v1279 = vadd.f32 %v1278, %v1146
    %1280 = vadd.xlane.f32.xlu0 %v1279
    %v1281 = vpop.xlane.xlu0 %1280
    %v1282 = vadd.f32 %v1147, %v1148
    %v1283 = vadd.f32 %v1282, %v1149
    %v1284 = vadd.f32 %v1283, %v1150
    %v1285 = vadd.f32 %v1284, %v1151
    %v1286 = vadd.f32 %v1285, %v1152
    %v1287 = vadd.f32 %v1286, %v1153
    %v1288 = vadd.f32 %v1287, %v1154
    %1289 = vadd.xlane.f32.xlu0 %v1288
    %v1290 = vpop.xlane.xlu0 %1289
    %v1291 = vadd.f32 %v1155, %v1156
    %v1292 = vadd.f32 %v1291, %v1157
    %v1293 = vadd.f32 %v1292, %v1158
    %v1294 = vadd.f32 %v1293, %v1159
    %v1295 = vadd.f32 %v1294, %v1160
    %v1296 = vadd.f32 %v1295, %v1161
    %v1297 = vadd.f32 %v1296, %v1162
    %1298 = vadd.xlane.f32.xlu0 %v1297
    %v1299 = vpop.xlane.xlu0 %1298
    %v1300 = vadd.f32 %v1163, %v1164
    %v1301 = vadd.f32 %v1300, %v1165
    %v1302 = vadd.f32 %v1301, %v1166
    %v1303 = vadd.f32 %v1302, %v1167
    %v1304 = vadd.f32 %v1303, %v1168
    %v1305 = vadd.f32 %v1304, %v1169
    %v1306 = vadd.f32 %v1305, %v1170
    %1307 = vadd.xlane.f32.xlu0 %v1306
    %v1308 = vpop.xlane.xlu0 %1307
    %v1309 = vadd.f32 %v1171, %v1172
    %v1310 = vadd.f32 %v1309, %v1173
    %v1311 = vadd.f32 %v1310, %v1174
    %v1312 = vadd.f32 %v1311, %v1175
    %v1313 = vadd.f32 %v1312, %v1176
    %v1314 = vadd.f32 %v1313, %v1177
    %v1315 = vadd.f32 %v1314, %v1178
    %1316 = vadd.xlane.f32.xlu0 %v1315
    %v1317 = vpop.xlane.xlu0 %1316
    %v1318 = vadd.f32 %v1179, %v1180
    %v1319 = vadd.f32 %v1318, %v1181
    %v1320 = vadd.f32 %v1319, %v1182
    %v1321 = vadd.f32 %v1320, %v1183
    %v1322 = vadd.f32 %v1321, %v1184
    %v1323 = vadd.f32 %v1322, %v1185
    %v1324 = vadd.f32 %v1323, %v1186
    %1325 = vadd.xlane.f32.xlu0 %v1324
    %v1326 = vpop.xlane.xlu0 %1325
    %v1327 = vadd.f32 %v1187, %v1188
    %v1328 = vadd.f32 %v1327, %v1189
    %v1329 = vadd.f32 %v1328, %v1190
    %v1330 = vadd.f32 %v1329, %v1191
    %v1331 = vadd.f32 %v1330, %v1192
    %v1332 = vadd.f32 %v1331, %v1193
    %v1333 = vadd.f32 %v1332, %v1194
    %1334 = vadd.xlane.f32.xlu0 %v1333
    %v1335 = vpop.xlane.xlu0 %1334
    %v1336 = vadd.f32 %v1195, %v1196
    %v1337 = vadd.f32 %v1336, %v1197
    %v1338 = vadd.f32 %v1337, %v1198
    %v1339 = vadd.f32 %v1338, %v1199
    %v1340 = vadd.f32 %v1339, %v1200
    %v1341 = vadd.f32 %v1340, %v1201
    %v1342 = vadd.f32 %v1341, %v1202
    %1343 = vadd.xlane.f32.xlu0 %v1342
    %v1344 = vpop.xlane.xlu0 %1343
    %v1345 = vadd.f32 %v1203, %v1204
    %v1346 = vadd.f32 %v1345, %v1205
    %v1347 = vadd.f32 %v1346, %v1206
    %v1348 = vadd.f32 %v1347, %v1207
    %v1349 = vadd.f32 %v1348, %v1208
    %v1350 = vadd.f32 %v1349, %v1209
    %v1351 = vadd.f32 %v1350, %v1210
    %1352 = vadd.xlane.f32.xlu0 %v1351
    %v1353 = vpop.xlane.xlu0 %1352
    %v1354 = vadd.f32 %v1211, %v1212
    %v1355 = vadd.f32 %v1354, %v1213
    %v1356 = vadd.f32 %v1355, %v1214
    %v1357 = vadd.f32 %v1356, %v1215
    %v1358 = vadd.f32 %v1357, %v1216
    %v1359 = vadd.f32 %v1358, %v1217
    %v1360 = vadd.f32 %v1359, %v1218
    %1361 = vadd.xlane.f32.xlu0 %v1360
    %v1362 = vpop.xlane.xlu0 %1361
    %v1363 = vmul.f32 %v1227, 0.001
    %v1364 = vmul.f32 %v1236, 0.001
    %v1365 = vmul.f32 %v1245, 0.001
    %v1366 = vmul.f32 %v1254, 0.001
    %v1367 = vmul.f32 %v1263, 0.001
    %v1368 = vmul.f32 %v1272, 0.001
    %v1369 = vmul.f32 %v1281, 0.001
    %v1370 = vmul.f32 %v1290, 0.001
    %v1371 = vmul.f32 %v1299, 0.001
    %v1372 = vmul.f32 %v1308, 0.001
    %v1373 = vmul.f32 %v1317, 0.001
    %v1374 = vmul.f32 %v1326, 0.001
    %v1375 = vmul.f32 %v1335, 0.001
    %v1376 = vmul.f32 %v1344, 0.001
    %v1377 = vmul.f32 %v1353, 0.001
    %v1378 = vmul.f32 %v1362, 0.001
    %v1379 = vmul.f32 %v1075, %v1075
    %v1380 = vmul.f32 %v1076, %v1076
    %v1381 = vmul.f32 %v1077, %v1077
    %v1382 = vmul.f32 %v1078, %v1078
    %v1383 = vmul.f32 %v1079, %v1079
    %v1384 = vmul.f32 %v1080, %v1080
    %v1385 = vmul.f32 %v1081, %v1081
    %v1386 = vmul.f32 %v1082, %v1082
    %v1387 = vmul.f32 %v1083, %v1083
    %v1388 = vmul.f32 %v1084, %v1084
    %v1389 = vmul.f32 %v1085, %v1085
    %v1390 = vmul.f32 %v1086, %v1086
    %v1391 = vmul.f32 %v1087, %v1087
    %v1392 = vmul.f32 %v1088, %v1088
    %v1393 = vmul.f32 %v1089, %v1089
    %v1394 = vmul.f32 %v1090, %v1090
    %v1395 = vsub.f32 %v1363, %v1379
    %v1396 = vsub.f32 %v1364, %v1380
    %v1397 = vsub.f32 %v1365, %v1381
    %v1398 = vsub.f32 %v1366, %v1382
    %v1399 = vsub.f32 %v1367, %v1383
    %v1400 = vsub.f32 %v1368, %v1384
    %v1401 = vsub.f32 %v1369, %v1385
    %v1402 = vsub.f32 %v1370, %v1386
    %v1403 = vsub.f32 %v1371, %v1387
    %v1404 = vsub.f32 %v1372, %v1388
    %v1405 = vsub.f32 %v1373, %v1389
    %v1406 = vsub.f32 %v1374, %v1390
    %v1407 = vsub.f32 %v1375, %v1391
    %v1408 = vsub.f32 %v1376, %v1392
    %v1409 = vsub.f32 %v1377, %v1393
    %v1410 = vsub.f32 %v1378, %v1394
    %v1411 = vmax.f32 %v1395, 0.0
    %v1412 = vmax.f32 %v1396, 0.0
    %v1413 = vmax.f32 %v1397, 0.0
    %v1414 = vmax.f32 %v1398, 0.0
    %v1415 = vmax.f32 %v1399, 0.0
    %v1416 = vmax.f32 %v1400, 0.0
    %v1417 = vmax.f32 %v1401, 0.0
    %v1418 = vmax.f32 %v1402, 0.0
    %v1419 = vmax.f32 %v1403, 0.0
    %v1420 = vmax.f32 %v1404, 0.0
    %v1421 = vmax.f32 %v1405, 0.0
    %v1422 = vmax.f32 %v1406, 0.0
    %v1423 = vmax.f32 %v1407, 0.0
    %v1424 = vmax.f32 %v1408, 0.0
    %v1425 = vmax.f32 %v1409, 0.0
    %v1426 = vmax.f32 %v1410, 0.0
    %v1427 = vld [vmem:[%s7] sm:$0xff]
    %v1428 = vld [vmem:[%s7 + $0x8] sm:$0xff]
    %v1429 = vld [vmem:[%s7 + $0x10] sm:$0xff]
    %v1430 = vld [vmem:[%s7 + $0x18] sm:$0xff]
    %v1431 = vld [vmem:[%s7 + $0x20] sm:$0xff]
    %v1432 = vld [vmem:[%s7 + $0x28] sm:$0xff]
    %v1433 = vld [vmem:[%s7 + $0x30] sm:$0xff]
    %v1434 = vld [vmem:[%s7 + $0x38] sm:$0xff]
    %v1435 = vld [vmem:[%s7 + $0x40] sm:$0xff]
    %v1436 = vld [vmem:[%s7 + $0x48] sm:$0xff]
    %v1437 = vld [vmem:[%s7 + $0x50] sm:$0xff]
    %v1438 = vld [vmem:[%s7 + $0x58] sm:$0xff]
    %v1439 = vld [vmem:[%s7 + $0x60] sm:$0xff]
    %v1440 = vld [vmem:[%s7 + $0x68] sm:$0xff]
    %v1441 = vld [vmem:[%s7 + $0x70] sm:$0xff]
    %v1442 = vld [vmem:[%s7 + $0x78] sm:$0xff]
    %v1443 = vadd.f32 %v1411, 1e-05
    %v1444 = vadd.f32 %v1412, 1e-05
    %v1445 = vadd.f32 %v1413, 1e-05
    %v1446 = vadd.f32 %v1414, 1e-05
    %v1447 = vadd.f32 %v1415, 1e-05
    %v1448 = vadd.f32 %v1416, 1e-05
    %v1449 = vadd.f32 %v1417, 1e-05
    %v1450 = vadd.f32 %v1418, 1e-05
    %v1451 = vadd.f32 %v1419, 1e-05
    %v1452 = vadd.f32 %v1420, 1e-05
    %v1453 = vadd.f32 %v1421, 1e-05
    %v1454 = vadd.f32 %v1422, 1e-05
    %v1455 = vadd.f32 %v1423, 1e-05
    %v1456 = vadd.f32 %v1424, 1e-05
    %v1457 = vadd.f32 %v1425, 1e-05
    %v1458 = vadd.f32 %v1426, 1e-05
    %v1459 = vrsqrt.pop %v1443
    %v1460 = vrsqrt.pop %v1444
    %v1461 = vrsqrt.pop %v1445
    %v1462 = vrsqrt.pop %v1446
    %v1463 = vrsqrt.pop %v1447
    %v1464 = vrsqrt.pop %v1448
    %v1465 = vrsqrt.pop %v1449
    %v1466 = vrsqrt.pop %v1450
    %v1467 = vrsqrt.pop %v1451
    %v1468 = vrsqrt.pop %v1452
    %v1469 = vrsqrt.pop %v1453
    %v1470 = vrsqrt.pop %v1454
    %v1471 = vrsqrt.pop %v1455
    %v1472 = vrsqrt.pop %v1456
    %v1473 = vrsqrt.pop %v1457
    %v1474 = vrsqrt.pop %v1458
    %v1475 = vmul.f32 %v1427, %v1459
    %v1476 = vmul.f32 %v1428, %v1460
    %v1477 = vmul.f32 %v1429, %v1461
    %v1478 = vmul.f32 %v1430, %v1462
    %v1479 = vmul.f32 %v1431, %v1463
    %v1480 = vmul.f32 %v1432, %v1464
    %v1481 = vmul.f32 %v1433, %v1465
    %v1482 = vmul.f32 %v1434, %v1466
    %v1483 = vmul.f32 %v1435, %v1467
    %v1484 = vmul.f32 %v1436, %v1468
    %v1485 = vmul.f32 %v1437, %v1469
    %v1486 = vmul.f32 %v1438, %v1470
    %v1487 = vmul.f32 %v1439, %v1471
    %v1488 = vmul.f32 %v1440, %v1472
    %v1489 = vmul.f32 %v1441, %v1473
    %v1490 = vmul.f32 %v1442, %v1474
    %v1491 = vld [vmem:[%s8] sm:$0xff]
    %v1492 = vld [vmem:[%s8 + $0x8] sm:$0xff]
    %v1493 = vld [vmem:[%s8 + $0x10] sm:$0xff]
    %v1494 = vld [vmem:[%s8 + $0x18] sm:$0xff]
    %v1495 = vld [vmem:[%s8 + $0x20] sm:$0xff]
    %v1496 = vld [vmem:[%s8 + $0x28] sm:$0xff]
    %v1497 = vld [vmem:[%s8 + $0x30] sm:$0xff]
    %v1498 = vld [vmem:[%s8 + $0x38] sm:$0xff]
    %v1499 = vld [vmem:[%s8 + $0x40] sm:$0xff]
    %v1500 = vld [vmem:[%s8 + $0x48] sm:$0xff]
    %v1501 = vld [vmem:[%s8 + $0x50] sm:$0xff]
    %v1502 = vld [vmem:[%s8 + $0x58] sm:$0xff]
    %v1503 = vld [vmem:[%s8 + $0x60] sm:$0xff]
    %v1504 = vld [vmem:[%s8 + $0x68] sm:$0xff]
    %v1505 = vld [vmem:[%s8 + $0x70] sm:$0xff]
    %v1506 = vld [vmem:[%s8 + $0x78] sm:$0xff]
    %v1507 = vmul.f32 %v1075, %v1475
    %v1508 = vmul.f32 %v1076, %v1476
    %v1509 = vmul.f32 %v1077, %v1477
    %v1510 = vmul.f32 %v1078, %v1478
    %v1511 = vmul.f32 %v1079, %v1479
    %v1512 = vmul.f32 %v1080, %v1480
    %v1513 = vmul.f32 %v1081, %v1481
    %v1514 = vmul.f32 %v1082, %v1482
    %v1515 = vmul.f32 %v1083, %v1483
    %v1516 = vmul.f32 %v1084, %v1484
    %v1517 = vmul.f32 %v1085, %v1485
    %v1518 = vmul.f32 %v1086, %v1486
    %v1519 = vmul.f32 %v1087, %v1487
    %v1520 = vmul.f32 %v1088, %v1488
    %v1521 = vmul.f32 %v1089, %v1489
    %v1522 = vmul.f32 %v1090, %v1490
    %v1523 = vsub.f32 %v1491, %v1507
    %v1524 = vsub.f32 %v1492, %v1508
    %v1525 = vsub.f32 %v1493, %v1509
    %v1526 = vsub.f32 %v1494, %v1510
    %v1527 = vsub.f32 %v1495, %v1511
    %v1528 = vsub.f32 %v1496, %v1512
    %v1529 = vsub.f32 %v1497, %v1513
    %v1530 = vsub.f32 %v1498, %v1514
    %v1531 = vsub.f32 %v1499, %v1515
    %v1532 = vsub.f32 %v1500, %v1516
    %v1533 = vsub.f32 %v1501, %v1517
    %v1534 = vsub.f32 %v1502, %v1518
    %v1535 = vsub.f32 %v1503, %v1519
    %v1536 = vsub.f32 %v1504, %v1520
    %v1537 = vsub.f32 %v1505, %v1521
    %v1538 = vsub.f32 %v1506, %v1522
    %1540 = vset.pattern.permute.xlu0 0
    %1541 = vperm.xlu0 %1540, %v1475
    %v1542 = vpop.permute.xlu0 %1541
    %1545 = vset.pattern.permute.xlu0 0
    %1546 = vperm.xlu0 %1545, %v1476
    %v1547 = vpop.permute.xlu0 %1546
    %1550 = vset.pattern.permute.xlu0 0
    %1551 = vperm.xlu0 %1550, %v1477
    %v1552 = vpop.permute.xlu0 %1551
    %1555 = vset.pattern.permute.xlu0 0
    %1556 = vperm.xlu0 %1555, %v1478
    %v1557 = vpop.permute.xlu0 %1556
    %1560 = vset.pattern.permute.xlu0 0
    %1561 = vperm.xlu0 %1560, %v1479
    %v1562 = vpop.permute.xlu0 %1561
    %1565 = vset.pattern.permute.xlu0 0
    %1566 = vperm.xlu0 %1565, %v1480
    %v1567 = vpop.permute.xlu0 %1566
    %1570 = vset.pattern.permute.xlu0 0
    %1571 = vperm.xlu0 %1570, %v1481
    %v1572 = vpop.permute.xlu0 %1571
    %1575 = vset.pattern.permute.xlu0 0
    %1576 = vperm.xlu0 %1575, %v1482
    %v1577 = vpop.permute.xlu0 %1576
    %1580 = vset.pattern.permute.xlu0 0
    %1581 = vperm.xlu0 %1580, %v1483
    %v1582 = vpop.permute.xlu0 %1581
    %1585 = vset.pattern.permute.xlu0 0
    %1586 = vperm.xlu0 %1585, %v1484
    %v1587 = vpop.permute.xlu0 %1586
    %1590 = vset.pattern.permute.xlu0 0
    %1591 = vperm.xlu0 %1590, %v1485
    %v1592 = vpop.permute.xlu0 %1591
    %1595 = vset.pattern.permute.xlu0 0
    %1596 = vperm.xlu0 %1595, %v1486
    %v1597 = vpop.permute.xlu0 %1596
    %1600 = vset.pattern.permute.xlu0 0
    %1601 = vperm.xlu0 %1600, %v1487
    %v1602 = vpop.permute.xlu0 %1601
    %1605 = vset.pattern.permute.xlu0 0
    %1606 = vperm.xlu0 %1605, %v1488
    %v1607 = vpop.permute.xlu0 %1606
    %1610 = vset.pattern.permute.xlu0 0
    %1611 = vperm.xlu0 %1610, %v1489
    %v1612 = vpop.permute.xlu0 %1611
    %1615 = vset.pattern.permute.xlu0 0
    %1616 = vperm.xlu0 %1615, %v1490
    %v1617 = vpop.permute.xlu0 %1616
    %v1619 = vmul.f32 %v675, %v1542
    %v1620 = vmul.f32 %v676, %v1542
    %v1621 = vmul.f32 %v677, %v1542
    %v1622 = vmul.f32 %v678, %v1542
    %v1623 = vmul.f32 %v679, %v1542
    %v1624 = vmul.f32 %v680, %v1542
    %v1625 = vmul.f32 %v681, %v1542
    %v1626 = vmul.f32 %v682, %v1542
    %v1627 = vmul.f32 %v683, %v1547
    %v1628 = vmul.f32 %v684, %v1547
    %v1629 = vmul.f32 %v685, %v1547
    %v1630 = vmul.f32 %v686, %v1547
    %v1631 = vmul.f32 %v687, %v1547
    %v1632 = vmul.f32 %v688, %v1547
    %v1633 = vmul.f32 %v689, %v1547
    %v1634 = vmul.f32 %v690, %v1547
    %v1635 = vmul.f32 %v691, %v1552
    %v1636 = vmul.f32 %v692, %v1552
    %v1637 = vmul.f32 %v693, %v1552
    %v1638 = vmul.f32 %v694, %v1552
    %v1639 = vmul.f32 %v695, %v1552
    %v1640 = vmul.f32 %v696, %v1552
    %v1641 = vmul.f32 %v697, %v1552
    %v1642 = vmul.f32 %v698, %v1552
    %v1643 = vmul.f32 %v699, %v1557
    %v1644 = vmul.f32 %v700, %v1557
    %v1645 = vmul.f32 %v701, %v1557
    %v1646 = vmul.f32 %v702, %v1557
    %v1647 = vmul.f32 %v703, %v1557
    %v1648 = vmul.f32 %v704, %v1557
    %v1649 = vmul.f32 %v705, %v1557
    %v1650 = vmul.f32 %v706, %v1557
    %v1651 = vmul.f32 %v707, %v1562
    %v1652 = vmul.f32 %v708, %v1562
    %v1653 = vmul.f32 %v709, %v1562
    %v1654 = vmul.f32 %v710, %v1562
    %v1655 = vmul.f32 %v711, %v1562
    %v1656 = vmul.f32 %v712, %v1562
    %v1657 = vmul.f32 %v713, %v1562
    %v1658 = vmul.f32 %v714, %v1562
    %v1659 = vmul.f32 %v715, %v1567
    %v1660 = vmul.f32 %v716, %v1567
    %v1661 = vmul.f32 %v717, %v1567
    %v1662 = vmul.f32 %v718, %v1567
    %v1663 = vmul.f32 %v719, %v1567
    %v1664 = vmul.f32 %v720, %v1567
    %v1665 = vmul.f32 %v721, %v1567
    %v1666 = vmul.f32 %v722, %v1567
    %v1667 = vmul.f32 %v723, %v1572
    %v1668 = vmul.f32 %v724, %v1572
    %v1669 = vmul.f32 %v725, %v1572
    %v1670 = vmul.f32 %v726, %v1572
    %v1671 = vmul.f32 %v727, %v1572
    %v1672 = vmul.f32 %v728, %v1572
    %v1673 = vmul.f32 %v729, %v1572
    %v1674 = vmul.f32 %v730, %v1572
    %v1675 = vmul.f32 %v731, %v1577
    %v1676 = vmul.f32 %v732, %v1577
    %v1677 = vmul.f32 %v733, %v1577
    %v1678 = vmul.f32 %v734, %v1577
    %v1679 = vmul.f32 %v735, %v1577
    %v1680 = vmul.f32 %v736, %v1577
    %v1681 = vmul.f32 %v737, %v1577
    %v1682 = vmul.f32 %v738, %v1577
    %v1683 = vmul.f32 %v739, %v1582
    %v1684 = vmul.f32 %v740, %v1582
    %v1685 = vmul.f32 %v741, %v1582
    %v1686 = vmul.f32 %v742, %v1582
    %v1687 = vmul.f32 %v743, %v1582
    %v1688 = vmul.f32 %v744, %v1582
    %v1689 = vmul.f32 %v745, %v1582
    %v1690 = vmul.f32 %v746, %v1582
    %v1691 = vmul.f32 %v747, %v1587
    %v1692 = vmul.f32 %v748, %v1587
    %v1693 = vmul.f32 %v749, %v1587
    %v1694 = vmul.f32 %v750, %v1587
    %v1695 = vmul.f32 %v751, %v1587
    %v1696 = vmul.f32 %v752, %v1587
    %v1697 = vmul.f32 %v753, %v1587
    %v1698 = vmul.f32 %v754, %v1587
    %v1699 = vmul.f32 %v755, %v1592
    %v1700 = vmul.f32 %v756, %v1592
    %v1701 = vmul.f32 %v757, %v1592
    %v1702 = vmul.f32 %v758, %v1592
    %v1703 = vmul.f32 %v759, %v1592
    %v1704 = vmul.f32 %v760, %v1592
    %v1705 = vmul.f32 %v761, %v1592
    %v1706 = vmul.f32 %v762, %v1592
    %v1707 = vmul.f32 %v763, %v1597
    %v1708 = vmul.f32 %v764, %v1597
    %v1709 = vmul.f32 %v765, %v1597
    %v1710 = vmul.f32 %v766, %v1597
    %v1711 = vmul.f32 %v767, %v1597
    %v1712 = vmul.f32 %v768, %v1597
    %v1713 = vmul.f32 %v769, %v1597
    %v1714 = vmul.f32 %v770, %v1597
    %v1715 = vmul.f32 %v771, %v1602
    %v1716 = vmul.f32 %v772, %v1602
    %v1717 = vmul.f32 %v773, %v1602
    %v1718 = vmul.f32 %v774, %v1602
    %v1719 = vmul.f32 %v775, %v1602
    %v1720 = vmul.f32 %v776, %v1602
    %v1721 = vmul.f32 %v777, %v1602
    %v1722 = vmul.f32 %v778, %v1602
    %v1723 = vmul.f32 %v779, %v1607
    %v1724 = vmul.f32 %v780, %v1607
    %v1725 = vmul.f32 %v781, %v1607
    %v1726 = vmul.f32 %v782, %v1607
    %v1727 = vmul.f32 %v783, %v1607
    %v1728 = vmul.f32 %v784, %v1607
    %v1729 = vmul.f32 %v785, %v1607
    %v1730 = vmul.f32 %v786, %v1607
    %v1731 = vmul.f32 %v787, %v1612
    %v1732 = vmul.f32 %v788, %v1612
    %v1733 = vmul.f32 %v789, %v1612
    %v1734 = vmul.f32 %v790, %v1612
    %v1735 = vmul.f32 %v791, %v1612
    %v1736 = vmul.f32 %v792, %v1612
    %v1737 = vmul.f32 %v793, %v1612
    %v1738 = vmul.f32 %v794, %v1612
    %v1739 = vmul.f32 %v795, %v1617
    %v1740 = vmul.f32 %v796, %v1617
    %v1741 = vmul.f32 %v797, %v1617
    %v1742 = vmul.f32 %v798, %v1617
    %v1743 = vmul.f32 %v799, %v1617
    %v1744 = vmul.f32 %v800, %v1617
    %v1745 = vmul.f32 %v801, %v1617
    %v1746 = vmul.f32 %v802, %v1617
    %1748 = vset.pattern.permute.xlu0 0
    %1749 = vperm.xlu0 %1748, %v1523
    %v1750 = vpop.permute.xlu0 %1749
    %1753 = vset.pattern.permute.xlu0 0
    %1754 = vperm.xlu0 %1753, %v1524
    %v1755 = vpop.permute.xlu0 %1754
    %1758 = vset.pattern.permute.xlu0 0
    %1759 = vperm.xlu0 %1758, %v1525
    %v1760 = vpop.permute.xlu0 %1759
    %1763 = vset.pattern.permute.xlu0 0
    %1764 = vperm.xlu0 %1763, %v1526
    %v1765 = vpop.permute.xlu0 %1764
    %1768 = vset.pattern.permute.xlu0 0
    %1769 = vperm.xlu0 %1768, %v1527
    %v1770 = vpop.permute.xlu0 %1769
    %1773 = vset.pattern.permute.xlu0 0
    %1774 = vperm.xlu0 %1773, %v1528
    %v1775 = vpop.permute.xlu0 %1774
    %1778 = vset.pattern.permute.xlu0 0
    %1779 = vperm.xlu0 %1778, %v1529
    %v1780 = vpop.permute.xlu0 %1779
    %1783 = vset.pattern.permute.xlu0 0
    %1784 = vperm.xlu0 %1783, %v1530
    %v1785 = vpop.permute.xlu0 %1784
    %1788 = vset.pattern.permute.xlu0 0
    %1789 = vperm.xlu0 %1788, %v1531
    %v1790 = vpop.permute.xlu0 %1789
    %1793 = vset.pattern.permute.xlu0 0
    %1794 = vperm.xlu0 %1793, %v1532
    %v1795 = vpop.permute.xlu0 %1794
    %1798 = vset.pattern.permute.xlu0 0
    %1799 = vperm.xlu0 %1798, %v1533
    %v1800 = vpop.permute.xlu0 %1799
    %1803 = vset.pattern.permute.xlu0 0
    %1804 = vperm.xlu0 %1803, %v1534
    %v1805 = vpop.permute.xlu0 %1804
    %1808 = vset.pattern.permute.xlu0 0
    %1809 = vperm.xlu0 %1808, %v1535
    %v1810 = vpop.permute.xlu0 %1809
    %1813 = vset.pattern.permute.xlu0 0
    %1814 = vperm.xlu0 %1813, %v1536
    %v1815 = vpop.permute.xlu0 %1814
    %1818 = vset.pattern.permute.xlu0 0
    %1819 = vperm.xlu0 %1818, %v1537
    %v1820 = vpop.permute.xlu0 %1819
    %1823 = vset.pattern.permute.xlu0 0
    %1824 = vperm.xlu0 %1823, %v1538
    %v1825 = vpop.permute.xlu0 %1824
    %v1827 = vadd.f32 %v1619, %v1750
    %v1828 = vadd.f32 %v1620, %v1750
    %v1829 = vadd.f32 %v1621, %v1750
    %v1830 = vadd.f32 %v1622, %v1750
    %v1831 = vadd.f32 %v1623, %v1750
    %v1832 = vadd.f32 %v1624, %v1750
    %v1833 = vadd.f32 %v1625, %v1750
    %v1834 = vadd.f32 %v1626, %v1750
    %v1835 = vadd.f32 %v1627, %v1755
    %v1836 = vadd.f32 %v1628, %v1755
    %v1837 = vadd.f32 %v1629, %v1755
    %v1838 = vadd.f32 %v1630, %v1755
    %v1839 = vadd.f32 %v1631, %v1755
    %v1840 = vadd.f32 %v1632, %v1755
    %v1841 = vadd.f32 %v1633, %v1755
    %v1842 = vadd.f32 %v1634, %v1755
    %v1843 = vadd.f32 %v1635, %v1760
    %v1844 = vadd.f32 %v1636, %v1760
    %v1845 = vadd.f32 %v1637, %v1760
    %v1846 = vadd.f32 %v1638, %v1760
    %v1847 = vadd.f32 %v1639, %v1760
    %v1848 = vadd.f32 %v1640, %v1760
    %v1849 = vadd.f32 %v1641, %v1760
    %v1850 = vadd.f32 %v1642, %v1760
    %v1851 = vadd.f32 %v1643, %v1765
    %v1852 = vadd.f32 %v1644, %v1765
    %v1853 = vadd.f32 %v1645, %v1765
    %v1854 = vadd.f32 %v1646, %v1765
    %v1855 = vadd.f32 %v1647, %v1765
    %v1856 = vadd.f32 %v1648, %v1765
    %v1857 = vadd.f32 %v1649, %v1765
    %v1858 = vadd.f32 %v1650, %v1765
    %v1859 = vadd.f32 %v1651, %v1770
    %v1860 = vadd.f32 %v1652, %v1770
    %v1861 = vadd.f32 %v1653, %v1770
    %v1862 = vadd.f32 %v1654, %v1770
    %v1863 = vadd.f32 %v1655, %v1770
    %v1864 = vadd.f32 %v1656, %v1770
    %v1865 = vadd.f32 %v1657, %v1770
    %v1866 = vadd.f32 %v1658, %v1770
    %v1867 = vadd.f32 %v1659, %v1775
    %v1868 = vadd.f32 %v1660, %v1775
    %v1869 = vadd.f32 %v1661, %v1775
    %v1870 = vadd.f32 %v1662, %v1775
    %v1871 = vadd.f32 %v1663, %v1775
    %v1872 = vadd.f32 %v1664, %v1775
    %v1873 = vadd.f32 %v1665, %v1775
    %v1874 = vadd.f32 %v1666, %v1775
    %v1875 = vadd.f32 %v1667, %v1780
    %v1876 = vadd.f32 %v1668, %v1780
    %v1877 = vadd.f32 %v1669, %v1780
    %v1878 = vadd.f32 %v1670, %v1780
    %v1879 = vadd.f32 %v1671, %v1780
    %v1880 = vadd.f32 %v1672, %v1780
    %v1881 = vadd.f32 %v1673, %v1780
    %v1882 = vadd.f32 %v1674, %v1780
    %v1883 = vadd.f32 %v1675, %v1785
    %v1884 = vadd.f32 %v1676, %v1785
    %v1885 = vadd.f32 %v1677, %v1785
    %v1886 = vadd.f32 %v1678, %v1785
    %v1887 = vadd.f32 %v1679, %v1785
    %v1888 = vadd.f32 %v1680, %v1785
    %v1889 = vadd.f32 %v1681, %v1785
    %v1890 = vadd.f32 %v1682, %v1785
    %v1891 = vadd.f32 %v1683, %v1790
    %v1892 = vadd.f32 %v1684, %v1790
    %v1893 = vadd.f32 %v1685, %v1790
    %v1894 = vadd.f32 %v1686, %v1790
    %v1895 = vadd.f32 %v1687, %v1790
    %v1896 = vadd.f32 %v1688, %v1790
    %v1897 = vadd.f32 %v1689, %v1790
    %v1898 = vadd.f32 %v1690, %v1790
    %v1899 = vadd.f32 %v1691, %v1795
    %v1900 = vadd.f32 %v1692, %v1795
    %v1901 = vadd.f32 %v1693, %v1795
    %v1902 = vadd.f32 %v1694, %v1795
    %v1903 = vadd.f32 %v1695, %v1795
    %v1904 = vadd.f32 %v1696, %v1795
    %v1905 = vadd.f32 %v1697, %v1795
    %v1906 = vadd.f32 %v1698, %v1795
    %v1907 = vadd.f32 %v1699, %v1800
    %v1908 = vadd.f32 %v1700, %v1800
    %v1909 = vadd.f32 %v1701, %v1800
    %v1910 = vadd.f32 %v1702, %v1800
    %v1911 = vadd.f32 %v1703, %v1800
    %v1912 = vadd.f32 %v1704, %v1800
    %v1913 = vadd.f32 %v1705, %v1800
    %v1914 = vadd.f32 %v1706, %v1800
    %v1915 = vadd.f32 %v1707, %v1805
    %v1916 = vadd.f32 %v1708, %v1805
    %v1917 = vadd.f32 %v1709, %v1805
    %v1918 = vadd.f32 %v1710, %v1805
    %v1919 = vadd.f32 %v1711, %v1805
    %v1920 = vadd.f32 %v1712, %v1805
    %v1921 = vadd.f32 %v1713, %v1805
    %v1922 = vadd.f32 %v1714, %v1805
    %v1923 = vadd.f32 %v1715, %v1810
    %v1924 = vadd.f32 %v1716, %v1810
    %v1925 = vadd.f32 %v1717, %v1810
    %v1926 = vadd.f32 %v1718, %v1810
    %v1927 = vadd.f32 %v1719, %v1810
    %v1928 = vadd.f32 %v1720, %v1810
    %v1929 = vadd.f32 %v1721, %v1810
    %v1930 = vadd.f32 %v1722, %v1810
    %v1931 = vadd.f32 %v1723, %v1815
    %v1932 = vadd.f32 %v1724, %v1815
    %v1933 = vadd.f32 %v1725, %v1815
    %v1934 = vadd.f32 %v1726, %v1815
    %v1935 = vadd.f32 %v1727, %v1815
    %v1936 = vadd.f32 %v1728, %v1815
    %v1937 = vadd.f32 %v1729, %v1815
    %v1938 = vadd.f32 %v1730, %v1815
    %v1939 = vadd.f32 %v1731, %v1820
    %v1940 = vadd.f32 %v1732, %v1820
    %v1941 = vadd.f32 %v1733, %v1820
    %v1942 = vadd.f32 %v1734, %v1820
    %v1943 = vadd.f32 %v1735, %v1820
    %v1944 = vadd.f32 %v1736, %v1820
    %v1945 = vadd.f32 %v1737, %v1820
    %v1946 = vadd.f32 %v1738, %v1820
    %v1947 = vadd.f32 %v1739, %v1825
    %v1948 = vadd.f32 %v1740, %v1825
    %v1949 = vadd.f32 %v1741, %v1825
    %v1950 = vadd.f32 %v1742, %v1825
    %v1951 = vadd.f32 %v1743, %v1825
    %v1952 = vadd.f32 %v1744, %v1825
    %v1953 = vadd.f32 %v1745, %v1825
    %v1954 = vadd.f32 %v1746, %v1825
    %v1955 = vmax.f32 %v1827, 0.0
    %v1956 = vmax.f32 %v1828, 0.0
    %v1957 = vmax.f32 %v1829, 0.0
    %v1958 = vmax.f32 %v1830, 0.0
    %v1959 = vmax.f32 %v1831, 0.0
    %v1960 = vmax.f32 %v1832, 0.0
    %v1961 = vmax.f32 %v1833, 0.0
    %v1962 = vmax.f32 %v1834, 0.0
    %v1963 = vmax.f32 %v1835, 0.0
    %v1964 = vmax.f32 %v1836, 0.0
    %v1965 = vmax.f32 %v1837, 0.0
    %v1966 = vmax.f32 %v1838, 0.0
    %v1967 = vmax.f32 %v1839, 0.0
    %v1968 = vmax.f32 %v1840, 0.0
    %v1969 = vmax.f32 %v1841, 0.0
    %v1970 = vmax.f32 %v1842, 0.0
    %v1971 = vmax.f32 %v1843, 0.0
    %v1972 = vmax.f32 %v1844, 0.0
    %v1973 = vmax.f32 %v1845, 0.0
    %v1974 = vmax.f32 %v1846, 0.0
    %v1975 = vmax.f32 %v1847, 0.0
    %v1976 = vmax.f32 %v1848, 0.0
    %v1977 = vmax.f32 %v1849, 0.0
    %v1978 = vmax.f32 %v1850, 0.0
    %v1979 = vmax.f32 %v1851, 0.0
    %v1980 = vmax.f32 %v1852, 0.0
    %v1981 = vmax.f32 %v1853, 0.0
    %v1982 = vmax.f32 %v1854, 0.0
    %v1983 = vmax.f32 %v1855, 0.0
    %v1984 = vmax.f32 %v1856, 0.0
    %v1985 = vmax.f32 %v1857, 0.0
    %v1986 = vmax.f32 %v1858, 0.0
    %v1987 = vmax.f32 %v1859, 0.0
    %v1988 = vmax.f32 %v1860, 0.0
    %v1989 = vmax.f32 %v1861, 0.0
    %v1990 = vmax.f32 %v1862, 0.0
    %v1991 = vmax.f32 %v1863, 0.0
    %v1992 = vmax.f32 %v1864, 0.0
    %v1993 = vmax.f32 %v1865, 0.0
    %v1994 = vmax.f32 %v1866, 0.0
    %v1995 = vmax.f32 %v1867, 0.0
    %v1996 = vmax.f32 %v1868, 0.0
    %v1997 = vmax.f32 %v1869, 0.0
    %v1998 = vmax.f32 %v1870, 0.0
    %v1999 = vmax.f32 %v1871, 0.0
    %v2000 = vmax.f32 %v1872, 0.0
    %v2001 = vmax.f32 %v1873, 0.0
    %v2002 = vmax.f32 %v1874, 0.0
    %v2003 = vmax.f32 %v1875, 0.0
    %v2004 = vmax.f32 %v1876, 0.0
    %v2005 = vmax.f32 %v1877, 0.0
    %v2006 = vmax.f32 %v1878, 0.0
    %v2007 = vmax.f32 %v1879, 0.0
    %v2008 = vmax.f32 %v1880, 0.0
    %v2009 = vmax.f32 %v1881, 0.0
    %v2010 = vmax.f32 %v1882, 0.0
    %v2011 = vmax.f32 %v1883, 0.0
    %v2012 = vmax.f32 %v1884, 0.0
    %v2013 = vmax.f32 %v1885, 0.0
    %v2014 = vmax.f32 %v1886, 0.0
    %v2015 = vmax.f32 %v1887, 0.0
    %v2016 = vmax.f32 %v1888, 0.0
    %v2017 = vmax.f32 %v1889, 0.0
    %v2018 = vmax.f32 %v1890, 0.0
    %v2019 = vmax.f32 %v1891, 0.0
    %v2020 = vmax.f32 %v1892, 0.0
    %v2021 = vmax.f32 %v1893, 0.0
    %v2022 = vmax.f32 %v1894, 0.0
    %v2023 = vmax.f32 %v1895, 0.0
    %v2024 = vmax.f32 %v1896, 0.0
    %v2025 = vmax.f32 %v1897, 0.0
    %v2026 = vmax.f32 %v1898, 0.0
    %v2027 = vmax.f32 %v1899, 0.0
    %v2028 = vmax.f32 %v1900, 0.0
    %v2029 = vmax.f32 %v1901, 0.0
    %v2030 = vmax.f32 %v1902, 0.0
    %v2031 = vmax.f32 %v1903, 0.0
    %v2032 = vmax.f32 %v1904, 0.0
    %v2033 = vmax.f32 %v1905, 0.0
    %v2034 = vmax.f32 %v1906, 0.0
    %v2035 = vmax.f32 %v1907, 0.0
    %v2036 = vmax.f32 %v1908, 0.0
    %v2037 = vmax.f32 %v1909, 0.0
    %v2038 = vmax.f32 %v1910, 0.0
    %v2039 = vmax.f32 %v1911, 0.0
    %v2040 = vmax.f32 %v1912, 0.0
    %v2041 = vmax.f32 %v1913, 0.0
    %v2042 = vmax.f32 %v1914, 0.0
    %v2043 = vmax.f32 %v1915, 0.0
    %v2044 = vmax.f32 %v1916, 0.0
    %v2045 = vmax.f32 %v1917, 0.0
    %v2046 = vmax.f32 %v1918, 0.0
    %v2047 = vmax.f32 %v1919, 0.0
    %v2048 = vmax.f32 %v1920, 0.0
    %v2049 = vmax.f32 %v1921, 0.0
    %v2050 = vmax.f32 %v1922, 0.0
    %v2051 = vmax.f32 %v1923, 0.0
    %v2052 = vmax.f32 %v1924, 0.0
    %v2053 = vmax.f32 %v1925, 0.0
    %v2054 = vmax.f32 %v1926, 0.0
    %v2055 = vmax.f32 %v1927, 0.0
    %v2056 = vmax.f32 %v1928, 0.0
    %v2057 = vmax.f32 %v1929, 0.0
    %v2058 = vmax.f32 %v1930, 0.0
    %v2059 = vmax.f32 %v1931, 0.0
    %v2060 = vmax.f32 %v1932, 0.0
    %v2061 = vmax.f32 %v1933, 0.0
    %v2062 = vmax.f32 %v1934, 0.0
    %v2063 = vmax.f32 %v1935, 0.0
    %v2064 = vmax.f32 %v1936, 0.0
    %v2065 = vmax.f32 %v1937, 0.0
    %v2066 = vmax.f32 %v1938, 0.0
    %v2067 = vmax.f32 %v1939, 0.0
    %v2068 = vmax.f32 %v1940, 0.0
    %v2069 = vmax.f32 %v1941, 0.0
    %v2070 = vmax.f32 %v1942, 0.0
    %v2071 = vmax.f32 %v1943, 0.0
    %v2072 = vmax.f32 %v1944, 0.0
    %v2073 = vmax.f32 %v1945, 0.0
    %v2074 = vmax.f32 %v1946, 0.0
    %v2075 = vmax.f32 %v1947, 0.0
    %v2076 = vmax.f32 %v1948, 0.0
    %v2077 = vmax.f32 %v1949, 0.0
    %v2078 = vmax.f32 %v1950, 0.0
    %v2079 = vmax.f32 %v1951, 0.0
    %v2080 = vmax.f32 %v1952, 0.0
    %v2081 = vmax.f32 %v1953, 0.0
    %v2082 = vmax.f32 %v1954, 0.0
    %v2083 = vld [vmem:[%s3] sm:$0xff]
    %v2084 = vld [vmem:[%s3 + $0x8] sm:$0xff]
    %v2085 = vld [vmem:[%s3 + $0x10] sm:$0xff]
    %v2086 = vld [vmem:[%s3 + $0x18] sm:$0xff]
    %v2087 = vld [vmem:[%s3 + $0x20] sm:$0xff]
    %v2088 = vld [vmem:[%s3 + $0x28] sm:$0xff]
    %v2089 = vld [vmem:[%s3 + $0x30] sm:$0xff]
    %v2090 = vld [vmem:[%s3 + $0x38] sm:$0xff]
    %2091 = vmatprep.subr.mxu0 %v1956
    %2092 = vmatpush1.msra.mxu0 %v1955
    %2093 = vmatprep.subr.mxu0 %v1964
    %2094 = vmatpush1.msra.mxu0 %v1963
    %2095 = vmatprep.subr.mxu0 %v1972
    %2096 = vmatpush1.msra.mxu0 %v1971
    %2097 = vmatprep.subr.mxu0 %v1980
    %2098 = vmatpush1.msra.mxu0 %v1979
    %2099 = vmatprep.subr.mxu0 %v1988
    %2100 = vmatpush1.msra.mxu0 %v1987
    %2101 = vmatprep.subr.mxu0 %v1996
    %2102 = vmatpush1.msra.mxu0 %v1995
    %2103 = vmatprep.subr.mxu0 %v2004
    %2104 = vmatpush1.msra.mxu0 %v2003
    %2105 = vmatprep.subr.mxu0 %v2012
    %2106 = vmatpush1.msra.mxu0 %v2011
    %2107 = vmatprep.subr.mxu0 %v2020
    %2108 = vmatpush1.msra.mxu0 %v2019
    %2109 = vmatprep.subr.mxu0 %v2028
    %2110 = vmatpush1.msra.mxu0 %v2027
    %2111 = vmatprep.subr.mxu0 %v2036
    %2112 = vmatpush1.msra.mxu0 %v2035
    %2113 = vmatprep.subr.mxu0 %v2044
    %2114 = vmatpush1.msra.mxu0 %v2043
    %2115 = vmatprep.subr.mxu0 %v2052
    %2116 = vmatpush1.msra.mxu0 %v2051
    %2117 = vmatprep.subr.mxu0 %v2060
    %2118 = vmatpush1.msra.mxu0 %v2059
    %2119 = vmatprep.subr.mxu0 %v2068
    %2120 = vmatpush1.msra.mxu0 %v2067
    %2121 = vmatprep.subr.mxu0 %v2076
    %2122 = vmatpush1.msra.mxu0 %v2075
    %2123 = vmatprep.subr.mxu0 0.0
    %2124 = vmatpush1.msra.mxu0 0.0
    %2125 = vmatprep.subr.mxu0 0.0
    %2126 = vmatpush1.msra.mxu0 0.0
    %2127 = vmatprep.subr.mxu0 0.0
    %2128 = vmatpush1.msra.mxu0 0.0
    %2129 = vmatprep.subr.mxu0 0.0
    %2130 = vmatpush1.msra.mxu0 0.0
    %2131 = vmatprep.subr.mxu0 0.0
    %2132 = vmatpush1.msra.mxu0 0.0
    %2133 = vmatprep.subr.mxu0 0.0
    %2134 = vmatpush1.msra.mxu0 0.0
    %2135 = vmatprep.subr.mxu0 0.0
    %2136 = vmatpush1.msra.mxu0 0.0
    %2137 = vmatprep.subr.mxu0 0.0
    %2138 = vmatpush1.msra.mxu0 0.0
    %2139 = vmatprep.subr.mxu0 0.0
    %2140 = vmatpush1.msra.mxu0 0.0
    %2141 = vmatprep.subr.mxu0 0.0
    %2142 = vmatpush1.msra.mxu0 0.0
    %2143 = vmatprep.subr.mxu0 0.0
    %2144 = vmatpush1.msra.mxu0 0.0
    %2145 = vmatprep.subr.mxu0 0.0
    %2146 = vmatpush1.msra.mxu0 0.0
    %2147 = vmatprep.subr.mxu0 0.0
    %2148 = vmatpush1.msra.mxu0 0.0
    %2149 = vmatprep.subr.mxu0 0.0
    %2150 = vmatpush1.msra.mxu0 0.0
    %2151 = vmatprep.subr.mxu0 0.0
    %2152 = vmatpush1.msra.mxu0 0.0
    %2153 = vmatprep.subr.mxu0 0.0
    %2154 = vmatpush1.msra.mxu0 0.0
    %2155 = vmatprep.mubr.f32.mxu0 0.0
    %2156 = vmatmul.mubr.f32.gmra.mrb[0].mxu0 %v2083
    %v2157 = vpop.f32.mrb[0].mxu0
    %v2158 = vadd.f32 0.0, %v2157
    %v2159 = vpop.f32.mrb[0].mxu0
    %v2160 = vadd.f32 0.0, %v2159
    %2161 = vmatprep.mubr.f32.mxu0 0.0
    %2162 = vmatmul.mubr.f32.gmra.mrb[0].mxu0 %v2084
    %v2163 = vpop.f32.mrb[0].mxu0
    %v2164 = vadd.f32 0.0, %v2163
    %v2165 = vpop.f32.mrb[0].mxu0
    %v2166 = vadd.f32 0.0, %v2165
    %2167 = vmatprep.mubr.f32.mxu0 0.0
    %2168 = vmatmul.mubr.f32.gmra.mrb[0].mxu0 %v2085
    %v2169 = vpop.f32.mrb[0].mxu0
    %v2170 = vadd.f32 0.0, %v2169
    %v2171 = vpop.f32.mrb[0].mxu0
    %v2172 = vadd.f32 0.0, %v2171
    %2173 = vmatprep.mubr.f32.mxu0 0.0
    %2174 = vmatmul.mubr.f32.gmra.mrb[0].mxu0 %v2086
    %v2175 = vpop.f32.mrb[0].mxu0
    %v2176 = vadd.f32 0.0, %v2175
    %v2177 = vpop.f32.mrb[0].mxu0
    %v2178 = vadd.f32 0.0, %v2177
    %2179 = vmatprep.mubr.f32.mxu0 0.0
    %2180 = vmatmul.mubr.f32.gmra.mrb[0].mxu0 %v2087
    %v2181 = vpop.f32.mrb[0].mxu0
    %v2182 = vadd.f32 0.0, %v2181
    %v2183 = vpop.f32.mrb[0].mxu0
    %v2184 = vadd.f32 0.0, %v2183
    %2185 = vmatprep.mubr.f32.mxu0 0.0
    %2186 = vmatmul.mubr.f32.gmra.mrb[0].mxu0 %v2088
    %v2187 = vpop.f32.mrb[0].mxu0
    %v2188 = vadd.f32 0.0, %v2187
    %v2189 = vpop.f32.mrb[0].mxu0
    %v2190 = vadd.f32 0.0, %v2189
    %2191 = vmatprep.mubr.f32.mxu0 0.0
    %2192 = vmatmul.mubr.f32.gmra.mrb[0].mxu0 %v2089
    %v2193 = vpop.f32.mrb[0].mxu0
    %v2194 = vadd.f32 0.0, %v2193
    %v2195 = vpop.f32.mrb[0].mxu0
    %v2196 = vadd.f32 0.0, %v2195
    %2197 = vmatprep.mubr.f32.mxu0 0.0
    %2198 = vmatmul.mubr.f32.gmra.mrb[0].mxu0 %v2090
    %v2199 = vpop.f32.mrb[0].mxu0
    %v2200 = vadd.f32 0.0, %v2199
    %v2201 = vpop.f32.mrb[0].mxu0
    %v2202 = vadd.f32 0.0, %v2201
    %2203 = vdwg.mxu0
    %2204 = vmatprep.subr.mxu0 %v1958
    %2205 = vmatpush1.msra.mxu0 %v1957
    %2206 = vmatprep.subr.mxu0 %v1966
    %2207 = vmatpush1.msra.mxu0 %v1965
    %2208 = vmatprep.subr.mxu0 %v1974
    %2209 = vmatpush1.msra.mxu0 %v1973
    %2210 = vmatprep.subr.mxu0 %v1982
    %2211 = vmatpush1.msra.mxu0 %v1981
    %2212 = vmatprep.subr.mxu0 %v1990
    %2213 = vmatpush1.msra.mxu0 %v1989
    %2214 = vmatprep.subr.mxu0 %v1998
    %2215 = vmatpush1.msra.mxu0 %v1997
    %2216 = vmatprep.subr.mxu0 %v2006
    %2217 = vmatpush1.msra.mxu0 %v2005
    %2218 = vmatprep.subr.mxu0 %v2014
    %2219 = vmatpush1.msra.mxu0 %v2013
    %2220 = vmatprep.subr.mxu0 %v2022
    %2221 = vmatpush1.msra.mxu0 %v2021
    %2222 = vmatprep.subr.mxu0 %v2030
    %2223 = vmatpush1.msra.mxu0 %v2029
    %2224 = vmatprep.subr.mxu0 %v2038
    %2225 = vmatpush1.msra.mxu0 %v2037
    %2226 = vmatprep.subr.mxu0 %v2046
    %2227 = vmatpush1.msra.mxu0 %v2045
    %2228 = vmatprep.subr.mxu0 %v2054
    %2229 = vmatpush1.msra.mxu0 %v2053
    %2230 = vmatprep.subr.mxu0 %v2062
    %2231 = vmatpush1.msra.mxu0 %v2061
    %2232 = vmatprep.subr.mxu0 %v2070
    %2233 = vmatpush1.msra.mxu0 %v2069
    %2234 = vmatprep.subr.mxu0 %v2078
    %2235 = vmatpush1.msra.mxu0 %v2077
    %2236 = vmatprep.subr.mxu0 0.0
    %2237 = vmatpush1.msra.mxu0 0.0
    %2238 = vmatprep.subr.mxu0 0.0
    %2239 = vmatpush1.msra.mxu0 0.0
    %2240 = vmatprep.subr.mxu0 0.0
    %2241 = vmatpush1.msra.mxu0 0.0
    %2242 = vmatprep.subr.mxu0 0.0
    %2243 = vmatpush1.msra.mxu0 0.0
    %2244 = vmatprep.subr.mxu0 0.0
    %2245 = vmatpush1.msra.mxu0 0.0
    %2246 = vmatprep.subr.mxu0 0.0
    %2247 = vmatpush1.msra.mxu0 0.0
    %2248 = vmatprep.subr.mxu0 0.0
    %2249 = vmatpush1.msra.mxu0 0.0
    %2250 = vmatprep.subr.mxu0 0.0
    %2251 = vmatpush1.msra.mxu0 0.0
    %2252 = vmatprep.subr.mxu0 0.0
    %2253 = vmatpush1.msra.mxu0 0.0
    %2254 = vmatprep.subr.mxu0 0.0
    %2255 = vmatpush1.msra.mxu0 0.0
    %2256 = vmatprep.subr.mxu0 0.0
    %2257 = vmatpush1.msra.mxu0 0.0
    %2258 = vmatprep.subr.mxu0 0.0
    %2259 = vmatpush1.msra.mxu0 0.0
    %2260 = vmatprep.subr.mxu0 0.0
    %2261 = vmatpush1.msra.mxu0 0.0
    %2262 = vmatprep.subr.mxu0 0.0
    %2263 = vmatpush1.msra.mxu0 0.0
    %2264 = vmatprep.subr.mxu0 0.0
    %2265 = vmatpush1.msra.mxu0 0.0
    %2266 = vmatprep.subr.mxu0 0.0
    %2267 = vmatpush1.msra.mxu0 0.0
    %2268 = vmatprep.mubr.f32.mxu0 0.0
    %2269 = vmatmul.mubr.f32.gmra.mrb[0].mxu0 %v2083
    %v2270 = vpop.f32.mrb[0].mxu0
    %v2271 = vadd.f32 0.0, %v2270
    %v2272 = vpop.f32.mrb[0].mxu0
    %v2273 = vadd.f32 0.0, %v2272
    %2274 = vmatprep.mubr.f32.mxu0 0.0
    %2275 = vmatmul.mubr.f32.gmra.mrb[0].mxu0 %v2084
    %v2276 = vpop.f32.mrb[0].mxu0
    %v2277 = vadd.f32 0.0, %v2276
    %v2278 = vpop.f32.mrb[0].mxu0
    %v2279 = vadd.f32 0.0, %v2278
    %2280 = vmatprep.mubr.f32.mxu0 0.0
    %2281 = vmatmul.mubr.f32.gmra.mrb[0].mxu0 %v2085
    %v2282 = vpop.f32.mrb[0].mxu0
    %v2283 = vadd.f32 0.0, %v2282
    %v2284 = vpop.f32.mrb[0].mxu0
    %v2285 = vadd.f32 0.0, %v2284
    %2286 = vmatprep.mubr.f32.mxu0 0.0
    %2287 = vmatmul.mubr.f32.gmra.mrb[0].mxu0 %v2086
    %v2288 = vpop.f32.mrb[0].mxu0
    %v2289 = vadd.f32 0.0, %v2288
    %v2290 = vpop.f32.mrb[0].mxu0
    %v2291 = vadd.f32 0.0, %v2290
    %2292 = vmatprep.mubr.f32.mxu0 0.0
    %2293 = vmatmul.mubr.f32.gmra.mrb[0].mxu0 %v2087
    %v2294 = vpop.f32.mrb[0].mxu0
    %v2295 = vadd.f32 0.0, %v2294
    %v2296 = vpop.f32.mrb[0].mxu0
    %v2297 = vadd.f32 0.0, %v2296
    %2298 = vmatprep.mubr.f32.mxu0 0.0
    %2299 = vmatmul.mubr.f32.gmra.mrb[0].mxu0 %v2088
    %v2300 = vpop.f32.mrb[0].mxu0
    %v2301 = vadd.f32 0.0, %v2300
    %v2302 = vpop.f32.mrb[0].mxu0
    %v2303 = vadd.f32 0.0, %v2302
    %2304 = vmatprep.mubr.f32.mxu0 0.0
    %2305 = vmatmul.mubr.f32.gmra.mrb[0].mxu0 %v2089
    %v2306 = vpop.f32.mrb[0].mxu0
    %v2307 = vadd.f32 0.0, %v2306
    %v2308 = vpop.f32.mrb[0].mxu0
    %v2309 = vadd.f32 0.0, %v2308
    %2310 = vmatprep.mubr.f32.mxu0 0.0
    %2311 = vmatmul.mubr.f32.gmra.mrb[0].mxu0 %v2090
    %v2312 = vpop.f32.mrb[0].mxu0
    %v2313 = vadd.f32 0.0, %v2312
    %v2314 = vpop.f32.mrb[0].mxu0
    %v2315 = vadd.f32 0.0, %v2314
    %2316 = vdwg.mxu0
    %2317 = vmatprep.subr.mxu0 %v1960
    %2318 = vmatpush1.msra.mxu0 %v1959
    %2319 = vmatprep.subr.mxu0 %v1968
    %2320 = vmatpush1.msra.mxu0 %v1967
    %2321 = vmatprep.subr.mxu0 %v1976
    %2322 = vmatpush1.msra.mxu0 %v1975
    %2323 = vmatprep.subr.mxu0 %v1984
    %2324 = vmatpush1.msra.mxu0 %v1983
    %2325 = vmatprep.subr.mxu0 %v1992
    %2326 = vmatpush1.msra.mxu0 %v1991
    %2327 = vmatprep.subr.mxu0 %v2000
    %2328 = vmatpush1.msra.mxu0 %v1999
    %2329 = vmatprep.subr.mxu0 %v2008
    %2330 = vmatpush1.msra.mxu0 %v2007
    %2331 = vmatprep.subr.mxu0 %v2016
    %2332 = vmatpush1.msra.mxu0 %v2015
    %2333 = vmatprep.subr.mxu0 %v2024
    %2334 = vmatpush1.msra.mxu0 %v2023
    %2335 = vmatprep.subr.mxu0 %v2032
    %2336 = vmatpush1.msra.mxu0 %v2031
    %2337 = vmatprep.subr.mxu0 %v2040
    %2338 = vmatpush1.msra.mxu0 %v2039
    %2339 = vmatprep.subr.mxu0 %v2048
    %2340 = vmatpush1.msra.mxu0 %v2047
    %2341 = vmatprep.subr.mxu0 %v2056
    %2342 = vmatpush1.msra.mxu0 %v2055
    %2343 = vmatprep.subr.mxu0 %v2064
    %2344 = vmatpush1.msra.mxu0 %v2063
    %2345 = vmatprep.subr.mxu0 %v2072
    %2346 = vmatpush1.msra.mxu0 %v2071
    %2347 = vmatprep.subr.mxu0 %v2080
    %2348 = vmatpush1.msra.mxu0 %v2079
    %2349 = vmatprep.subr.mxu0 0.0
    %2350 = vmatpush1.msra.mxu0 0.0
    %2351 = vmatprep.subr.mxu0 0.0
    %2352 = vmatpush1.msra.mxu0 0.0
    %2353 = vmatprep.subr.mxu0 0.0
    %2354 = vmatpush1.msra.mxu0 0.0
    %2355 = vmatprep.subr.mxu0 0.0
    %2356 = vmatpush1.msra.mxu0 0.0
    %2357 = vmatprep.subr.mxu0 0.0
    %2358 = vmatpush1.msra.mxu0 0.0
    %2359 = vmatprep.subr.mxu0 0.0
    %2360 = vmatpush1.msra.mxu0 0.0
    %2361 = vmatprep.subr.mxu0 0.0
    %2362 = vmatpush1.msra.mxu0 0.0
    %2363 = vmatprep.subr.mxu0 0.0
    %2364 = vmatpush1.msra.mxu0 0.0
    %2365 = vmatprep.subr.mxu0 0.0
    %2366 = vmatpush1.msra.mxu0 0.0
    %2367 = vmatprep.subr.mxu0 0.0
    %2368 = vmatpush1.msra.mxu0 0.0
    %2369 = vmatprep.subr.mxu0 0.0
    %2370 = vmatpush1.msra.mxu0 0.0
    %2371 = vmatprep.subr.mxu0 0.0
    %2372 = vmatpush1.msra.mxu0 0.0
    %2373 = vmatprep.subr.mxu0 0.0
    %2374 = vmatpush1.msra.mxu0 0.0
    %2375 = vmatprep.subr.mxu0 0.0
    %2376 = vmatpush1.msra.mxu0 0.0
    %2377 = vmatprep.subr.mxu0 0.0
    %2378 = vmatpush1.msra.mxu0 0.0
    %2379 = vmatprep.subr.mxu0 0.0
    %2380 = vmatpush1.msra.mxu0 0.0
    %2381 = vmatprep.mubr.f32.mxu0 0.0
    %2382 = vmatmul.mubr.f32.gmra.mrb[0].mxu0 %v2083
    %v2383 = vpop.f32.mrb[0].mxu0
    %v2384 = vadd.f32 0.0, %v2383
    %v2385 = vpop.f32.mrb[0].mxu0
    %v2386 = vadd.f32 0.0, %v2385
    %2387 = vmatprep.mubr.f32.mxu0 0.0
    %2388 = vmatmul.mubr.f32.gmra.mrb[0].mxu0 %v2084
    %v2389 = vpop.f32.mrb[0].mxu0
    %v2390 = vadd.f32 0.0, %v2389
    %v2391 = vpop.f32.mrb[0].mxu0
    %v2392 = vadd.f32 0.0, %v2391
    %2393 = vmatprep.mubr.f32.mxu0 0.0
    %2394 = vmatmul.mubr.f32.gmra.mrb[0].mxu0 %v2085
    %v2395 = vpop.f32.mrb[0].mxu0
    %v2396 = vadd.f32 0.0, %v2395
    %v2397 = vpop.f32.mrb[0].mxu0
    %v2398 = vadd.f32 0.0, %v2397
    %2399 = vmatprep.mubr.f32.mxu0 0.0
    %2400 = vmatmul.mubr.f32.gmra.mrb[0].mxu0 %v2086
    %v2401 = vpop.f32.mrb[0].mxu0
    %v2402 = vadd.f32 0.0, %v2401
    %v2403 = vpop.f32.mrb[0].mxu0
    %v2404 = vadd.f32 0.0, %v2403
    %2405 = vmatprep.mubr.f32.mxu0 0.0
    %2406 = vmatmul.mubr.f32.gmra.mrb[0].mxu0 %v2087
    %v2407 = vpop.f32.mrb[0].mxu0
    %v2408 = vadd.f32 0.0, %v2407
    %v2409 = vpop.f32.mrb[0].mxu0
    %v2410 = vadd.f32 0.0, %v2409
    %2411 = vmatprep.mubr.f32.mxu0 0.0
    %2412 = vmatmul.mubr.f32.gmra.mrb[0].mxu0 %v2088
    %v2413 = vpop.f32.mrb[0].mxu0
    %v2414 = vadd.f32 0.0, %v2413
    %v2415 = vpop.f32.mrb[0].mxu0
    %v2416 = vadd.f32 0.0, %v2415
    %2417 = vmatprep.mubr.f32.mxu0 0.0
    %2418 = vmatmul.mubr.f32.gmra.mrb[0].mxu0 %v2089
    %v2419 = vpop.f32.mrb[0].mxu0
    %v2420 = vadd.f32 0.0, %v2419
    %v2421 = vpop.f32.mrb[0].mxu0
    %v2422 = vadd.f32 0.0, %v2421
    %2423 = vmatprep.mubr.f32.mxu0 0.0
    %2424 = vmatmul.mubr.f32.gmra.mrb[0].mxu0 %v2090
    %v2425 = vpop.f32.mrb[0].mxu0
    %v2426 = vadd.f32 0.0, %v2425
    %v2427 = vpop.f32.mrb[0].mxu0
    %v2428 = vadd.f32 0.0, %v2427
    %2429 = vdwg.mxu0
    %2430 = vmatprep.subr.mxu0 %v1962
    %2431 = vmatpush1.msra.mxu0 %v1961
    %2432 = vmatprep.subr.mxu0 %v1970
    %2433 = vmatpush1.msra.mxu0 %v1969
    %2434 = vmatprep.subr.mxu0 %v1978
    %2435 = vmatpush1.msra.mxu0 %v1977
    %2436 = vmatprep.subr.mxu0 %v1986
    %2437 = vmatpush1.msra.mxu0 %v1985
    %2438 = vmatprep.subr.mxu0 %v1994
    %2439 = vmatpush1.msra.mxu0 %v1993
    %2440 = vmatprep.subr.mxu0 %v2002
    %2441 = vmatpush1.msra.mxu0 %v2001
    %2442 = vmatprep.subr.mxu0 %v2010
    %2443 = vmatpush1.msra.mxu0 %v2009
    %2444 = vmatprep.subr.mxu0 %v2018
    %2445 = vmatpush1.msra.mxu0 %v2017
    %2446 = vmatprep.subr.mxu0 %v2026
    %2447 = vmatpush1.msra.mxu0 %v2025
    %2448 = vmatprep.subr.mxu0 %v2034
    %2449 = vmatpush1.msra.mxu0 %v2033
    %2450 = vmatprep.subr.mxu0 %v2042
    %2451 = vmatpush1.msra.mxu0 %v2041
    %2452 = vmatprep.subr.mxu0 %v2050
    %2453 = vmatpush1.msra.mxu0 %v2049
    %2454 = vmatprep.subr.mxu0 %v2058
    %2455 = vmatpush1.msra.mxu0 %v2057
    %2456 = vmatprep.subr.mxu0 %v2066
    %2457 = vmatpush1.msra.mxu0 %v2065
    %2458 = vmatprep.subr.mxu0 %v2074
    %2459 = vmatpush1.msra.mxu0 %v2073
    %2460 = vmatprep.subr.mxu0 %v2082
    %2461 = vmatpush1.msra.mxu0 %v2081
    %2462 = vmatprep.subr.mxu0 0.0
    %2463 = vmatpush1.msra.mxu0 0.0
    %2464 = vmatprep.subr.mxu0 0.0
    %2465 = vmatpush1.msra.mxu0 0.0
    %2466 = vmatprep.subr.mxu0 0.0
    %2467 = vmatpush1.msra.mxu0 0.0
    %2468 = vmatprep.subr.mxu0 0.0
    %2469 = vmatpush1.msra.mxu0 0.0
    %2470 = vmatprep.subr.mxu0 0.0
    %2471 = vmatpush1.msra.mxu0 0.0
    %2472 = vmatprep.subr.mxu0 0.0
    %2473 = vmatpush1.msra.mxu0 0.0
    %2474 = vmatprep.subr.mxu0 0.0
    %2475 = vmatpush1.msra.mxu0 0.0
    %2476 = vmatprep.subr.mxu0 0.0
    %2477 = vmatpush1.msra.mxu0 0.0
    %2478 = vmatprep.subr.mxu0 0.0
    %2479 = vmatpush1.msra.mxu0 0.0
    %2480 = vmatprep.subr.mxu0 0.0
    %2481 = vmatpush1.msra.mxu0 0.0
    %2482 = vmatprep.subr.mxu0 0.0
    %2483 = vmatpush1.msra.mxu0 0.0
    %2484 = vmatprep.subr.mxu0 0.0
    %2485 = vmatpush1.msra.mxu0 0.0
    %2486 = vmatprep.subr.mxu0 0.0
    %2487 = vmatpush1.msra.mxu0 0.0
    %2488 = vmatprep.subr.mxu0 0.0
    %2489 = vmatpush1.msra.mxu0 0.0
    %2490 = vmatprep.subr.mxu0 0.0
    %2491 = vmatpush1.msra.mxu0 0.0
    %2492 = vmatprep.subr.mxu0 0.0
    %2493 = vmatpush1.msra.mxu0 0.0
    %2494 = vmatprep.mubr.f32.mxu0 0.0
    %2495 = vmatmul.mubr.f32.gmra.mrb[0].mxu0 %v2083
    %v2496 = vpop.f32.mrb[0].mxu0
    %v2497 = vadd.f32 0.0, %v2496
    %v2498 = vpop.f32.mrb[0].mxu0
    %v2499 = vadd.f32 0.0, %v2498
    %2500 = vmatprep.mubr.f32.mxu0 0.0
    %2501 = vmatmul.mubr.f32.gmra.mrb[0].mxu0 %v2084
    %v2502 = vpop.f32.mrb[0].mxu0
    %v2503 = vadd.f32 0.0, %v2502
    %v2504 = vpop.f32.mrb[0].mxu0
    %v2505 = vadd.f32 0.0, %v2504
    %2506 = vmatprep.mubr.f32.mxu0 0.0
    %2507 = vmatmul.mubr.f32.gmra.mrb[0].mxu0 %v2085
    %v2508 = vpop.f32.mrb[0].mxu0
    %v2509 = vadd.f32 0.0, %v2508
    %v2510 = vpop.f32.mrb[0].mxu0
    %v2511 = vadd.f32 0.0, %v2510
    %2512 = vmatprep.mubr.f32.mxu0 0.0
    %2513 = vmatmul.mubr.f32.gmra.mrb[0].mxu0 %v2086
    %v2514 = vpop.f32.mrb[0].mxu0
    %v2515 = vadd.f32 0.0, %v2514
    %v2516 = vpop.f32.mrb[0].mxu0
    %v2517 = vadd.f32 0.0, %v2516
    %2518 = vmatprep.mubr.f32.mxu0 0.0
    %2519 = vmatmul.mubr.f32.gmra.mrb[0].mxu0 %v2087
    %v2520 = vpop.f32.mrb[0].mxu0
    %v2521 = vadd.f32 0.0, %v2520
    %v2522 = vpop.f32.mrb[0].mxu0
    %v2523 = vadd.f32 0.0, %v2522
    %2524 = vmatprep.mubr.f32.mxu0 0.0
    %2525 = vmatmul.mubr.f32.gmra.mrb[0].mxu0 %v2088
    %v2526 = vpop.f32.mrb[0].mxu0
    %v2527 = vadd.f32 0.0, %v2526
    %v2528 = vpop.f32.mrb[0].mxu0
    %v2529 = vadd.f32 0.0, %v2528
    %2530 = vmatprep.mubr.f32.mxu0 0.0
    %2531 = vmatmul.mubr.f32.gmra.mrb[0].mxu0 %v2089
    %v2532 = vpop.f32.mrb[0].mxu0
    %v2533 = vadd.f32 0.0, %v2532
    %v2534 = vpop.f32.mrb[0].mxu0
    %v2535 = vadd.f32 0.0, %v2534
    %2536 = vmatprep.mubr.f32.mxu0 0.0
    %2537 = vmatmul.mubr.f32.gmra.mrb[0].mxu0 %v2090
    %v2538 = vpop.f32.mrb[0].mxu0
    %v2539 = vadd.f32 0.0, %v2538
    %v2540 = vpop.f32.mrb[0].mxu0
    %v2541 = vadd.f32 0.0, %v2540
    %2542 = vdwg.mxu0
    %v2543 = vmul.f32 %v2158, %v71
    %v2544 = vmul.f32 %v2160, %v72
    %v2545 = vmul.f32 %v2271, %v73
    %v2546 = vmul.f32 %v2273, %v74
    %v2547 = vmul.f32 %v2384, %v75
    %v2548 = vmul.f32 %v2386, %v76
    %v2549 = vmul.f32 %v2497, %v77
    %v2550 = vmul.f32 %v2499, %v78
    %v2551 = vmul.f32 %v2164, %v71
    %v2552 = vmul.f32 %v2166, %v72
    %v2553 = vmul.f32 %v2277, %v73
    %v2554 = vmul.f32 %v2279, %v74
    %v2555 = vmul.f32 %v2390, %v75
    %v2556 = vmul.f32 %v2392, %v76
    %v2557 = vmul.f32 %v2503, %v77
    %v2558 = vmul.f32 %v2505, %v78
    %v2559 = vmul.f32 %v2170, %v71
    %v2560 = vmul.f32 %v2172, %v72
    %v2561 = vmul.f32 %v2283, %v73
    %v2562 = vmul.f32 %v2285, %v74
    %v2563 = vmul.f32 %v2396, %v75
    %v2564 = vmul.f32 %v2398, %v76
    %v2565 = vmul.f32 %v2509, %v77
    %v2566 = vmul.f32 %v2511, %v78
    %v2567 = vmul.f32 %v2176, %v71
    %v2568 = vmul.f32 %v2178, %v72
    %v2569 = vmul.f32 %v2289, %v73
    %v2570 = vmul.f32 %v2291, %v74
    %v2571 = vmul.f32 %v2402, %v75
    %v2572 = vmul.f32 %v2404, %v76
    %v2573 = vmul.f32 %v2515, %v77
    %v2574 = vmul.f32 %v2517, %v78
    %v2575 = vmul.f32 %v2182, %v71
    %v2576 = vmul.f32 %v2184, %v72
    %v2577 = vmul.f32 %v2295, %v73
    %v2578 = vmul.f32 %v2297, %v74
    %v2579 = vmul.f32 %v2408, %v75
    %v2580 = vmul.f32 %v2410, %v76
    %v2581 = vmul.f32 %v2521, %v77
    %v2582 = vmul.f32 %v2523, %v78
    %v2583 = vmul.f32 %v2188, %v71
    %v2584 = vmul.f32 %v2190, %v72
    %v2585 = vmul.f32 %v2301, %v73
    %v2586 = vmul.f32 %v2303, %v74
    %v2587 = vmul.f32 %v2414, %v75
    %v2588 = vmul.f32 %v2416, %v76
    %v2589 = vmul.f32 %v2527, %v77
    %v2590 = vmul.f32 %v2529, %v78
    %v2591 = vmul.f32 %v2194, %v71
    %v2592 = vmul.f32 %v2196, %v72
    %v2593 = vmul.f32 %v2307, %v73
    %v2594 = vmul.f32 %v2309, %v74
    %v2595 = vmul.f32 %v2420, %v75
    %v2596 = vmul.f32 %v2422, %v76
    %v2597 = vmul.f32 %v2533, %v77
    %v2598 = vmul.f32 %v2535, %v78
    %v2599 = vmul.f32 %v2200, %v71
    %v2600 = vmul.f32 %v2202, %v72
    %v2601 = vmul.f32 %v2313, %v73
    %v2602 = vmul.f32 %v2315, %v74
    %v2603 = vmul.f32 %v2426, %v75
    %v2604 = vmul.f32 %v2428, %v76
    %v2605 = vmul.f32 %v2539, %v77
    %v2606 = vmul.f32 %v2541, %v78
    %v2607 = vadd.f32 %v2543, %v2544
    %v2608 = vadd.f32 %v2607, %v2545
    %v2609 = vadd.f32 %v2608, %v2546
    %v2610 = vadd.f32 %v2609, %v2547
    %v2611 = vadd.f32 %v2610, %v2548
    %v2612 = vadd.f32 %v2611, %v2549
    %v2613 = vadd.f32 %v2612, %v2550
    %2614 = vadd.xlane.f32.xlu0 %v2613
    %v2615 = vpop.xlane.xlu0 %2614
    %v2616 = vadd.f32 %v2551, %v2552
    %v2617 = vadd.f32 %v2616, %v2553
    %v2618 = vadd.f32 %v2617, %v2554
    %v2619 = vadd.f32 %v2618, %v2555
    %v2620 = vadd.f32 %v2619, %v2556
    %v2621 = vadd.f32 %v2620, %v2557
    %v2622 = vadd.f32 %v2621, %v2558
    %2623 = vadd.xlane.f32.xlu0 %v2622
    %v2624 = vpop.xlane.xlu0 %2623
    %v2625 = vadd.f32 %v2559, %v2560
    %v2626 = vadd.f32 %v2625, %v2561
    %v2627 = vadd.f32 %v2626, %v2562
    %v2628 = vadd.f32 %v2627, %v2563
    %v2629 = vadd.f32 %v2628, %v2564
    %v2630 = vadd.f32 %v2629, %v2565
    %v2631 = vadd.f32 %v2630, %v2566
    %2632 = vadd.xlane.f32.xlu0 %v2631
    %v2633 = vpop.xlane.xlu0 %2632
    %v2634 = vadd.f32 %v2567, %v2568
    %v2635 = vadd.f32 %v2634, %v2569
    %v2636 = vadd.f32 %v2635, %v2570
    %v2637 = vadd.f32 %v2636, %v2571
    %v2638 = vadd.f32 %v2637, %v2572
    %v2639 = vadd.f32 %v2638, %v2573
    %v2640 = vadd.f32 %v2639, %v2574
    %2641 = vadd.xlane.f32.xlu0 %v2640
    %v2642 = vpop.xlane.xlu0 %2641
    %v2643 = vadd.f32 %v2575, %v2576
    %v2644 = vadd.f32 %v2643, %v2577
    %v2645 = vadd.f32 %v2644, %v2578
    %v2646 = vadd.f32 %v2645, %v2579
    %v2647 = vadd.f32 %v2646, %v2580
    %v2648 = vadd.f32 %v2647, %v2581
    %v2649 = vadd.f32 %v2648, %v2582
    %2650 = vadd.xlane.f32.xlu0 %v2649
    %v2651 = vpop.xlane.xlu0 %2650
    %v2652 = vadd.f32 %v2583, %v2584
    %v2653 = vadd.f32 %v2652, %v2585
    %v2654 = vadd.f32 %v2653, %v2586
    %v2655 = vadd.f32 %v2654, %v2587
    %v2656 = vadd.f32 %v2655, %v2588
    %v2657 = vadd.f32 %v2656, %v2589
    %v2658 = vadd.f32 %v2657, %v2590
    %2659 = vadd.xlane.f32.xlu0 %v2658
    %v2660 = vpop.xlane.xlu0 %2659
    %v2661 = vadd.f32 %v2591, %v2592
    %v2662 = vadd.f32 %v2661, %v2593
    %v2663 = vadd.f32 %v2662, %v2594
    %v2664 = vadd.f32 %v2663, %v2595
    %v2665 = vadd.f32 %v2664, %v2596
    %v2666 = vadd.f32 %v2665, %v2597
    %v2667 = vadd.f32 %v2666, %v2598
    %2668 = vadd.xlane.f32.xlu0 %v2667
    %v2669 = vpop.xlane.xlu0 %2668
    %v2670 = vadd.f32 %v2599, %v2600
    %v2671 = vadd.f32 %v2670, %v2601
    %v2672 = vadd.f32 %v2671, %v2602
    %v2673 = vadd.f32 %v2672, %v2603
    %v2674 = vadd.f32 %v2673, %v2604
    %v2675 = vadd.f32 %v2674, %v2605
    %v2676 = vadd.f32 %v2675, %v2606
    %2677 = vadd.xlane.f32.xlu0 %v2676
    %v2678 = vpop.xlane.xlu0 %2677
    %v2679 = vmul.f32 %v2615, 0.001
    %v2680 = vmul.f32 %v2624, 0.001
    %v2681 = vmul.f32 %v2633, 0.001
    %v2682 = vmul.f32 %v2642, 0.001
    %v2683 = vmul.f32 %v2651, 0.001
    %v2684 = vmul.f32 %v2660, 0.001
    %v2685 = vmul.f32 %v2669, 0.001
    %v2686 = vmul.f32 %v2678, 0.001
    %v2687 = vmul.f32 %v2543, %v2158
    %v2688 = vmul.f32 %v2544, %v2160
    %v2689 = vmul.f32 %v2545, %v2271
    %v2690 = vmul.f32 %v2546, %v2273
    %v2691 = vmul.f32 %v2547, %v2384
    %v2692 = vmul.f32 %v2548, %v2386
    %v2693 = vmul.f32 %v2549, %v2497
    %v2694 = vmul.f32 %v2550, %v2499
    %v2695 = vmul.f32 %v2551, %v2164
    %v2696 = vmul.f32 %v2552, %v2166
    %v2697 = vmul.f32 %v2553, %v2277
    %v2698 = vmul.f32 %v2554, %v2279
    %v2699 = vmul.f32 %v2555, %v2390
    %v2700 = vmul.f32 %v2556, %v2392
    %v2701 = vmul.f32 %v2557, %v2503
    %v2702 = vmul.f32 %v2558, %v2505
    %v2703 = vmul.f32 %v2559, %v2170
    %v2704 = vmul.f32 %v2560, %v2172
    %v2705 = vmul.f32 %v2561, %v2283
    %v2706 = vmul.f32 %v2562, %v2285
    %v2707 = vmul.f32 %v2563, %v2396
    %v2708 = vmul.f32 %v2564, %v2398
    %v2709 = vmul.f32 %v2565, %v2509
    %v2710 = vmul.f32 %v2566, %v2511
    %v2711 = vmul.f32 %v2567, %v2176
    %v2712 = vmul.f32 %v2568, %v2178
    %v2713 = vmul.f32 %v2569, %v2289
    %v2714 = vmul.f32 %v2570, %v2291
    %v2715 = vmul.f32 %v2571, %v2402
    %v2716 = vmul.f32 %v2572, %v2404
    %v2717 = vmul.f32 %v2573, %v2515
    %v2718 = vmul.f32 %v2574, %v2517
    %v2719 = vmul.f32 %v2575, %v2182
    %v2720 = vmul.f32 %v2576, %v2184
    %v2721 = vmul.f32 %v2577, %v2295
    %v2722 = vmul.f32 %v2578, %v2297
    %v2723 = vmul.f32 %v2579, %v2408
    %v2724 = vmul.f32 %v2580, %v2410
    %v2725 = vmul.f32 %v2581, %v2521
    %v2726 = vmul.f32 %v2582, %v2523
    %v2727 = vmul.f32 %v2583, %v2188
    %v2728 = vmul.f32 %v2584, %v2190
    %v2729 = vmul.f32 %v2585, %v2301
    %v2730 = vmul.f32 %v2586, %v2303
    %v2731 = vmul.f32 %v2587, %v2414
    %v2732 = vmul.f32 %v2588, %v2416
    %v2733 = vmul.f32 %v2589, %v2527
    %v2734 = vmul.f32 %v2590, %v2529
    %v2735 = vmul.f32 %v2591, %v2194
    %v2736 = vmul.f32 %v2592, %v2196
    %v2737 = vmul.f32 %v2593, %v2307
    %v2738 = vmul.f32 %v2594, %v2309
    %v2739 = vmul.f32 %v2595, %v2420
    %v2740 = vmul.f32 %v2596, %v2422
    %v2741 = vmul.f32 %v2597, %v2533
    %v2742 = vmul.f32 %v2598, %v2535
    %v2743 = vmul.f32 %v2599, %v2200
    %v2744 = vmul.f32 %v2600, %v2202
    %v2745 = vmul.f32 %v2601, %v2313
    %v2746 = vmul.f32 %v2602, %v2315
    %v2747 = vmul.f32 %v2603, %v2426
    %v2748 = vmul.f32 %v2604, %v2428
    %v2749 = vmul.f32 %v2605, %v2539
    %v2750 = vmul.f32 %v2606, %v2541
    %v2751 = vadd.f32 %v2687, %v2688
    %v2752 = vadd.f32 %v2751, %v2689
    %v2753 = vadd.f32 %v2752, %v2690
    %v2754 = vadd.f32 %v2753, %v2691
    %v2755 = vadd.f32 %v2754, %v2692
    %v2756 = vadd.f32 %v2755, %v2693
    %v2757 = vadd.f32 %v2756, %v2694
    %2758 = vadd.xlane.f32.xlu0 %v2757
    %v2759 = vpop.xlane.xlu0 %2758
    %v2760 = vadd.f32 %v2695, %v2696
    %v2761 = vadd.f32 %v2760, %v2697
    %v2762 = vadd.f32 %v2761, %v2698
    %v2763 = vadd.f32 %v2762, %v2699
    %v2764 = vadd.f32 %v2763, %v2700
    %v2765 = vadd.f32 %v2764, %v2701
    %v2766 = vadd.f32 %v2765, %v2702
    %2767 = vadd.xlane.f32.xlu0 %v2766
    %v2768 = vpop.xlane.xlu0 %2767
    %v2769 = vadd.f32 %v2703, %v2704
    %v2770 = vadd.f32 %v2769, %v2705
    %v2771 = vadd.f32 %v2770, %v2706
    %v2772 = vadd.f32 %v2771, %v2707
    %v2773 = vadd.f32 %v2772, %v2708
    %v2774 = vadd.f32 %v2773, %v2709
    %v2775 = vadd.f32 %v2774, %v2710
    %2776 = vadd.xlane.f32.xlu0 %v2775
    %v2777 = vpop.xlane.xlu0 %2776
    %v2778 = vadd.f32 %v2711, %v2712
    %v2779 = vadd.f32 %v2778, %v2713
    %v2780 = vadd.f32 %v2779, %v2714
    %v2781 = vadd.f32 %v2780, %v2715
    %v2782 = vadd.f32 %v2781, %v2716
    %v2783 = vadd.f32 %v2782, %v2717
    %v2784 = vadd.f32 %v2783, %v2718
    %2785 = vadd.xlane.f32.xlu0 %v2784
    %v2786 = vpop.xlane.xlu0 %2785
    %v2787 = vadd.f32 %v2719, %v2720
    %v2788 = vadd.f32 %v2787, %v2721
    %v2789 = vadd.f32 %v2788, %v2722
    %v2790 = vadd.f32 %v2789, %v2723
    %v2791 = vadd.f32 %v2790, %v2724
    %v2792 = vadd.f32 %v2791, %v2725
    %v2793 = vadd.f32 %v2792, %v2726
    %2794 = vadd.xlane.f32.xlu0 %v2793
    %v2795 = vpop.xlane.xlu0 %2794
    %v2796 = vadd.f32 %v2727, %v2728
    %v2797 = vadd.f32 %v2796, %v2729
    %v2798 = vadd.f32 %v2797, %v2730
    %v2799 = vadd.f32 %v2798, %v2731
    %v2800 = vadd.f32 %v2799, %v2732
    %v2801 = vadd.f32 %v2800, %v2733
    %v2802 = vadd.f32 %v2801, %v2734
    %2803 = vadd.xlane.f32.xlu0 %v2802
    %v2804 = vpop.xlane.xlu0 %2803
    %v2805 = vadd.f32 %v2735, %v2736
    %v2806 = vadd.f32 %v2805, %v2737
    %v2807 = vadd.f32 %v2806, %v2738
    %v2808 = vadd.f32 %v2807, %v2739
    %v2809 = vadd.f32 %v2808, %v2740
    %v2810 = vadd.f32 %v2809, %v2741
    %v2811 = vadd.f32 %v2810, %v2742
    %2812 = vadd.xlane.f32.xlu0 %v2811
    %v2813 = vpop.xlane.xlu0 %2812
    %v2814 = vadd.f32 %v2743, %v2744
    %v2815 = vadd.f32 %v2814, %v2745
    %v2816 = vadd.f32 %v2815, %v2746
    %v2817 = vadd.f32 %v2816, %v2747
    %v2818 = vadd.f32 %v2817, %v2748
    %v2819 = vadd.f32 %v2818, %v2749
    %v2820 = vadd.f32 %v2819, %v2750
    %2821 = vadd.xlane.f32.xlu0 %v2820
    %v2822 = vpop.xlane.xlu0 %2821
    %v2823 = vmul.f32 %v2759, 0.001
    %v2824 = vmul.f32 %v2768, 0.001
    %v2825 = vmul.f32 %v2777, 0.001
    %v2826 = vmul.f32 %v2786, 0.001
    %v2827 = vmul.f32 %v2795, 0.001
    %v2828 = vmul.f32 %v2804, 0.001
    %v2829 = vmul.f32 %v2813, 0.001
    %v2830 = vmul.f32 %v2822, 0.001
    %v2831 = vmul.f32 %v2679, %v2679
    %v2832 = vmul.f32 %v2680, %v2680
    %v2833 = vmul.f32 %v2681, %v2681
    %v2834 = vmul.f32 %v2682, %v2682
    %v2835 = vmul.f32 %v2683, %v2683
    %v2836 = vmul.f32 %v2684, %v2684
    %v2837 = vmul.f32 %v2685, %v2685
    %v2838 = vmul.f32 %v2686, %v2686
    %v2839 = vsub.f32 %v2823, %v2831
    %v2840 = vsub.f32 %v2824, %v2832
    %v2841 = vsub.f32 %v2825, %v2833
    %v2842 = vsub.f32 %v2826, %v2834
    %v2843 = vsub.f32 %v2827, %v2835
    %v2844 = vsub.f32 %v2828, %v2836
    %v2845 = vsub.f32 %v2829, %v2837
    %v2846 = vsub.f32 %v2830, %v2838
    %v2847 = vmax.f32 %v2839, 0.0
    %v2848 = vmax.f32 %v2840, 0.0
    %v2849 = vmax.f32 %v2841, 0.0
    %v2850 = vmax.f32 %v2842, 0.0
    %v2851 = vmax.f32 %v2843, 0.0
    %v2852 = vmax.f32 %v2844, 0.0
    %v2853 = vmax.f32 %v2845, 0.0
    %v2854 = vmax.f32 %v2846, 0.0
    %v2855 = vld [vmem:[%s9] sm:$0xff]
    %v2856 = vld [vmem:[%s9 + $0x8] sm:$0xff]
    %v2857 = vld [vmem:[%s9 + $0x10] sm:$0xff]
    %v2858 = vld [vmem:[%s9 + $0x18] sm:$0xff]
    %v2859 = vld [vmem:[%s9 + $0x20] sm:$0xff]
    %v2860 = vld [vmem:[%s9 + $0x28] sm:$0xff]
    %v2861 = vld [vmem:[%s9 + $0x30] sm:$0xff]
    %v2862 = vld [vmem:[%s9 + $0x38] sm:$0xff]
    %v2863 = vadd.f32 %v2847, 1e-05
    %v2864 = vadd.f32 %v2848, 1e-05
    %v2865 = vadd.f32 %v2849, 1e-05
    %v2866 = vadd.f32 %v2850, 1e-05
    %v2867 = vadd.f32 %v2851, 1e-05
    %v2868 = vadd.f32 %v2852, 1e-05
    %v2869 = vadd.f32 %v2853, 1e-05
    %v2870 = vadd.f32 %v2854, 1e-05
    %v2871 = vrsqrt.pop %v2863
    %v2872 = vrsqrt.pop %v2864
    %v2873 = vrsqrt.pop %v2865
    %v2874 = vrsqrt.pop %v2866
    %v2875 = vrsqrt.pop %v2867
    %v2876 = vrsqrt.pop %v2868
    %v2877 = vrsqrt.pop %v2869
    %v2878 = vrsqrt.pop %v2870
    %v2879 = vmul.f32 %v2855, %v2871
    %v2880 = vmul.f32 %v2856, %v2872
    %v2881 = vmul.f32 %v2857, %v2873
    %v2882 = vmul.f32 %v2858, %v2874
    %v2883 = vmul.f32 %v2859, %v2875
    %v2884 = vmul.f32 %v2860, %v2876
    %v2885 = vmul.f32 %v2861, %v2877
    %v2886 = vmul.f32 %v2862, %v2878
    %v2887 = vld [vmem:[%s10] sm:$0xff]
    %v2888 = vld [vmem:[%s10 + $0x8] sm:$0xff]
    %v2889 = vld [vmem:[%s10 + $0x10] sm:$0xff]
    %v2890 = vld [vmem:[%s10 + $0x18] sm:$0xff]
    %v2891 = vld [vmem:[%s10 + $0x20] sm:$0xff]
    %v2892 = vld [vmem:[%s10 + $0x28] sm:$0xff]
    %v2893 = vld [vmem:[%s10 + $0x30] sm:$0xff]
    %v2894 = vld [vmem:[%s10 + $0x38] sm:$0xff]
    %v2895 = vmul.f32 %v2679, %v2879
    %v2896 = vmul.f32 %v2680, %v2880
    %v2897 = vmul.f32 %v2681, %v2881
    %v2898 = vmul.f32 %v2682, %v2882
    %v2899 = vmul.f32 %v2683, %v2883
    %v2900 = vmul.f32 %v2684, %v2884
    %v2901 = vmul.f32 %v2685, %v2885
    %v2902 = vmul.f32 %v2686, %v2886
    %v2903 = vsub.f32 %v2887, %v2895
    %v2904 = vsub.f32 %v2888, %v2896
    %v2905 = vsub.f32 %v2889, %v2897
    %v2906 = vsub.f32 %v2890, %v2898
    %v2907 = vsub.f32 %v2891, %v2899
    %v2908 = vsub.f32 %v2892, %v2900
    %v2909 = vsub.f32 %v2893, %v2901
    %v2910 = vsub.f32 %v2894, %v2902
    %2912 = vset.pattern.permute.xlu0 0
    %2913 = vperm.xlu0 %2912, %v2879
    %v2914 = vpop.permute.xlu0 %2913
    %2917 = vset.pattern.permute.xlu0 0
    %2918 = vperm.xlu0 %2917, %v2880
    %v2919 = vpop.permute.xlu0 %2918
    %2922 = vset.pattern.permute.xlu0 0
    %2923 = vperm.xlu0 %2922, %v2881
    %v2924 = vpop.permute.xlu0 %2923
    %2927 = vset.pattern.permute.xlu0 0
    %2928 = vperm.xlu0 %2927, %v2882
    %v2929 = vpop.permute.xlu0 %2928
    %2932 = vset.pattern.permute.xlu0 0
    %2933 = vperm.xlu0 %2932, %v2883
    %v2934 = vpop.permute.xlu0 %2933
    %2937 = vset.pattern.permute.xlu0 0
    %2938 = vperm.xlu0 %2937, %v2884
    %v2939 = vpop.permute.xlu0 %2938
    %2942 = vset.pattern.permute.xlu0 0
    %2943 = vperm.xlu0 %2942, %v2885
    %v2944 = vpop.permute.xlu0 %2943
    %2947 = vset.pattern.permute.xlu0 0
    %2948 = vperm.xlu0 %2947, %v2886
    %v2949 = vpop.permute.xlu0 %2948
    %v2951 = vmul.f32 %v2158, %v2914
    %v2952 = vmul.f32 %v2160, %v2914
    %v2953 = vmul.f32 %v2271, %v2914
    %v2954 = vmul.f32 %v2273, %v2914
    %v2955 = vmul.f32 %v2384, %v2914
    %v2956 = vmul.f32 %v2386, %v2914
    %v2957 = vmul.f32 %v2497, %v2914
    %v2958 = vmul.f32 %v2499, %v2914
    %v2959 = vmul.f32 %v2164, %v2919
    %v2960 = vmul.f32 %v2166, %v2919
    %v2961 = vmul.f32 %v2277, %v2919
    %v2962 = vmul.f32 %v2279, %v2919
    %v2963 = vmul.f32 %v2390, %v2919
    %v2964 = vmul.f32 %v2392, %v2919
    %v2965 = vmul.f32 %v2503, %v2919
    %v2966 = vmul.f32 %v2505, %v2919
    %v2967 = vmul.f32 %v2170, %v2924
    %v2968 = vmul.f32 %v2172, %v2924
    %v2969 = vmul.f32 %v2283, %v2924
    %v2970 = vmul.f32 %v2285, %v2924
    %v2971 = vmul.f32 %v2396, %v2924
    %v2972 = vmul.f32 %v2398, %v2924
    %v2973 = vmul.f32 %v2509, %v2924
    %v2974 = vmul.f32 %v2511, %v2924
    %v2975 = vmul.f32 %v2176, %v2929
    %v2976 = vmul.f32 %v2178, %v2929
    %v2977 = vmul.f32 %v2289, %v2929
    %v2978 = vmul.f32 %v2291, %v2929
    %v2979 = vmul.f32 %v2402, %v2929
    %v2980 = vmul.f32 %v2404, %v2929
    %v2981 = vmul.f32 %v2515, %v2929
    %v2982 = vmul.f32 %v2517, %v2929
    %v2983 = vmul.f32 %v2182, %v2934
    %v2984 = vmul.f32 %v2184, %v2934
    %v2985 = vmul.f32 %v2295, %v2934
    %v2986 = vmul.f32 %v2297, %v2934
    %v2987 = vmul.f32 %v2408, %v2934
    %v2988 = vmul.f32 %v2410, %v2934
    %v2989 = vmul.f32 %v2521, %v2934
    %v2990 = vmul.f32 %v2523, %v2934
    %v2991 = vmul.f32 %v2188, %v2939
    %v2992 = vmul.f32 %v2190, %v2939
    %v2993 = vmul.f32 %v2301, %v2939
    %v2994 = vmul.f32 %v2303, %v2939
    %v2995 = vmul.f32 %v2414, %v2939
    %v2996 = vmul.f32 %v2416, %v2939
    %v2997 = vmul.f32 %v2527, %v2939
    %v2998 = vmul.f32 %v2529, %v2939
    %v2999 = vmul.f32 %v2194, %v2944
    %v3000 = vmul.f32 %v2196, %v2944
    %v3001 = vmul.f32 %v2307, %v2944
    %v3002 = vmul.f32 %v2309, %v2944
    %v3003 = vmul.f32 %v2420, %v2944
    %v3004 = vmul.f32 %v2422, %v2944
    %v3005 = vmul.f32 %v2533, %v2944
    %v3006 = vmul.f32 %v2535, %v2944
    %v3007 = vmul.f32 %v2200, %v2949
    %v3008 = vmul.f32 %v2202, %v2949
    %v3009 = vmul.f32 %v2313, %v2949
    %v3010 = vmul.f32 %v2315, %v2949
    %v3011 = vmul.f32 %v2426, %v2949
    %v3012 = vmul.f32 %v2428, %v2949
    %v3013 = vmul.f32 %v2539, %v2949
    %v3014 = vmul.f32 %v2541, %v2949
    %3016 = vset.pattern.permute.xlu0 0
    %3017 = vperm.xlu0 %3016, %v2903
    %v3018 = vpop.permute.xlu0 %3017
    %3021 = vset.pattern.permute.xlu0 0
    %3022 = vperm.xlu0 %3021, %v2904
    %v3023 = vpop.permute.xlu0 %3022
    %3026 = vset.pattern.permute.xlu0 0
    %3027 = vperm.xlu0 %3026, %v2905
    %v3028 = vpop.permute.xlu0 %3027
    %3031 = vset.pattern.permute.xlu0 0
    %3032 = vperm.xlu0 %3031, %v2906
    %v3033 = vpop.permute.xlu0 %3032
    %3036 = vset.pattern.permute.xlu0 0
    %3037 = vperm.xlu0 %3036, %v2907
    %v3038 = vpop.permute.xlu0 %3037
    %3041 = vset.pattern.permute.xlu0 0
    %3042 = vperm.xlu0 %3041, %v2908
    %v3043 = vpop.permute.xlu0 %3042
    %3046 = vset.pattern.permute.xlu0 0
    %3047 = vperm.xlu0 %3046, %v2909
    %v3048 = vpop.permute.xlu0 %3047
    %3051 = vset.pattern.permute.xlu0 0
    %3052 = vperm.xlu0 %3051, %v2910
    %v3053 = vpop.permute.xlu0 %3052
    %v3055 = vadd.f32 %v2951, %v3018
    %v3056 = vadd.f32 %v2952, %v3018
    %v3057 = vadd.f32 %v2953, %v3018
    %v3058 = vadd.f32 %v2954, %v3018
    %v3059 = vadd.f32 %v2955, %v3018
    %v3060 = vadd.f32 %v2956, %v3018
    %v3061 = vadd.f32 %v2957, %v3018
    %v3062 = vadd.f32 %v2958, %v3018
    %v3063 = vadd.f32 %v2959, %v3023
    %v3064 = vadd.f32 %v2960, %v3023
    %v3065 = vadd.f32 %v2961, %v3023
    %v3066 = vadd.f32 %v2962, %v3023
    %v3067 = vadd.f32 %v2963, %v3023
    %v3068 = vadd.f32 %v2964, %v3023
    %v3069 = vadd.f32 %v2965, %v3023
    %v3070 = vadd.f32 %v2966, %v3023
    %v3071 = vadd.f32 %v2967, %v3028
    %v3072 = vadd.f32 %v2968, %v3028
    %v3073 = vadd.f32 %v2969, %v3028
    %v3074 = vadd.f32 %v2970, %v3028
    %v3075 = vadd.f32 %v2971, %v3028
    %v3076 = vadd.f32 %v2972, %v3028
    %v3077 = vadd.f32 %v2973, %v3028
    %v3078 = vadd.f32 %v2974, %v3028
    %v3079 = vadd.f32 %v2975, %v3033
    %v3080 = vadd.f32 %v2976, %v3033
    %v3081 = vadd.f32 %v2977, %v3033
    %v3082 = vadd.f32 %v2978, %v3033
    %v3083 = vadd.f32 %v2979, %v3033
    %v3084 = vadd.f32 %v2980, %v3033
    %v3085 = vadd.f32 %v2981, %v3033
    %v3086 = vadd.f32 %v2982, %v3033
    %v3087 = vadd.f32 %v2983, %v3038
    %v3088 = vadd.f32 %v2984, %v3038
    %v3089 = vadd.f32 %v2985, %v3038
    %v3090 = vadd.f32 %v2986, %v3038
    %v3091 = vadd.f32 %v2987, %v3038
    %v3092 = vadd.f32 %v2988, %v3038
    %v3093 = vadd.f32 %v2989, %v3038
    %v3094 = vadd.f32 %v2990, %v3038
    %v3095 = vadd.f32 %v2991, %v3043
    %v3096 = vadd.f32 %v2992, %v3043
    %v3097 = vadd.f32 %v2993, %v3043
    %v3098 = vadd.f32 %v2994, %v3043
    %v3099 = vadd.f32 %v2995, %v3043
    %v3100 = vadd.f32 %v2996, %v3043
    %v3101 = vadd.f32 %v2997, %v3043
    %v3102 = vadd.f32 %v2998, %v3043
    %v3103 = vadd.f32 %v2999, %v3048
    %v3104 = vadd.f32 %v3000, %v3048
    %v3105 = vadd.f32 %v3001, %v3048
    %v3106 = vadd.f32 %v3002, %v3048
    %v3107 = vadd.f32 %v3003, %v3048
    %v3108 = vadd.f32 %v3004, %v3048
    %v3109 = vadd.f32 %v3005, %v3048
    %v3110 = vadd.f32 %v3006, %v3048
    %v3111 = vadd.f32 %v3007, %v3053
    %v3112 = vadd.f32 %v3008, %v3053
    %v3113 = vadd.f32 %v3009, %v3053
    %v3114 = vadd.f32 %v3010, %v3053
    %v3115 = vadd.f32 %v3011, %v3053
    %v3116 = vadd.f32 %v3012, %v3053
    %v3117 = vadd.f32 %v3013, %v3053
    %v3118 = vadd.f32 %v3014, %v3053
    %v3119 = vmax.f32 %v3055, 0.0
    %v3120 = vmax.f32 %v3056, 0.0
    %v3121 = vmax.f32 %v3057, 0.0
    %v3122 = vmax.f32 %v3058, 0.0
    %v3123 = vmax.f32 %v3059, 0.0
    %v3124 = vmax.f32 %v3060, 0.0
    %v3125 = vmax.f32 %v3061, 0.0
    %v3126 = vmax.f32 %v3062, 0.0
    %v3127 = vmax.f32 %v3063, 0.0
    %v3128 = vmax.f32 %v3064, 0.0
    %v3129 = vmax.f32 %v3065, 0.0
    %v3130 = vmax.f32 %v3066, 0.0
    %v3131 = vmax.f32 %v3067, 0.0
    %v3132 = vmax.f32 %v3068, 0.0
    %v3133 = vmax.f32 %v3069, 0.0
    %v3134 = vmax.f32 %v3070, 0.0
    %v3135 = vmax.f32 %v3071, 0.0
    %v3136 = vmax.f32 %v3072, 0.0
    %v3137 = vmax.f32 %v3073, 0.0
    %v3138 = vmax.f32 %v3074, 0.0
    %v3139 = vmax.f32 %v3075, 0.0
    %v3140 = vmax.f32 %v3076, 0.0
    %v3141 = vmax.f32 %v3077, 0.0
    %v3142 = vmax.f32 %v3078, 0.0
    %v3143 = vmax.f32 %v3079, 0.0
    %v3144 = vmax.f32 %v3080, 0.0
    %v3145 = vmax.f32 %v3081, 0.0
    %v3146 = vmax.f32 %v3082, 0.0
    %v3147 = vmax.f32 %v3083, 0.0
    %v3148 = vmax.f32 %v3084, 0.0
    %v3149 = vmax.f32 %v3085, 0.0
    %v3150 = vmax.f32 %v3086, 0.0
    %v3151 = vmax.f32 %v3087, 0.0
    %v3152 = vmax.f32 %v3088, 0.0
    %v3153 = vmax.f32 %v3089, 0.0
    %v3154 = vmax.f32 %v3090, 0.0
    %v3155 = vmax.f32 %v3091, 0.0
    %v3156 = vmax.f32 %v3092, 0.0
    %v3157 = vmax.f32 %v3093, 0.0
    %v3158 = vmax.f32 %v3094, 0.0
    %v3159 = vmax.f32 %v3095, 0.0
    %v3160 = vmax.f32 %v3096, 0.0
    %v3161 = vmax.f32 %v3097, 0.0
    %v3162 = vmax.f32 %v3098, 0.0
    %v3163 = vmax.f32 %v3099, 0.0
    %v3164 = vmax.f32 %v3100, 0.0
    %v3165 = vmax.f32 %v3101, 0.0
    %v3166 = vmax.f32 %v3102, 0.0
    %v3167 = vmax.f32 %v3103, 0.0
    %v3168 = vmax.f32 %v3104, 0.0
    %v3169 = vmax.f32 %v3105, 0.0
    %v3170 = vmax.f32 %v3106, 0.0
    %v3171 = vmax.f32 %v3107, 0.0
    %v3172 = vmax.f32 %v3108, 0.0
    %v3173 = vmax.f32 %v3109, 0.0
    %v3174 = vmax.f32 %v3110, 0.0
    %v3175 = vmax.f32 %v3111, 0.0
    %v3176 = vmax.f32 %v3112, 0.0
    %v3177 = vmax.f32 %v3113, 0.0
    %v3178 = vmax.f32 %v3114, 0.0
    %v3179 = vmax.f32 %v3115, 0.0
    %v3180 = vmax.f32 %v3116, 0.0
    %v3181 = vmax.f32 %v3117, 0.0
    %v3182 = vmax.f32 %v3118, 0.0
    %v3183 = vld [vmem:[%s4] sm:$0xff]
    %v3184 = vld [vmem:[%s4 + $0x8] sm:$0xff]
    %v3185 = vld [vmem:[%s4 + $0x10] sm:$0xff]
    %v3186 = vld [vmem:[%s4 + $0x18] sm:$0xff]
    %vm3187 = vcmask 523264
    %v3189 = vsel %vm3187, %v3183, 0
    %v3192 = vsel %vm3187, %v3184, 0
    %v3195 = vsel %vm3187, %v3185, 0
    %v3198 = vsel %vm3187, %v3186, 0
    %3200 = vmatprep.subr.mxu0 %v3120
    %3201 = vmatpush1.msra.mxu0 %v3119
    %3202 = vmatprep.subr.mxu0 %v3128
    %3203 = vmatpush1.msra.mxu0 %v3127
    %3204 = vmatprep.subr.mxu0 %v3136
    %3205 = vmatpush1.msra.mxu0 %v3135
    %3206 = vmatprep.subr.mxu0 %v3144
    %3207 = vmatpush1.msra.mxu0 %v3143
    %3208 = vmatprep.subr.mxu0 %v3152
    %3209 = vmatpush1.msra.mxu0 %v3151
    %3210 = vmatprep.subr.mxu0 %v3160
    %3211 = vmatpush1.msra.mxu0 %v3159
    %3212 = vmatprep.subr.mxu0 %v3168
    %3213 = vmatpush1.msra.mxu0 %v3167
    %3214 = vmatprep.subr.mxu0 %v3176
    %3215 = vmatpush1.msra.mxu0 %v3175
    %3216 = vmatprep.subr.mxu0 0.0
    %3217 = vmatpush1.msra.mxu0 0.0
    %3218 = vmatprep.subr.mxu0 0.0
    %3219 = vmatpush1.msra.mxu0 0.0
    %3220 = vmatprep.subr.mxu0 0.0
    %3221 = vmatpush1.msra.mxu0 0.0
    %3222 = vmatprep.subr.mxu0 0.0
    %3223 = vmatpush1.msra.mxu0 0.0
    %3224 = vmatprep.subr.mxu0 0.0
    %3225 = vmatpush1.msra.mxu0 0.0
    %3226 = vmatprep.subr.mxu0 0.0
    %3227 = vmatpush1.msra.mxu0 0.0
    %3228 = vmatprep.subr.mxu0 0.0
    %3229 = vmatpush1.msra.mxu0 0.0
    %3230 = vmatprep.subr.mxu0 0.0
    %3231 = vmatpush1.msra.mxu0 0.0
    %3232 = vmatprep.subr.mxu0 0.0
    %3233 = vmatpush1.msra.mxu0 0.0
    %3234 = vmatprep.subr.mxu0 0.0
    %3235 = vmatpush1.msra.mxu0 0.0
    %3236 = vmatprep.subr.mxu0 0.0
    %3237 = vmatpush1.msra.mxu0 0.0
    %3238 = vmatprep.subr.mxu0 0.0
    %3239 = vmatpush1.msra.mxu0 0.0
    %3240 = vmatprep.subr.mxu0 0.0
    %3241 = vmatpush1.msra.mxu0 0.0
    %3242 = vmatprep.subr.mxu0 0.0
    %3243 = vmatpush1.msra.mxu0 0.0
    %3244 = vmatprep.subr.mxu0 0.0
    %3245 = vmatpush1.msra.mxu0 0.0
    %3246 = vmatprep.subr.mxu0 0.0
    %3247 = vmatpush1.msra.mxu0 0.0
    %3248 = vmatprep.subr.mxu0 0.0
    %3249 = vmatpush1.msra.mxu0 0.0
    %3250 = vmatprep.subr.mxu0 0.0
    %3251 = vmatpush1.msra.mxu0 0.0
    %3252 = vmatprep.subr.mxu0 0.0
    %3253 = vmatpush1.msra.mxu0 0.0
    %3254 = vmatprep.subr.mxu0 0.0
    %3255 = vmatpush1.msra.mxu0 0.0
    %3256 = vmatprep.subr.mxu0 0.0
    %3257 = vmatpush1.msra.mxu0 0.0
    %3258 = vmatprep.subr.mxu0 0.0
    %3259 = vmatpush1.msra.mxu0 0.0
    %3260 = vmatprep.subr.mxu0 0.0
    %3261 = vmatpush1.msra.mxu0 0.0
    %3262 = vmatprep.subr.mxu0 0.0
    %3263 = vmatpush1.msra.mxu0 0.0
    %3264 = vmatprep.mubr.f32.mxu0 0.0
    %3265 = vmatmul.mubr.f32.gmra.mrb[0].mxu0 %v3189
    %v3266 = vpop.f32.mrb[0].mxu0
    %v3267 = vadd.f32 0.0, %v3266
    %v3268 = vpop.f32.mrb[0].mxu0
    %v3269 = vadd.f32 0.0, %v3268
    %3270 = vmatprep.mubr.f32.mxu0 0.0
    %3271 = vmatmul.mubr.f32.gmra.mrb[0].mxu0 %v3192
    %v3272 = vpop.f32.mrb[0].mxu0
    %v3273 = vadd.f32 0.0, %v3272
    %v3274 = vpop.f32.mrb[0].mxu0
    %v3275 = vadd.f32 0.0, %v3274
    %3276 = vmatprep.mubr.f32.mxu0 0.0
    %3277 = vmatmul.mubr.f32.gmra.mrb[0].mxu0 %v3195
    %v3278 = vpop.f32.mrb[0].mxu0
    %v3279 = vadd.f32 0.0, %v3278
    %v3280 = vpop.f32.mrb[0].mxu0
    %v3281 = vadd.f32 0.0, %v3280
    %3282 = vmatprep.mubr.f32.mxu0 0.0
    %3283 = vmatmul.mubr.f32.gmra.mrb[0].mxu0 %v3198
    %v3284 = vpop.f32.mrb[0].mxu0
    %v3285 = vadd.f32 0.0, %v3284
    %v3286 = vpop.f32.mrb[0].mxu0
    %v3287 = vadd.f32 0.0, %v3286
    %3288 = vdwg.mxu0
    %3289 = vmatprep.subr.mxu0 %v3122
    %3290 = vmatpush1.msra.mxu0 %v3121
    %3291 = vmatprep.subr.mxu0 %v3130
    %3292 = vmatpush1.msra.mxu0 %v3129
    %3293 = vmatprep.subr.mxu0 %v3138
    %3294 = vmatpush1.msra.mxu0 %v3137
    %3295 = vmatprep.subr.mxu0 %v3146
    %3296 = vmatpush1.msra.mxu0 %v3145
    %3297 = vmatprep.subr.mxu0 %v3154
    %3298 = vmatpush1.msra.mxu0 %v3153
    %3299 = vmatprep.subr.mxu0 %v3162
    %3300 = vmatpush1.msra.mxu0 %v3161
    %3301 = vmatprep.subr.mxu0 %v3170
    %3302 = vmatpush1.msra.mxu0 %v3169
    %3303 = vmatprep.subr.mxu0 %v3178
    %3304 = vmatpush1.msra.mxu0 %v3177
    %3305 = vmatprep.subr.mxu0 0.0
    %3306 = vmatpush1.msra.mxu0 0.0
    %3307 = vmatprep.subr.mxu0 0.0
    %3308 = vmatpush1.msra.mxu0 0.0
    %3309 = vmatprep.subr.mxu0 0.0
    %3310 = vmatpush1.msra.mxu0 0.0
    %3311 = vmatprep.subr.mxu0 0.0
    %3312 = vmatpush1.msra.mxu0 0.0
    %3313 = vmatprep.subr.mxu0 0.0
    %3314 = vmatpush1.msra.mxu0 0.0
    %3315 = vmatprep.subr.mxu0 0.0
    %3316 = vmatpush1.msra.mxu0 0.0
    %3317 = vmatprep.subr.mxu0 0.0
    %3318 = vmatpush1.msra.mxu0 0.0
    %3319 = vmatprep.subr.mxu0 0.0
    %3320 = vmatpush1.msra.mxu0 0.0
    %3321 = vmatprep.subr.mxu0 0.0
    %3322 = vmatpush1.msra.mxu0 0.0
    %3323 = vmatprep.subr.mxu0 0.0
    %3324 = vmatpush1.msra.mxu0 0.0
    %3325 = vmatprep.subr.mxu0 0.0
    %3326 = vmatpush1.msra.mxu0 0.0
    %3327 = vmatprep.subr.mxu0 0.0
    %3328 = vmatpush1.msra.mxu0 0.0
    %3329 = vmatprep.subr.mxu0 0.0
    %3330 = vmatpush1.msra.mxu0 0.0
    %3331 = vmatprep.subr.mxu0 0.0
    %3332 = vmatpush1.msra.mxu0 0.0
    %3333 = vmatprep.subr.mxu0 0.0
    %3334 = vmatpush1.msra.mxu0 0.0
    %3335 = vmatprep.subr.mxu0 0.0
    %3336 = vmatpush1.msra.mxu0 0.0
    %3337 = vmatprep.subr.mxu0 0.0
    %3338 = vmatpush1.msra.mxu0 0.0
    %3339 = vmatprep.subr.mxu0 0.0
    %3340 = vmatpush1.msra.mxu0 0.0
    %3341 = vmatprep.subr.mxu0 0.0
    %3342 = vmatpush1.msra.mxu0 0.0
    %3343 = vmatprep.subr.mxu0 0.0
    %3344 = vmatpush1.msra.mxu0 0.0
    %3345 = vmatprep.subr.mxu0 0.0
    %3346 = vmatpush1.msra.mxu0 0.0
    %3347 = vmatprep.subr.mxu0 0.0
    %3348 = vmatpush1.msra.mxu0 0.0
    %3349 = vmatprep.subr.mxu0 0.0
    %3350 = vmatpush1.msra.mxu0 0.0
    %3351 = vmatprep.subr.mxu0 0.0
    %3352 = vmatpush1.msra.mxu0 0.0
    %3353 = vmatprep.mubr.f32.mxu0 0.0
    %3354 = vmatmul.mubr.f32.gmra.mrb[0].mxu0 %v3189
    %v3355 = vpop.f32.mrb[0].mxu0
    %v3356 = vadd.f32 0.0, %v3355
    %v3357 = vpop.f32.mrb[0].mxu0
    %v3358 = vadd.f32 0.0, %v3357
    %3359 = vmatprep.mubr.f32.mxu0 0.0
    %3360 = vmatmul.mubr.f32.gmra.mrb[0].mxu0 %v3192
    %v3361 = vpop.f32.mrb[0].mxu0
    %v3362 = vadd.f32 0.0, %v3361
    %v3363 = vpop.f32.mrb[0].mxu0
    %v3364 = vadd.f32 0.0, %v3363
    %3365 = vmatprep.mubr.f32.mxu0 0.0
    %3366 = vmatmul.mubr.f32.gmra.mrb[0].mxu0 %v3195
    %v3367 = vpop.f32.mrb[0].mxu0
    %v3368 = vadd.f32 0.0, %v3367
    %v3369 = vpop.f32.mrb[0].mxu0
    %v3370 = vadd.f32 0.0, %v3369
    %3371 = vmatprep.mubr.f32.mxu0 0.0
    %3372 = vmatmul.mubr.f32.gmra.mrb[0].mxu0 %v3198
    %v3373 = vpop.f32.mrb[0].mxu0
    %v3374 = vadd.f32 0.0, %v3373
    %v3375 = vpop.f32.mrb[0].mxu0
    %v3376 = vadd.f32 0.0, %v3375
    %3377 = vdwg.mxu0
    %3378 = vmatprep.subr.mxu0 %v3124
    %3379 = vmatpush1.msra.mxu0 %v3123
    %3380 = vmatprep.subr.mxu0 %v3132
    %3381 = vmatpush1.msra.mxu0 %v3131
    %3382 = vmatprep.subr.mxu0 %v3140
    %3383 = vmatpush1.msra.mxu0 %v3139
    %3384 = vmatprep.subr.mxu0 %v3148
    %3385 = vmatpush1.msra.mxu0 %v3147
    %3386 = vmatprep.subr.mxu0 %v3156
    %3387 = vmatpush1.msra.mxu0 %v3155
    %3388 = vmatprep.subr.mxu0 %v3164
    %3389 = vmatpush1.msra.mxu0 %v3163
    %3390 = vmatprep.subr.mxu0 %v3172
    %3391 = vmatpush1.msra.mxu0 %v3171
    %3392 = vmatprep.subr.mxu0 %v3180
    %3393 = vmatpush1.msra.mxu0 %v3179
    %3394 = vmatprep.subr.mxu0 0.0
    %3395 = vmatpush1.msra.mxu0 0.0
    %3396 = vmatprep.subr.mxu0 0.0
    %3397 = vmatpush1.msra.mxu0 0.0
    %3398 = vmatprep.subr.mxu0 0.0
    %3399 = vmatpush1.msra.mxu0 0.0
    %3400 = vmatprep.subr.mxu0 0.0
    %3401 = vmatpush1.msra.mxu0 0.0
    %3402 = vmatprep.subr.mxu0 0.0
    %3403 = vmatpush1.msra.mxu0 0.0
    %3404 = vmatprep.subr.mxu0 0.0
    %3405 = vmatpush1.msra.mxu0 0.0
    %3406 = vmatprep.subr.mxu0 0.0
    %3407 = vmatpush1.msra.mxu0 0.0
    %3408 = vmatprep.subr.mxu0 0.0
    %3409 = vmatpush1.msra.mxu0 0.0
    %3410 = vmatprep.subr.mxu0 0.0
    %3411 = vmatpush1.msra.mxu0 0.0
    %3412 = vmatprep.subr.mxu0 0.0
    %3413 = vmatpush1.msra.mxu0 0.0
    %3414 = vmatprep.subr.mxu0 0.0
    %3415 = vmatpush1.msra.mxu0 0.0
    %3416 = vmatprep.subr.mxu0 0.0
    %3417 = vmatpush1.msra.mxu0 0.0
    %3418 = vmatprep.subr.mxu0 0.0
    %3419 = vmatpush1.msra.mxu0 0.0
    %3420 = vmatprep.subr.mxu0 0.0
    %3421 = vmatpush1.msra.mxu0 0.0
    %3422 = vmatprep.subr.mxu0 0.0
    %3423 = vmatpush1.msra.mxu0 0.0
    %3424 = vmatprep.subr.mxu0 0.0
    %3425 = vmatpush1.msra.mxu0 0.0
    %3426 = vmatprep.subr.mxu0 0.0
    %3427 = vmatpush1.msra.mxu0 0.0
    %3428 = vmatprep.subr.mxu0 0.0
    %3429 = vmatpush1.msra.mxu0 0.0
    %3430 = vmatprep.subr.mxu0 0.0
    %3431 = vmatpush1.msra.mxu0 0.0
    %3432 = vmatprep.subr.mxu0 0.0
    %3433 = vmatpush1.msra.mxu0 0.0
    %3434 = vmatprep.subr.mxu0 0.0
    %3435 = vmatpush1.msra.mxu0 0.0
    %3436 = vmatprep.subr.mxu0 0.0
    %3437 = vmatpush1.msra.mxu0 0.0
    %3438 = vmatprep.subr.mxu0 0.0
    %3439 = vmatpush1.msra.mxu0 0.0
    %3440 = vmatprep.subr.mxu0 0.0
    %3441 = vmatpush1.msra.mxu0 0.0
    %3442 = vmatprep.mubr.f32.mxu0 0.0
    %3443 = vmatmul.mubr.f32.gmra.mrb[0].mxu0 %v3189
    %v3444 = vpop.f32.mrb[0].mxu0
    %v3445 = vadd.f32 0.0, %v3444
    %v3446 = vpop.f32.mrb[0].mxu0
    %v3447 = vadd.f32 0.0, %v3446
    %3448 = vmatprep.mubr.f32.mxu0 0.0
    %3449 = vmatmul.mubr.f32.gmra.mrb[0].mxu0 %v3192
    %v3450 = vpop.f32.mrb[0].mxu0
    %v3451 = vadd.f32 0.0, %v3450
    %v3452 = vpop.f32.mrb[0].mxu0
    %v3453 = vadd.f32 0.0, %v3452
    %3454 = vmatprep.mubr.f32.mxu0 0.0
    %3455 = vmatmul.mubr.f32.gmra.mrb[0].mxu0 %v3195
    %v3456 = vpop.f32.mrb[0].mxu0
    %v3457 = vadd.f32 0.0, %v3456
    %v3458 = vpop.f32.mrb[0].mxu0
    %v3459 = vadd.f32 0.0, %v3458
    %3460 = vmatprep.mubr.f32.mxu0 0.0
    %3461 = vmatmul.mubr.f32.gmra.mrb[0].mxu0 %v3198
    %v3462 = vpop.f32.mrb[0].mxu0
    %v3463 = vadd.f32 0.0, %v3462
    %v3464 = vpop.f32.mrb[0].mxu0
    %v3465 = vadd.f32 0.0, %v3464
    %3466 = vdwg.mxu0
    %3467 = vmatprep.subr.mxu0 %v3126
    %3468 = vmatpush1.msra.mxu0 %v3125
    %3469 = vmatprep.subr.mxu0 %v3134
    %3470 = vmatpush1.msra.mxu0 %v3133
    %3471 = vmatprep.subr.mxu0 %v3142
    %3472 = vmatpush1.msra.mxu0 %v3141
    %3473 = vmatprep.subr.mxu0 %v3150
    %3474 = vmatpush1.msra.mxu0 %v3149
    %3475 = vmatprep.subr.mxu0 %v3158
    %3476 = vmatpush1.msra.mxu0 %v3157
    %3477 = vmatprep.subr.mxu0 %v3166
    %3478 = vmatpush1.msra.mxu0 %v3165
    %3479 = vmatprep.subr.mxu0 %v3174
    %3480 = vmatpush1.msra.mxu0 %v3173
    %3481 = vmatprep.subr.mxu0 %v3182
    %3482 = vmatpush1.msra.mxu0 %v3181
    %3483 = vmatprep.subr.mxu0 0.0
    %3484 = vmatpush1.msra.mxu0 0.0
    %3485 = vmatprep.subr.mxu0 0.0
    %3486 = vmatpush1.msra.mxu0 0.0
    %3487 = vmatprep.subr.mxu0 0.0
    %3488 = vmatpush1.msra.mxu0 0.0
    %3489 = vmatprep.subr.mxu0 0.0
    %3490 = vmatpush1.msra.mxu0 0.0
    %3491 = vmatprep.subr.mxu0 0.0
    %3492 = vmatpush1.msra.mxu0 0.0
    %3493 = vmatprep.subr.mxu0 0.0
    %3494 = vmatpush1.msra.mxu0 0.0
    %3495 = vmatprep.subr.mxu0 0.0
    %3496 = vmatpush1.msra.mxu0 0.0
    %3497 = vmatprep.subr.mxu0 0.0
    %3498 = vmatpush1.msra.mxu0 0.0
    %3499 = vmatprep.subr.mxu0 0.0
    %3500 = vmatpush1.msra.mxu0 0.0
    %3501 = vmatprep.subr.mxu0 0.0
    %3502 = vmatpush1.msra.mxu0 0.0
    %3503 = vmatprep.subr.mxu0 0.0
    %3504 = vmatpush1.msra.mxu0 0.0
    %3505 = vmatprep.subr.mxu0 0.0
    %3506 = vmatpush1.msra.mxu0 0.0
    %3507 = vmatprep.subr.mxu0 0.0
    %3508 = vmatpush1.msra.mxu0 0.0
    %3509 = vmatprep.subr.mxu0 0.0
    %3510 = vmatpush1.msra.mxu0 0.0
    %3511 = vmatprep.subr.mxu0 0.0
    %3512 = vmatpush1.msra.mxu0 0.0
    %3513 = vmatprep.subr.mxu0 0.0
    %3514 = vmatpush1.msra.mxu0 0.0
    %3515 = vmatprep.subr.mxu0 0.0
    %3516 = vmatpush1.msra.mxu0 0.0
    %3517 = vmatprep.subr.mxu0 0.0
    %3518 = vmatpush1.msra.mxu0 0.0
    %3519 = vmatprep.subr.mxu0 0.0
    %3520 = vmatpush1.msra.mxu0 0.0
    %3521 = vmatprep.subr.mxu0 0.0
    %3522 = vmatpush1.msra.mxu0 0.0
    %3523 = vmatprep.subr.mxu0 0.0
    %3524 = vmatpush1.msra.mxu0 0.0
    %3525 = vmatprep.subr.mxu0 0.0
    %3526 = vmatpush1.msra.mxu0 0.0
    %3527 = vmatprep.subr.mxu0 0.0
    %3528 = vmatpush1.msra.mxu0 0.0
    %3529 = vmatprep.subr.mxu0 0.0
    %3530 = vmatpush1.msra.mxu0 0.0
    %3531 = vmatprep.mubr.f32.mxu0 0.0
    %3532 = vmatmul.mubr.f32.gmra.mrb[0].mxu0 %v3189
    %v3533 = vpop.f32.mrb[0].mxu0
    %v3534 = vadd.f32 0.0, %v3533
    %v3535 = vpop.f32.mrb[0].mxu0
    %v3536 = vadd.f32 0.0, %v3535
    %3537 = vmatprep.mubr.f32.mxu0 0.0
    %3538 = vmatmul.mubr.f32.gmra.mrb[0].mxu0 %v3192
    %v3539 = vpop.f32.mrb[0].mxu0
    %v3540 = vadd.f32 0.0, %v3539
    %v3541 = vpop.f32.mrb[0].mxu0
    %v3542 = vadd.f32 0.0, %v3541
    %3543 = vmatprep.mubr.f32.mxu0 0.0
    %3544 = vmatmul.mubr.f32.gmra.mrb[0].mxu0 %v3195
    %v3545 = vpop.f32.mrb[0].mxu0
    %v3546 = vadd.f32 0.0, %v3545
    %v3547 = vpop.f32.mrb[0].mxu0
    %v3548 = vadd.f32 0.0, %v3547
    %3549 = vmatprep.mubr.f32.mxu0 0.0
    %3550 = vmatmul.mubr.f32.gmra.mrb[0].mxu0 %v3198
    %v3551 = vpop.f32.mrb[0].mxu0
    %v3552 = vadd.f32 0.0, %v3551
    %v3553 = vpop.f32.mrb[0].mxu0
    %v3554 = vadd.f32 0.0, %v3553
    %3555 = vdwg.mxu0
    %v3556 = vmul.f32 %v3267, %v71
    %v3557 = vmul.f32 %v3269, %v72
    %v3558 = vmul.f32 %v3356, %v73
    %v3559 = vmul.f32 %v3358, %v74
    %v3560 = vmul.f32 %v3445, %v75
    %v3561 = vmul.f32 %v3447, %v76
    %v3562 = vmul.f32 %v3534, %v77
    %v3563 = vmul.f32 %v3536, %v78
    %v3564 = vmul.f32 %v3273, %v71
    %v3565 = vmul.f32 %v3275, %v72
    %v3566 = vmul.f32 %v3362, %v73
    %v3567 = vmul.f32 %v3364, %v74
    %v3568 = vmul.f32 %v3451, %v75
    %v3569 = vmul.f32 %v3453, %v76
    %v3570 = vmul.f32 %v3540, %v77
    %v3571 = vmul.f32 %v3542, %v78
    %v3572 = vmul.f32 %v3279, %v71
    %v3573 = vmul.f32 %v3281, %v72
    %v3574 = vmul.f32 %v3368, %v73
    %v3575 = vmul.f32 %v3370, %v74
    %v3576 = vmul.f32 %v3457, %v75
    %v3577 = vmul.f32 %v3459, %v76
    %v3578 = vmul.f32 %v3546, %v77
    %v3579 = vmul.f32 %v3548, %v78
    %v3580 = vmul.f32 %v3285, %v71
    %v3581 = vmul.f32 %v3287, %v72
    %v3582 = vmul.f32 %v3374, %v73
    %v3583 = vmul.f32 %v3376, %v74
    %v3584 = vmul.f32 %v3463, %v75
    %v3585 = vmul.f32 %v3465, %v76
    %v3586 = vmul.f32 %v3552, %v77
    %v3587 = vmul.f32 %v3554, %v78
    %v3588 = vadd.f32 %v3556, %v3557
    %v3589 = vadd.f32 %v3588, %v3558
    %v3590 = vadd.f32 %v3589, %v3559
    %v3591 = vadd.f32 %v3590, %v3560
    %v3592 = vadd.f32 %v3591, %v3561
    %v3593 = vadd.f32 %v3592, %v3562
    %v3594 = vadd.f32 %v3593, %v3563
    %3595 = vadd.xlane.f32.xlu0 %v3594
    %v3596 = vpop.xlane.xlu0 %3595
    %v3597 = vadd.f32 %v3564, %v3565
    %v3598 = vadd.f32 %v3597, %v3566
    %v3599 = vadd.f32 %v3598, %v3567
    %v3600 = vadd.f32 %v3599, %v3568
    %v3601 = vadd.f32 %v3600, %v3569
    %v3602 = vadd.f32 %v3601, %v3570
    %v3603 = vadd.f32 %v3602, %v3571
    %3604 = vadd.xlane.f32.xlu0 %v3603
    %v3605 = vpop.xlane.xlu0 %3604
    %v3606 = vadd.f32 %v3572, %v3573
    %v3607 = vadd.f32 %v3606, %v3574
    %v3608 = vadd.f32 %v3607, %v3575
    %v3609 = vadd.f32 %v3608, %v3576
    %v3610 = vadd.f32 %v3609, %v3577
    %v3611 = vadd.f32 %v3610, %v3578
    %v3612 = vadd.f32 %v3611, %v3579
    %3613 = vadd.xlane.f32.xlu0 %v3612
    %v3614 = vpop.xlane.xlu0 %3613
    %v3615 = vadd.f32 %v3580, %v3581
    %v3616 = vadd.f32 %v3615, %v3582
    %v3617 = vadd.f32 %v3616, %v3583
    %v3618 = vadd.f32 %v3617, %v3584
    %v3619 = vadd.f32 %v3618, %v3585
    %v3620 = vadd.f32 %v3619, %v3586
    %v3621 = vadd.f32 %v3620, %v3587
    %3622 = vadd.xlane.f32.xlu0 %v3621
    %v3623 = vpop.xlane.xlu0 %3622
    %v3624 = vmul.f32 %v3596, 0.001
    %v3625 = vmul.f32 %v3605, 0.001
    %v3626 = vmul.f32 %v3614, 0.001
    %v3627 = vmul.f32 %v3623, 0.001
    %v3628 = vmul.f32 %v3556, %v3267
    %v3629 = vmul.f32 %v3557, %v3269
    %v3630 = vmul.f32 %v3558, %v3356
    %v3631 = vmul.f32 %v3559, %v3358
    %v3632 = vmul.f32 %v3560, %v3445
    %v3633 = vmul.f32 %v3561, %v3447
    %v3634 = vmul.f32 %v3562, %v3534
    %v3635 = vmul.f32 %v3563, %v3536
    %v3636 = vmul.f32 %v3564, %v3273
    %v3637 = vmul.f32 %v3565, %v3275
    %v3638 = vmul.f32 %v3566, %v3362
    %v3639 = vmul.f32 %v3567, %v3364
    %v3640 = vmul.f32 %v3568, %v3451
    %v3641 = vmul.f32 %v3569, %v3453
    %v3642 = vmul.f32 %v3570, %v3540
    %v3643 = vmul.f32 %v3571, %v3542
    %v3644 = vmul.f32 %v3572, %v3279
    %v3645 = vmul.f32 %v3573, %v3281
    %v3646 = vmul.f32 %v3574, %v3368
    %v3647 = vmul.f32 %v3575, %v3370
    %v3648 = vmul.f32 %v3576, %v3457
    %v3649 = vmul.f32 %v3577, %v3459
    %v3650 = vmul.f32 %v3578, %v3546
    %v3651 = vmul.f32 %v3579, %v3548
    %v3652 = vmul.f32 %v3580, %v3285
    %v3653 = vmul.f32 %v3581, %v3287
    %v3654 = vmul.f32 %v3582, %v3374
    %v3655 = vmul.f32 %v3583, %v3376
    %v3656 = vmul.f32 %v3584, %v3463
    %v3657 = vmul.f32 %v3585, %v3465
    %v3658 = vmul.f32 %v3586, %v3552
    %v3659 = vmul.f32 %v3587, %v3554
    %v3660 = vadd.f32 %v3628, %v3629
    %v3661 = vadd.f32 %v3660, %v3630
    %v3662 = vadd.f32 %v3661, %v3631
    %v3663 = vadd.f32 %v3662, %v3632
    %v3664 = vadd.f32 %v3663, %v3633
    %v3665 = vadd.f32 %v3664, %v3634
    %v3666 = vadd.f32 %v3665, %v3635
    %3667 = vadd.xlane.f32.xlu0 %v3666
    %v3668 = vpop.xlane.xlu0 %3667
    %v3669 = vadd.f32 %v3636, %v3637
    %v3670 = vadd.f32 %v3669, %v3638
    %v3671 = vadd.f32 %v3670, %v3639
    %v3672 = vadd.f32 %v3671, %v3640
    %v3673 = vadd.f32 %v3672, %v3641
    %v3674 = vadd.f32 %v3673, %v3642
    %v3675 = vadd.f32 %v3674, %v3643
    %3676 = vadd.xlane.f32.xlu0 %v3675
    %v3677 = vpop.xlane.xlu0 %3676
    %v3678 = vadd.f32 %v3644, %v3645
    %v3679 = vadd.f32 %v3678, %v3646
    %v3680 = vadd.f32 %v3679, %v3647
    %v3681 = vadd.f32 %v3680, %v3648
    %v3682 = vadd.f32 %v3681, %v3649
    %v3683 = vadd.f32 %v3682, %v3650
    %v3684 = vadd.f32 %v3683, %v3651
    %3685 = vadd.xlane.f32.xlu0 %v3684
    %v3686 = vpop.xlane.xlu0 %3685
    %v3687 = vadd.f32 %v3652, %v3653
    %v3688 = vadd.f32 %v3687, %v3654
    %v3689 = vadd.f32 %v3688, %v3655
    %v3690 = vadd.f32 %v3689, %v3656
    %v3691 = vadd.f32 %v3690, %v3657
    %v3692 = vadd.f32 %v3691, %v3658
    %v3693 = vadd.f32 %v3692, %v3659
    %3694 = vadd.xlane.f32.xlu0 %v3693
    %v3695 = vpop.xlane.xlu0 %3694
    %v3696 = vmul.f32 %v3668, 0.001
    %v3697 = vmul.f32 %v3677, 0.001
    %v3698 = vmul.f32 %v3686, 0.001
    %v3699 = vmul.f32 %v3695, 0.001
    %v3700 = vmul.f32 %v3624, %v3624
    %v3701 = vmul.f32 %v3625, %v3625
    %v3702 = vmul.f32 %v3626, %v3626
    %v3703 = vmul.f32 %v3627, %v3627
    %v3704 = vsub.f32 %v3696, %v3700
    %v3705 = vsub.f32 %v3697, %v3701
    %v3706 = vsub.f32 %v3698, %v3702
    %v3707 = vsub.f32 %v3699, %v3703
    %v3708 = vmax.f32 %v3704, 0.0
    %v3709 = vmax.f32 %v3705, 0.0
    %v3710 = vmax.f32 %v3706, 0.0
    %v3711 = vmax.f32 %v3707, 0.0
    %v3712 = vld [vmem:[%s11] sm:$0xff]
    %v3713 = vld [vmem:[%s11 + $0x8] sm:$0xff]
    %v3714 = vld [vmem:[%s11 + $0x10] sm:$0xff]
    %v3715 = vld [vmem:[%s11 + $0x18] sm:$0xff]
    %v3716 = vadd.f32 %v3708, 1e-05
    %v3717 = vadd.f32 %v3709, 1e-05
    %v3718 = vadd.f32 %v3710, 1e-05
    %v3719 = vadd.f32 %v3711, 1e-05
    %v3720 = vrsqrt.pop %v3716
    %v3721 = vrsqrt.pop %v3717
    %v3722 = vrsqrt.pop %v3718
    %v3723 = vrsqrt.pop %v3719
    %v3724 = vmul.f32 %v3712, %v3720
    %v3725 = vmul.f32 %v3713, %v3721
    %v3726 = vmul.f32 %v3714, %v3722
    %v3727 = vmul.f32 %v3715, %v3723
    %v3728 = vld [vmem:[%s12] sm:$0xff]
    %v3729 = vld [vmem:[%s12 + $0x8] sm:$0xff]
    %v3730 = vld [vmem:[%s12 + $0x10] sm:$0xff]
    %v3731 = vld [vmem:[%s12 + $0x18] sm:$0xff]
    %v3732 = vmul.f32 %v3624, %v3724
    %v3733 = vmul.f32 %v3625, %v3725
    %v3734 = vmul.f32 %v3626, %v3726
    %v3735 = vmul.f32 %v3627, %v3727
    %v3736 = vsub.f32 %v3728, %v3732
    %v3737 = vsub.f32 %v3729, %v3733
    %v3738 = vsub.f32 %v3730, %v3734
    %v3739 = vsub.f32 %v3731, %v3735
    %3741 = vset.pattern.permute.xlu0 0
    %3742 = vperm.xlu0 %3741, %v3724
    %v3743 = vpop.permute.xlu0 %3742
    %3746 = vset.pattern.permute.xlu0 0
    %3747 = vperm.xlu0 %3746, %v3725
    %v3748 = vpop.permute.xlu0 %3747
    %3751 = vset.pattern.permute.xlu0 0
    %3752 = vperm.xlu0 %3751, %v3726
    %v3753 = vpop.permute.xlu0 %3752
    %3756 = vset.pattern.permute.xlu0 0
    %3757 = vperm.xlu0 %3756, %v3727
    %v3758 = vpop.permute.xlu0 %3757
    %v3760 = vmul.f32 %v3267, %v3743
    %v3761 = vmul.f32 %v3269, %v3743
    %v3762 = vmul.f32 %v3356, %v3743
    %v3763 = vmul.f32 %v3358, %v3743
    %v3764 = vmul.f32 %v3445, %v3743
    %v3765 = vmul.f32 %v3447, %v3743
    %v3766 = vmul.f32 %v3534, %v3743
    %v3767 = vmul.f32 %v3536, %v3743
    %v3768 = vmul.f32 %v3273, %v3748
    %v3769 = vmul.f32 %v3275, %v3748
    %v3770 = vmul.f32 %v3362, %v3748
    %v3771 = vmul.f32 %v3364, %v3748
    %v3772 = vmul.f32 %v3451, %v3748
    %v3773 = vmul.f32 %v3453, %v3748
    %v3774 = vmul.f32 %v3540, %v3748
    %v3775 = vmul.f32 %v3542, %v3748
    %v3776 = vmul.f32 %v3279, %v3753
    %v3777 = vmul.f32 %v3281, %v3753
    %v3778 = vmul.f32 %v3368, %v3753
    %v3779 = vmul.f32 %v3370, %v3753
    %v3780 = vmul.f32 %v3457, %v3753
    %v3781 = vmul.f32 %v3459, %v3753
    %v3782 = vmul.f32 %v3546, %v3753
    %v3783 = vmul.f32 %v3548, %v3753
    %v3784 = vmul.f32 %v3285, %v3758
    %v3785 = vmul.f32 %v3287, %v3758
    %v3786 = vmul.f32 %v3374, %v3758
    %v3787 = vmul.f32 %v3376, %v3758
    %v3788 = vmul.f32 %v3463, %v3758
    %v3789 = vmul.f32 %v3465, %v3758
    %v3790 = vmul.f32 %v3552, %v3758
    %v3791 = vmul.f32 %v3554, %v3758
    %3793 = vset.pattern.permute.xlu0 0
    %3794 = vperm.xlu0 %3793, %v3736
    %v3795 = vpop.permute.xlu0 %3794
    %3798 = vset.pattern.permute.xlu0 0
    %3799 = vperm.xlu0 %3798, %v3737
    %v3800 = vpop.permute.xlu0 %3799
    %3803 = vset.pattern.permute.xlu0 0
    %3804 = vperm.xlu0 %3803, %v3738
    %v3805 = vpop.permute.xlu0 %3804
    %3808 = vset.pattern.permute.xlu0 0
    %3809 = vperm.xlu0 %3808, %v3739
    %v3810 = vpop.permute.xlu0 %3809
    %v3812 = vadd.f32 %v3760, %v3795
    %v3813 = vadd.f32 %v3761, %v3795
    %v3814 = vadd.f32 %v3762, %v3795
    %v3815 = vadd.f32 %v3763, %v3795
    %v3816 = vadd.f32 %v3764, %v3795
    %v3817 = vadd.f32 %v3765, %v3795
    %v3818 = vadd.f32 %v3766, %v3795
    %v3819 = vadd.f32 %v3767, %v3795
    %v3820 = vadd.f32 %v3768, %v3800
    %v3821 = vadd.f32 %v3769, %v3800
    %v3822 = vadd.f32 %v3770, %v3800
    %v3823 = vadd.f32 %v3771, %v3800
    %v3824 = vadd.f32 %v3772, %v3800
    %v3825 = vadd.f32 %v3773, %v3800
    %v3826 = vadd.f32 %v3774, %v3800
    %v3827 = vadd.f32 %v3775, %v3800
    %v3828 = vadd.f32 %v3776, %v3805
    %v3829 = vadd.f32 %v3777, %v3805
    %v3830 = vadd.f32 %v3778, %v3805
    %v3831 = vadd.f32 %v3779, %v3805
    %v3832 = vadd.f32 %v3780, %v3805
    %v3833 = vadd.f32 %v3781, %v3805
    %v3834 = vadd.f32 %v3782, %v3805
    %v3835 = vadd.f32 %v3783, %v3805
    %v3836 = vadd.f32 %v3784, %v3810
    %v3837 = vadd.f32 %v3785, %v3810
    %v3838 = vadd.f32 %v3786, %v3810
    %v3839 = vadd.f32 %v3787, %v3810
    %v3840 = vadd.f32 %v3788, %v3810
    %v3841 = vadd.f32 %v3789, %v3810
    %v3842 = vadd.f32 %v3790, %v3810
    %v3843 = vadd.f32 %v3791, %v3810
    %v3844 = vmax.f32 %v3812, 0.0
    %v3845 = vmax.f32 %v3813, 0.0
    %v3846 = vmax.f32 %v3814, 0.0
    %v3847 = vmax.f32 %v3815, 0.0
    %v3848 = vmax.f32 %v3816, 0.0
    %v3849 = vmax.f32 %v3817, 0.0
    %v3850 = vmax.f32 %v3818, 0.0
    %v3851 = vmax.f32 %v3819, 0.0
    %v3852 = vmax.f32 %v3820, 0.0
    %v3853 = vmax.f32 %v3821, 0.0
    %v3854 = vmax.f32 %v3822, 0.0
    %v3855 = vmax.f32 %v3823, 0.0
    %v3856 = vmax.f32 %v3824, 0.0
    %v3857 = vmax.f32 %v3825, 0.0
    %v3858 = vmax.f32 %v3826, 0.0
    %v3859 = vmax.f32 %v3827, 0.0
    %v3860 = vmax.f32 %v3828, 0.0
    %v3861 = vmax.f32 %v3829, 0.0
    %v3862 = vmax.f32 %v3830, 0.0
    %v3863 = vmax.f32 %v3831, 0.0
    %v3864 = vmax.f32 %v3832, 0.0
    %v3865 = vmax.f32 %v3833, 0.0
    %v3866 = vmax.f32 %v3834, 0.0
    %v3867 = vmax.f32 %v3835, 0.0
    %v3868 = vmax.f32 %v3836, 0.0
    %v3869 = vmax.f32 %v3837, 0.0
    %v3870 = vmax.f32 %v3838, 0.0
    %v3871 = vmax.f32 %v3839, 0.0
    %v3872 = vmax.f32 %v3840, 0.0
    %v3873 = vmax.f32 %v3841, 0.0
    %v3874 = vmax.f32 %v3842, 0.0
    %v3875 = vmax.f32 %v3843, 0.0
    %v3876 = vld [vmem:[%s5] sm:$0xff]
    %v3877 = vld [vmem:[%s5 + $0x8] sm:$0xff]
    %v3878 = vld [vmem:[%s5 + $0x10] sm:$0xff]
    %v3879 = vld [vmem:[%s5 + $0x18] sm:$0xff]
    %3881 = vset.pattern.permute.xlu0 0
    %3882 = vperm.xlu0 %3881, %v3876
    %v3883 = vpop.permute.xlu0 %3882
    %3886 = vset.pattern.permute.xlu0 0
    %3887 = vperm.xlu0 %3886, %v3877
    %v3888 = vpop.permute.xlu0 %3887
    %3891 = vset.pattern.permute.xlu0 0
    %3892 = vperm.xlu0 %3891, %v3878
    %v3893 = vpop.permute.xlu0 %3892
    %3896 = vset.pattern.permute.xlu0 0
    %3897 = vperm.xlu0 %3896, %v3879
    %v3898 = vpop.permute.xlu0 %3897
    %v3900 = vmul.f32 %v3844, %v3883
    %v3901 = vmul.f32 %v3845, %v3883
    %v3902 = vmul.f32 %v3846, %v3883
    %v3903 = vmul.f32 %v3847, %v3883
    %v3904 = vmul.f32 %v3848, %v3883
    %v3905 = vmul.f32 %v3849, %v3883
    %v3906 = vmul.f32 %v3850, %v3883
    %v3907 = vmul.f32 %v3851, %v3883
    %v3908 = vmul.f32 %v3852, %v3888
    %v3909 = vmul.f32 %v3853, %v3888
    %v3910 = vmul.f32 %v3854, %v3888
    %v3911 = vmul.f32 %v3855, %v3888
    %v3912 = vmul.f32 %v3856, %v3888
    %v3913 = vmul.f32 %v3857, %v3888
    %v3914 = vmul.f32 %v3858, %v3888
    %v3915 = vmul.f32 %v3859, %v3888
    %v3916 = vmul.f32 %v3860, %v3893
    %v3917 = vmul.f32 %v3861, %v3893
    %v3918 = vmul.f32 %v3862, %v3893
    %v3919 = vmul.f32 %v3863, %v3893
    %v3920 = vmul.f32 %v3864, %v3893
    %v3921 = vmul.f32 %v3865, %v3893
    %v3922 = vmul.f32 %v3866, %v3893
    %v3923 = vmul.f32 %v3867, %v3893
    %v3924 = vmul.f32 %v3868, %v3898
    %v3925 = vmul.f32 %v3869, %v3898
    %v3926 = vmul.f32 %v3870, %v3898
    %v3927 = vmul.f32 %v3871, %v3898
    %v3928 = vmul.f32 %v3872, %v3898
    %v3929 = vmul.f32 %v3873, %v3898
    %v3930 = vmul.f32 %v3874, %v3898
    %v3931 = vmul.f32 %v3875, %v3898
    %v3932 = vadd.f32 %v3900, %v3908
    %v3933 = vadd.f32 %v3932, %v3916
    %v3934 = vadd.f32 %v3933, %v3924
    %v3935 = vrot.slane %v3934, 4
    %v3936 = vadd.f32 %v3934, %v3935
    %v3937 = vrot.slane %v3936, 2
    %v3938 = vadd.f32 %v3936, %v3937
    %v3939 = vrot.slane %v3938, 1
    %v3940 = vadd.f32 %v3938, %v3939
    %v3941 = vadd.f32 %v3901, %v3909
    %v3942 = vadd.f32 %v3941, %v3917
    %v3943 = vadd.f32 %v3942, %v3925
    %v3944 = vrot.slane %v3943, 4
    %v3945 = vadd.f32 %v3943, %v3944
    %v3946 = vrot.slane %v3945, 2
    %v3947 = vadd.f32 %v3945, %v3946
    %v3948 = vrot.slane %v3947, 1
    %v3949 = vadd.f32 %v3947, %v3948
    %v3950 = vadd.f32 %v3902, %v3910
    %v3951 = vadd.f32 %v3950, %v3918
    %v3952 = vadd.f32 %v3951, %v3926
    %v3953 = vrot.slane %v3952, 4
    %v3954 = vadd.f32 %v3952, %v3953
    %v3955 = vrot.slane %v3954, 2
    %v3956 = vadd.f32 %v3954, %v3955
    %v3957 = vrot.slane %v3956, 1
    %v3958 = vadd.f32 %v3956, %v3957
    %v3959 = vadd.f32 %v3903, %v3911
    %v3960 = vadd.f32 %v3959, %v3919
    %v3961 = vadd.f32 %v3960, %v3927
    %v3962 = vrot.slane %v3961, 4
    %v3963 = vadd.f32 %v3961, %v3962
    %v3964 = vrot.slane %v3963, 2
    %v3965 = vadd.f32 %v3963, %v3964
    %v3966 = vrot.slane %v3965, 1
    %v3967 = vadd.f32 %v3965, %v3966
    %v3968 = vadd.f32 %v3904, %v3912
    %v3969 = vadd.f32 %v3968, %v3920
    %v3970 = vadd.f32 %v3969, %v3928
    %v3971 = vrot.slane %v3970, 4
    %v3972 = vadd.f32 %v3970, %v3971
    %v3973 = vrot.slane %v3972, 2
    %v3974 = vadd.f32 %v3972, %v3973
    %v3975 = vrot.slane %v3974, 1
    %v3976 = vadd.f32 %v3974, %v3975
    %v3977 = vadd.f32 %v3905, %v3913
    %v3978 = vadd.f32 %v3977, %v3921
    %v3979 = vadd.f32 %v3978, %v3929
    %v3980 = vrot.slane %v3979, 4
    %v3981 = vadd.f32 %v3979, %v3980
    %v3982 = vrot.slane %v3981, 2
    %v3983 = vadd.f32 %v3981, %v3982
    %v3984 = vrot.slane %v3983, 1
    %v3985 = vadd.f32 %v3983, %v3984
    %v3986 = vadd.f32 %v3906, %v3914
    %v3987 = vadd.f32 %v3986, %v3922
    %v3988 = vadd.f32 %v3987, %v3930
    %v3989 = vrot.slane %v3988, 4
    %v3990 = vadd.f32 %v3988, %v3989
    %v3991 = vrot.slane %v3990, 2
    %v3992 = vadd.f32 %v3990, %v3991
    %v3993 = vrot.slane %v3992, 1
    %v3994 = vadd.f32 %v3992, %v3993
    %v3995 = vadd.f32 %v3907, %v3915
    %v3996 = vadd.f32 %v3995, %v3923
    %v3997 = vadd.f32 %v3996, %v3931
    %v3998 = vrot.slane %v3997, 4
    %v3999 = vadd.f32 %v3997, %v3998
    %v4000 = vrot.slane %v3999, 2
    %v4001 = vadd.f32 %v3999, %v4000
    %v4002 = vrot.slane %v4001, 1
    %v4003 = vadd.f32 %v4001, %v4002
    %s4004 = sld [smem:[#allocation2]]
    %v4005 = vstv %s4004
    %v4006 = vadd.f32 %v3940, %v4005
    %v4007 = vadd.f32 %v3949, %v4005
    %v4008 = vadd.f32 %v3958, %v4005
    %v4009 = vadd.f32 %v3967, %v4005
    %v4010 = vadd.f32 %v3976, %v4005
    %v4011 = vadd.f32 %v3985, %v4005
    %v4012 = vadd.f32 %v3994, %v4005
    %v4013 = vadd.f32 %v4003, %v4005
    %v4022 = vcombine.low %v4006, %v4007
    %v4023 = vcombine.low %v4008, %v4009
    %v4024 = vcombine.low %v4010, %v4011
    %v4025 = vcombine.low %v4012, %v4013
    %v4027 = vunpack.c.l.s4 1966171168
    %v4028 = vunpack.c.0.s8 %v4027
    %v4029 = vlaneseq
    %v4030 = vshrl.u32 %v4029, 7
    %v4031 = vsub.s32 %v4028, %v4030
    %v4032 = vrot.slane %v4022, %v4031
    %v4034 = vunpack.c.l.s4 1966171168
    %v4035 = vunpack.c.0.s8 %v4034
    %v4036 = vlaneseq
    %v4037 = vshrl.u32 %v4036, 7
    %v4038 = vsub.s32 %v4035, %v4037
    %v4039 = vrot.slane %v4023, %v4038
    %v4041 = vunpack.c.l.s4 1966171168
    %v4042 = vunpack.c.0.s8 %v4041
    %v4043 = vlaneseq
    %v4044 = vshrl.u32 %v4043, 7
    %v4045 = vsub.s32 %v4042, %v4044
    %v4046 = vrot.slane %v4024, %v4045
    %v4048 = vunpack.c.l.s4 1966171168
    %v4049 = vunpack.c.0.s8 %v4048
    %v4050 = vlaneseq
    %v4051 = vshrl.u32 %v4050, 7
    %v4052 = vsub.s32 %v4049, %v4051
    %v4053 = vrot.slane %v4025, %v4052
    %v4054 = vcombine.low %v4032, %v4039
    %v4055 = vcombine.low %v4046, %v4053
    %v4057 = vunpack.c.l.s4 1966171168
    %v4058 = vunpack.c.0.s8 %v4057
    %v4059 = vlaneseq
    %v4060 = vshrl.u32 %v4059, 7
    %v4061 = vsub.s32 %v4058, %v4060
    %v4062 = vrot.slane %v4054, %v4061
    %v4064 = vunpack.c.l.s4 1966171168
    %v4065 = vunpack.c.0.s8 %v4064
    %v4066 = vlaneseq
    %v4067 = vshrl.u32 %v4066, 7
    %v4068 = vsub.s32 %v4065, %v4067
    %v4069 = vrot.slane %v4055, %v4068
    %v4070 = vcombine.low %v4062, %v4069
    %4072 = vst [vmem:[#allocation3] sm:$0xff] %v4070
    // Predicated region
    $region54: #{tpu_custom_call.1} parent=1 // pred_check
      _
    $region55: #{tpu_custom_call.1} parent=1 // pred_check_branch
      %4074 = sbr.rel (0) target = $region57
    $region56: #{tpu_custom_call.1} parent=1 // pred_region
      %s4076 = ssub.s32 128, 128
      %4077 = vsyncadd [#allocation4], %s4076
      %s4079 = sshll.u32 [#allocation3], 4
      %s4080 = int_to_ptr.vmem [resolvable:$true] %s4079
      %4082 = dma.vmem_to_hbm [thread:$0]  %s4080, 128, %s13, [#allocation4]
    $region57: #{tpu_custom_call.1} parent=1 // pred_fallthru
      _
    // Predicated region
    $region58: #{tpu_custom_call.1} parent=1 // pred_check
      _
    $region59: #{tpu_custom_call.1} parent=1 // pred_check_branch
      %4084 = sbr.rel (0) target = $region61
    $region60: #{tpu_custom_call.1} parent=1 // pred_region
      %4085 = dma.done [#allocation4], 128
    $region61: #{tpu_custom_call.1} parent=1 // pred_fallthru
      _
    %4086 = vsyncpa [#allocation4], 1

</llo_original>
